<compile_context>
chip_gen: v5e
topology: v5e:2x2
jax: 0.10.0
libtpu: 0.0.40
codegen_flags: <defaults>
</compile_context>

<pallas_src>
import functools

import jax
import jax.numpy as jnp
from jax.experimental import pallas as pl
from jax.experimental.pallas import tpu as pltpu


# ---------------------------------------------------------------------------
# Small helpers
# ---------------------------------------------------------------------------
def _round_up(x, m):
    return ((x + m - 1) // m) * m


def _vmem_capacity_bytes():
    """Per-TensorCore VMEM capacity; conservative fallback = 64 MiB (v7x)."""
    try:
        cap = int(pltpu.get_tpu_info().vmem_capacity_bytes)
        if cap > 0:
            return cap
    except Exception:
        pass
    return 64 << 20


def _pick_bt(B, max_bt=4):
    """Largest divisor of B that is <= max_bt (amortizes per-step overhead while
    keeping enough grid steps for megacore sharding)."""
    bt = 1
    for cand in range(1, min(B, max_bt) + 1):
        if B % cand == 0:
            bt = cand
    return bt


def _pick_chunk(tk, coutp):
    """Lane-chunk for the in-kernel accumulator: largest of (512,256,128) that
    divides tk and keeps both f32 accumulators comfortably inside the vreg file."""
    for c in (512, 256, 128):
        if tk % c == 0 and coutp * c * 8 <= (128 << 10):   # 2 accs * 4 B <= 128 KiB
            return c
    return 128


def _choose_tiling(K, Cin, Cout, itemsize, max_bt=4, tk_max=8192, unroll_budget=1024):
    """Pick (TK, Kp, Coutp).  TK is chosen from the VMEM budget first; Kp is then
    padded up to a multiple of TK (padded lanes are zeros and sliced off later)."""
    Coutp = _round_up(Cout, 8)
    Kp_min = _round_up(K, 128)

    budget = int(0.70 * _vmem_capacity_bytes())     # headroom for acc/temps/scratch
    slop = 4 << 20
    # Bytes per K-lane of one pipeline step, double buffered, re+im split
    # (x and w in the compute dtype, output always f32).
    per_lane = 2 * (2 * (max_bt * Cin + Cin * Coutp) * itemsize
                    + 2 * max_bt * Coutp * 4)
    tk = max(128, ((max(budget - slop, 1 << 20)) // per_lane) // 128 * 128)

    # Bound the static in-kernel unroll (Bt * n_chunks * Cin) for compile time.
    n_chunks_max = max(1, unroll_budget // max(1, max_bt * Cin))
    tk = min(tk, tk_max, max(128, n_chunks_max * 256), Kp_min)

    # Prefer >= 2 K-tiles so both v7x TensorCores get work even at tiny batch.
    if Kp_min > 128 and Kp_min // tk < 2:
        tk = max(128, ((Kp_min // 2) // 128) * 128)

    Kp = _round_up(K, tk)
    return tk, Kp, Coutp


# ---------------------------------------------------------------------------
# Pallas kernel: per-mode complex contraction over input channels.
#   out[b, o, k] = sum_i x[b, i, k] * w[i, o, k]   (complex arithmetic)
# Blocks: x (Bt, Cin, TK), w (Cin, Coutp, TK), out (Bt, Coutp, TK).
# The accumulator for one (batch row, K-chunk) is only (Coutp, chunk) f32 —
# a few vregs — so it lives in registers across the Cin unroll and each chunk
# is written to the output ref exactly once.
# ---------------------------------------------------------------------------
def _spectral_mul_kernel(chunk, xr_ref, xi_ref, wr_ref, wi_ref, or_ref, oi_ref):
    bt, cin, tk = xr_ref.shape
    coutp = wr_ref.shape[1]
    n_chunks = tk // chunk

    for b in range(bt):                    # static: Bt <= 4
        for c in range(n_chunks):          # static: bounded by _choose_tiling
            k0 = c * chunk
            acc_r = jnp.zeros((coutp, chunk), jnp.float32)
            acc_i = jnp.zeros((coutp, chunk), jnp.float32)
            for i in range(cin):           # static unroll over input channels
                xr = xr_ref[b, pl.ds(i, 1), pl.ds(k0, chunk)].astype(jnp.float32)  # (1, chunk)
                xi = xi_ref[b, pl.ds(i, 1), pl.ds(k0, chunk)].astype(jnp.float32)
                wr = wr_ref[i, :, pl.ds(k0, chunk)].astype(jnp.float32)             # (Coutp, chunk)
                wi = wi_ref[i, :, pl.ds(k0, chunk)].astype(jnp.float32)
                acc_r = acc_r + (xr * wr - xi * wi)
                acc_i = acc_i + (xr * wi + xi * wr)
            or_ref[b, :, pl.ds(k0, chunk)] = acc_r.astype(or_ref.dtype)
            oi_ref[b, :, pl.ds(k0, chunk)] = acc_i.astype(oi_ref.dtype)


def spectral_mul_pallas(x_re, x_im, w_re, w_im, *, tk):
    """x_*: (B, Cin, Kp); w_*: (Cin, Coutp, Kp); Kp % tk == 0, tk % 128 == 0.
    Returns (out_re, out_im): (B, Coutp, Kp) float32."""
    B, Cin, Kp = x_re.shape
    Coutp = w_re.shape[1]
    assert tk % 128 == 0
    if Kp % tk != 0:   # defensive fallback: largest 128-multiple divisor of Kp
        tk = min(tk, Kp)
        while Kp % tk:
            tk -= 128

    itemsize = jnp.dtype(x_re.dtype).itemsize
    Bt = _pick_bt(B, max_bt=4)
    chunk = _pick_chunk(tk, Coutp)

    grid = (Kp // tk, B // Bt)   # K-tile axis outer, batch axis innermost

    # Weight block index depends only on the K-tile index -> unchanged across the
    # inner batch loop, so Pallas skips re-DMA of the weights for every b.
    x_spec = pl.BlockSpec((Bt, Cin, tk), lambda kt, b: (b, 0, kt))
    w_spec = pl.BlockSpec((Cin, Coutp, tk), lambda kt, b: (0, 0, kt))
    o_spec = pl.BlockSpec((Bt, Coutp, tk), lambda kt, b: (b, 0, kt))

    # Per-step VMEM: double-buffered x/w/out blocks (re+im) + slop for acc/temps.
    per_step = (2 * (2 * (Bt * Cin + Cin * Coutp) * itemsize
                     + 2 * Bt * Coutp * 4) * tk) + (4 << 20)
    cap = _vmem_capacity_bytes()
    vmem_limit = int(min(int(0.9 * cap), max(32 << 20, int(1.25 * per_step))))

    kernel = functools.partial(_spectral_mul_kernel, chunk)

    out_re, out_im = pl.pallas_call(
        kernel,
        out_shape=(
            jax.ShapeDtypeStruct((B, Coutp, Kp), jnp.float32),
            jax.ShapeDtypeStruct((B, Coutp, Kp), jnp.float32),
        ),
        grid_spec=pltpu.PrefetchScalarGridSpec(
            num_scalar_prefetch=0,
            grid=grid,
            in_specs=[x_spec, x_spec, w_spec, w_spec],
            out_specs=[o_spec, o_spec],
        ),
        compiler_params=pltpu.CompilerParams(
            # Both axes are truly independent (every block written once), so both
            # are parallel -> v7x can shard the grid across its 2 TensorCores.
            dimension_semantics=("parallel", "parallel"),
            vmem_limit_bytes=vmem_limit,
        ),
    )(x_re, x_im, w_re, w_im)
    return out_re, out_im


# ---------------------------------------------------------------------------
# Corner-block bookkeeping (matches the 8 PyTorch assignments, in order).
# ---------------------------------------------------------------------------
def _corner_slices(D1, D2, D3, D4, m1, m2, m3, m4):
    lo1, hi1 = slice(0, m1), slice(D1 - m1, D1)
    lo2, hi2 = slice(0, m2), slice(D2 - m2, D2)
    lo3, hi3 = slice(0, m3), slice(D3 - m3, D3)
    lo4 = slice(0, m4)
    return [
        (lo1, lo2, lo3, lo4),
        (hi1, lo2, lo3, lo4),
        (lo1, hi2, lo3, lo4),
        (lo1, lo2, hi3, lo4),
        (hi1, hi2, lo3, lo4),
        (hi1, lo2, hi3, lo4),
        (lo1, hi2, hi3, lo4),
        (hi1, hi2, hi3, lo4),
    ]


def pack_spectral_weights(weights, modes, dtype=jnp.float32):
    """Pack the 8 (Cin, Cout, m1, m2, m3, m4, 2) weight tensors once into split
    re/im (Cin, Coutp, Kp) arrays, with Cout padded to a multiple of 8 and
    Kp padded to a multiple of the kernel K-tile.  Do this at init time."""
    m1, m2, m3, m4 = modes
    Cin, Cout = weights[0].shape[0], weights[0].shape[1]
    M = m1 * m2 * m3 * m4
    K = 8 * M
    itemsize = jnp.dtype(dtype).itemsize
    _, Kp, Coutp = _choose_tiling(K, Cin, Cout, itemsize)

    w_re = jnp.concatenate([w[..., 0].reshape(Cin, Cout, M) for w in weights], axis=-1)
    w_im = jnp.concatenate([w[..., 1].reshape(Cin, Cout, M) for w in weights], axis=-1)
    pad = ((0, 0), (0, Coutp - Cout), (0, Kp - K))
    w_re = jnp.pad(w_re, pad).astype(dtype)
    w_im = jnp.pad(w_im, pad).astype(dtype)
    return w_re, w_im


# ---------------------------------------------------------------------------
# Full forward pass (FFT glue in plain JAX, contraction in Pallas).
# ---------------------------------------------------------------------------
@functools.partial(jax.jit, static_argnames=("modes", "out_channels"))
def spectral_conv4d_forward(x, w_re, w_im, *, modes, out_channels):
    """x: (B, Cin, D1, D2, D3, D4) f32.
    w_re/w_im: packed weights from pack_spectral_weights (their dtype — f32 or
    bf16 — is the compute/storage dtype of the Pallas inputs; accumulation is
    always f32 in-kernel)."""
    B, Cin, D1, D2, D3, D4 = x.shape
    m1, m2, m3, m4 = modes
    Cout = out_channels
    M = m1 * m2 * m3 * m4
    K = 8 * M

    compute_dtype = w_re.dtype
    itemsize = jnp.dtype(compute_dtype).itemsize
    tk, Kp, Coutp = _choose_tiling(K, Cin, Cout, itemsize)
    assert w_re.shape == (Cin, Coutp, Kp), (
        f"packed weight shape {w_re.shape} does not match expected {(Cin, Coutp, Kp)}")

    # Forward real FFT over the last 4 dims (same convention as torch.fft.rfftn).
    x_ft = jnp.fft.rfftn(x, axes=(-4, -3, -2, -1))      # (B, Cin, D1, D2, D3, D4//2+1)

    slices = _corner_slices(D1, D2, D3, D4, m1, m2, m3, m4)

    # Gather the 8 corner mode-blocks, flatten modes, concatenate -> K lanes.
    # TODO(synk): this gather/concat (and the scatter below) round-trips the
    # corner spectrum through HBM; it could be fused into the Pallas kernel via
    # a per-corner grid axis with scalar-prefetched offsets.
    x_blocks = [
        x_ft[:, :, s1, s2, s3, s4].reshape(B, Cin, M) for (s1, s2, s3, s4) in slices
    ]
    x_cat = jnp.concatenate(x_blocks, axis=-1)           # (B, Cin, K) complex64

    x_re = jnp.real(x_cat).astype(compute_dtype)
    x_im = jnp.imag(x_cat).astype(compute_dtype)
    if Kp != K:
        pad = ((0, 0), (0, 0), (0, Kp - K))
        x_re = jnp.pad(x_re, pad)
        x_im = jnp.pad(x_im, pad)

    out_re, out_im = spectral_mul_pallas(x_re, x_im, w_re, w_im, tk=tk)
    out_cat = (out_re[:, :Cout, :K] + 1j * out_im[:, :Cout, :K]).astype(jnp.complex64)

    # Scatter back into the (sparse) output spectrum in the same order as the
    # PyTorch in-place assignments (later blocks overwrite earlier on overlap).
    out_ft = jnp.zeros((B, Cout, D1, D2, D3, D4 // 2 + 1), dtype=jnp.complex64)
    for r, (s1, s2, s3, s4) in enumerate(slices):
        blk = out_cat[:, :, r * M:(r + 1) * M].reshape(B, Cout, m1, m2, m3, m4)
        out_ft = out_ft.at[:, :, s1, s2, s3, s4].set(blk)

    # Inverse real FFT back to the spatial domain.
    y = jnp.fft.irfftn(out_ft, s=(D1, D2, D3, D4), axes=(-4, -3, -2, -1))
    return y.astype(jnp.float32)


# ---------------------------------------------------------------------------
# Pure-JAX reference (same semantics, einsum instead of Pallas) for sanity.
# ---------------------------------------------------------------------------
def spectral_conv4d_reference(x, weights, modes):
    B, Cin, D1, D2, D3, D4 = x.shape
    m1, m2, m3, m4 = modes
    Cout = weights[0].shape[1]
    x_ft = jnp.fft.rfftn(x, axes=(-4, -3, -2, -1))
    out_ft = jnp.zeros((B, Cout, D1, D2, D3, D4 // 2 + 1), dtype=jnp.complex64)
    for (s1, s2, s3, s4), w in zip(_corner_slices(D1, D2, D3, D4, m1, m2, m3, m4), weights):
        cw = w[..., 0] + 1j * w[..., 1]
        blk = jnp.einsum("bixyzt,ioxyzt->boxyzt", x_ft[:, :, s1, s2, s3, s4], cw)
        out_ft = out_ft.at[:, :, s1, s2, s3, s4].set(blk)
    return jnp.fft.irfftn(out_ft, s=(D1, D2, D3, D4), axes=(-4, -3, -2, -1)).astype(jnp.float32)


if __name__ == "__main__":
    key = jax.random.PRNGKey(0)

    # Small shapes consistent with the module.
    B, Cin, Cout = 2, 4, 4
    D1 = D2 = D3 = D4 = 8
    m1 = m2 = m3 = m4 = 3
    modes = (m1, m2, m3, m4)

    key, xk = jax.random.split(key)
    x = jax.random.normal(xk, (B, Cin, D1, D2, D3, D4), dtype=jnp.float32)

    # Deterministic weight init matching reset_parameters(): scale * U(0, 1).
    scale = 1.0 / (Cin * Cout)
    wkeys = jax.random.split(key, 8)
    weights = tuple(
        scale * jax.random.uniform(wk, (Cin, Cout, m1, m2, m3, m4, 2), dtype=jnp.float32)
        for wk in wkeys
    )

    y_ref = spectral_conv4d_reference(x, weights, modes)

    # f32 storage/compute path — tight tolerance against the reference.
    w_re, w_im = pack_spectral_weights(weights, modes, dtype=jnp.float32)
    y = spectral_conv4d_forward(x, w_re, w_im, modes=modes, out_channels=Cout)
    y = jax.block_until_ready(y)
    assert y.shape == (B, Cout, D1, D2, D3, D4)
    assert jnp.allclose(y, y_ref, atol=1e-4, rtol=1e-4)

    # bf16 storage path (halves weight/x HBM traffic; f32 accumulation in-kernel)
    # — loose tolerance.
    w_re16, w_im16 = pack_spectral_weights(weights, modes, dtype=jnp.bfloat16)
    y16 = spectral_conv4d_forward(x, w_re16, w_im16, modes=modes, out_channels=Cout)
    y16 = jax.block_until_ready(y16)
    assert y16.shape == (B, Cout, D1, D2, D3, D4)
    assert jnp.allclose(y16, y_ref, atol=5e-2, rtol=5e-2)

    print("KERNEL_OK")
</pallas_src>

<mosaic_0001>
module attributes {stable_mosaic.version = 11 : i64} {
  func.func @_spectral_mul_kernel(%arg0: i32, %arg1: i32, %arg2: memref<2x4x384xf32, #tpu.memory_space<vmem>>, %arg3: memref<2x4x384xf32, #tpu.memory_space<vmem>>, %arg4: memref<4x8x384xf32, #tpu.memory_space<vmem>>, %arg5: memref<4x8x384xf32, #tpu.memory_space<vmem>>, %arg6: memref<2x8x384xf32, #tpu.memory_space<vmem>>, %arg7: memref<2x8x384xf32, #tpu.memory_space<vmem>>) attributes {dimension_semantics = [#tpu.dimension_semantics<parallel>, #tpu.dimension_semantics<parallel>], iteration_bounds = array<i64: 2, 1>, scalar_prefetch = 0 : i64, scratch_operands = 0 : i64, tpu.core_type = #tpu.core_type<tc>, window_params = [{transform_indices = @transform_0, window_bounds = array<i64: 2, 4, 384>}, {transform_indices = @transform_1, window_bounds = array<i64: 2, 4, 384>}, {transform_indices = @transform_2, window_bounds = array<i64: 4, 8, 384>}, {transform_indices = @transform_3, window_bounds = array<i64: 4, 8, 384>}, {transform_indices = @transform_4, window_bounds = array<i64: 2, 8, 384>}, {transform_indices = @transform_5, window_bounds = array<i64: 2, 8, 384>}]} {
    %cst = arith.constant 0.000000e+00 : f32
    %0 = vector.broadcast %cst : f32 to vector<8x128xf32>
    %cst_0 = arith.constant 0.000000e+00 : f32
    %1 = vector.broadcast %cst_0 : f32 to vector<8x128xf32>
    %c0 = arith.constant 0 : index
    %c0_1 = arith.constant 0 : index
    %c0_2 = arith.constant 0 : index
    %2 = vector.load %arg2[%c0, %c0_1, %c0_2] : memref<2x4x384xf32, #tpu.memory_space<vmem>>, vector<1x1x128xf32>
    %3 = vector.shape_cast %2 : vector<1x1x128xf32> to vector<1x128xf32>
    %c0_3 = arith.constant 0 : index
    %c0_4 = arith.constant 0 : index
    %c0_5 = arith.constant 0 : index
    %4 = vector.load %arg3[%c0_3, %c0_4, %c0_5] : memref<2x4x384xf32, #tpu.memory_space<vmem>>, vector<1x1x128xf32>
    %5 = vector.shape_cast %4 : vector<1x1x128xf32> to vector<1x128xf32>
    %c0_6 = arith.constant 0 : index
    %c0_7 = arith.constant 0 : index
    %c0_8 = arith.constant 0 : index
    %6 = vector.load %arg4[%c0_6, %c0_7, %c0_8] : memref<4x8x384xf32, #tpu.memory_space<vmem>>, vector<1x8x128xf32>
    %7 = vector.shape_cast %6 : vector<1x8x128xf32> to vector<8x128xf32>
    %c0_9 = arith.constant 0 : index
    %c0_10 = arith.constant 0 : index
    %c0_11 = arith.constant 0 : index
    %8 = vector.load %arg5[%c0_9, %c0_10, %c0_11] : memref<4x8x384xf32, #tpu.memory_space<vmem>>, vector<1x8x128xf32>
    %9 = vector.shape_cast %8 : vector<1x8x128xf32> to vector<8x128xf32>
    %10 = vector.broadcast %3 : vector<1x128xf32> to vector<8x128xf32>
    %11 = arith.mulf %10, %7 : vector<8x128xf32>
    %12 = vector.broadcast %5 : vector<1x128xf32> to vector<8x128xf32>
    %13 = arith.mulf %12, %9 : vector<8x128xf32>
    %14 = arith.subf %11, %13 : vector<8x128xf32>
    %15 = arith.addf %0, %14 : vector<8x128xf32>
    %16 = vector.broadcast %3 : vector<1x128xf32> to vector<8x128xf32>
    %17 = arith.mulf %16, %9 : vector<8x128xf32>
    %18 = vector.broadcast %5 : vector<1x128xf32> to vector<8x128xf32>
    %19 = arith.mulf %18, %7 : vector<8x128xf32>
    %20 = arith.addf %17, %19 : vector<8x128xf32>
    %21 = arith.addf %1, %20 : vector<8x128xf32>
    %c0_12 = arith.constant 0 : index
    %c1 = arith.constant 1 : index
    %c0_13 = arith.constant 0 : index
    %22 = vector.load %arg2[%c0_12, %c1, %c0_13] : memref<2x4x384xf32, #tpu.memory_space<vmem>>, vector<1x1x128xf32>
    %23 = vector.shape_cast %22 : vector<1x1x128xf32> to vector<1x128xf32>
    %c0_14 = arith.constant 0 : index
    %c1_15 = arith.constant 1 : index
    %c0_16 = arith.constant 0 : index
    %24 = vector.load %arg3[%c0_14, %c1_15, %c0_16] : memref<2x4x384xf32, #tpu.memory_space<vmem>>, vector<1x1x128xf32>
    %25 = vector.shape_cast %24 : vector<1x1x128xf32> to vector<1x128xf32>
    %c1_17 = arith.constant 1 : index
    %c0_18 = arith.constant 0 : index
    %c0_19 = arith.constant 0 : index
    %26 = vector.load %arg4[%c1_17, %c0_18, %c0_19] : memref<4x8x384xf32, #tpu.memory_space<vmem>>, vector<1x8x128xf32>
    %27 = vector.shape_cast %26 : vector<1x8x128xf32> to vector<8x128xf32>
    %c1_20 = arith.constant 1 : index
    %c0_21 = arith.constant 0 : index
    %c0_22 = arith.constant 0 : index
    %28 = vector.load %arg5[%c1_20, %c0_21, %c0_22] : memref<4x8x384xf32, #tpu.memory_space<vmem>>, vector<1x8x128xf32>
    %29 = vector.shape_cast %28 : vector<1x8x128xf32> to vector<8x128xf32>
    %30 = vector.broadcast %23 : vector<1x128xf32> to vector<8x128xf32>
    %31 = arith.mulf %30, %27 : vector<8x128xf32>
    %32 = vector.broadcast %25 : vector<1x128xf32> to vector<8x128xf32>
    %33 = arith.mulf %32, %29 : vector<8x128xf32>
    %34 = arith.subf %31, %33 : vector<8x128xf32>
    %35 = arith.addf %15, %34 : vector<8x128xf32>
    %36 = vector.broadcast %23 : vector<1x128xf32> to vector<8x128xf32>
    %37 = arith.mulf %36, %29 : vector<8x128xf32>
    %38 = vector.broadcast %25 : vector<1x128xf32> to vector<8x128xf32>
    %39 = arith.mulf %38, %27 : vector<8x128xf32>
    %40 = arith.addf %37, %39 : vector<8x128xf32>
    %41 = arith.addf %21, %40 : vector<8x128xf32>
    %c0_23 = arith.constant 0 : index
    %c2 = arith.constant 2 : index
    %c0_24 = arith.constant 0 : index
    %42 = vector.load %arg2[%c0_23, %c2, %c0_24] : memref<2x4x384xf32, #tpu.memory_space<vmem>>, vector<1x1x128xf32>
    %43 = vector.shape_cast %42 : vector<1x1x128xf32> to vector<1x128xf32>
    %c0_25 = arith.constant 0 : index
    %c2_26 = arith.constant 2 : index
    %c0_27 = arith.constant 0 : index
    %44 = vector.load %arg3[%c0_25, %c2_26, %c0_27] : memref<2x4x384xf32, #tpu.memory_space<vmem>>, vector<1x1x128xf32>
    %45 = vector.shape_cast %44 : vector<1x1x128xf32> to vector<1x128xf32>
    %c2_28 = arith.constant 2 : index
    %c0_29 = arith.constant 0 : index
    %c0_30 = arith.constant 0 : index
    %46 = vector.load %arg4[%c2_28, %c0_29, %c0_30] : memref<4x8x384xf32, #tpu.memory_space<vmem>>, vector<1x8x128xf32>
    %47 = vector.shape_cast %46 : vector<1x8x128xf32> to vector<8x128xf32>
    %c2_31 = arith.constant 2 : index
    %c0_32 = arith.constant 0 : index
    %c0_33 = arith.constant 0 : index
    %48 = vector.load %arg5[%c2_31, %c0_32, %c0_33] : memref<4x8x384xf32, #tpu.memory_space<vmem>>, vector<1x8x128xf32>
    %49 = vector.shape_cast %48 : vector<1x8x128xf32> to vector<8x128xf32>
    %50 = vector.broadcast %43 : vector<1x128xf32> to vector<8x128xf32>
    %51 = arith.mulf %50, %47 : vector<8x128xf32>
    %52 = vector.broadcast %45 : vector<1x128xf32> to vector<8x128xf32>
    %53 = arith.mulf %52, %49 : vector<8x128xf32>
    %54 = arith.subf %51, %53 : vector<8x128xf32>
    %55 = arith.addf %35, %54 : vector<8x128xf32>
    %56 = vector.broadcast %43 : vector<1x128xf32> to vector<8x128xf32>
    %57 = arith.mulf %56, %49 : vector<8x128xf32>
    %58 = vector.broadcast %45 : vector<1x128xf32> to vector<8x128xf32>
    %59 = arith.mulf %58, %47 : vector<8x128xf32>
    %60 = arith.addf %57, %59 : vector<8x128xf32>
    %61 = arith.addf %41, %60 : vector<8x128xf32>
    %c0_34 = arith.constant 0 : index
    %c3 = arith.constant 3 : index
    %c0_35 = arith.constant 0 : index
    %62 = vector.load %arg2[%c0_34, %c3, %c0_35] : memref<2x4x384xf32, #tpu.memory_space<vmem>>, vector<1x1x128xf32>
    %63 = vector.shape_cast %62 : vector<1x1x128xf32> to vector<1x128xf32>
    %c0_36 = arith.constant 0 : index
    %c3_37 = arith.constant 3 : index
    %c0_38 = arith.constant 0 : index
    %64 = vector.load %arg3[%c0_36, %c3_37, %c0_38] : memref<2x4x384xf32, #tpu.memory_space<vmem>>, vector<1x1x128xf32>
    %65 = vector.shape_cast %64 : vector<1x1x128xf32> to vector<1x128xf32>
    %c3_39 = arith.constant 3 : index
    %c0_40 = arith.constant 0 : index
    %c0_41 = arith.constant 0 : index
    %66 = vector.load %arg4[%c3_39, %c0_40, %c0_41] : memref<4x8x384xf32, #tpu.memory_space<vmem>>, vector<1x8x128xf32>
    %67 = vector.shape_cast %66 : vector<1x8x128xf32> to vector<8x128xf32>
    %c3_42 = arith.constant 3 : index
    %c0_43 = arith.constant 0 : index
    %c0_44 = arith.constant 0 : index
    %68 = vector.load %arg5[%c3_42, %c0_43, %c0_44] : memref<4x8x384xf32, #tpu.memory_space<vmem>>, vector<1x8x128xf32>
    %69 = vector.shape_cast %68 : vector<1x8x128xf32> to vector<8x128xf32>
    %70 = vector.broadcast %63 : vector<1x128xf32> to vector<8x128xf32>
    %71 = arith.mulf %70, %67 : vector<8x128xf32>
    %72 = vector.broadcast %65 : vector<1x128xf32> to vector<8x128xf32>
    %73 = arith.mulf %72, %69 : vector<8x128xf32>
    %74 = arith.subf %71, %73 : vector<8x128xf32>
    %75 = arith.addf %55, %74 : vector<8x128xf32>
    %76 = vector.broadcast %63 : vector<1x128xf32> to vector<8x128xf32>
    %77 = arith.mulf %76, %69 : vector<8x128xf32>
    %78 = vector.broadcast %65 : vector<1x128xf32> to vector<8x128xf32>
    %79 = arith.mulf %78, %67 : vector<8x128xf32>
    %80 = arith.addf %77, %79 : vector<8x128xf32>
    %81 = arith.addf %61, %80 : vector<8x128xf32>
    %c0_45 = arith.constant 0 : index
    %c0_46 = arith.constant 0 : index
    %c0_47 = arith.constant 0 : index
    %82 = vector.load %arg6[%c0_45, %c0_46, %c0_47] : memref<2x8x384xf32, #tpu.memory_space<vmem>>, vector<1x8x128xf32>
    %83 = vector.shape_cast %82 : vector<1x8x128xf32> to vector<8x128xf32>
    %84 = vector.shape_cast %75 : vector<8x128xf32> to vector<1x8x128xf32>
    tpu.vector_store %arg6[%c0_45, %c0_46, %c0_47], %84 {strides = array<i32>} : memref<2x8x384xf32, #tpu.memory_space<vmem>>, vector<1x8x128xf32>,
    %c0_48 = arith.constant 0 : index
    %c0_49 = arith.constant 0 : index
    %c0_50 = arith.constant 0 : index
    %85 = vector.load %arg7[%c0_48, %c0_49, %c0_50] : memref<2x8x384xf32, #tpu.memory_space<vmem>>, vector<1x8x128xf32>
    %86 = vector.shape_cast %85 : vector<1x8x128xf32> to vector<8x128xf32>
    %87 = vector.shape_cast %81 : vector<8x128xf32> to vector<1x8x128xf32>
    tpu.vector_store %arg7[%c0_48, %c0_49, %c0_50], %87 {strides = array<i32>} : memref<2x8x384xf32, #tpu.memory_space<vmem>>, vector<1x8x128xf32>,
    %cst_51 = arith.constant 0.000000e+00 : f32
    %88 = vector.broadcast %cst_51 : f32 to vector<8x128xf32>
    %cst_52 = arith.constant 0.000000e+00 : f32
    %89 = vector.broadcast %cst_52 : f32 to vector<8x128xf32>
    %c0_53 = arith.constant 0 : index
    %c0_54 = arith.constant 0 : index
    %c128 = arith.constant 128 : index
    %90 = vector.load %arg2[%c0_53, %c0_54, %c128] : memref<2x4x384xf32, #tpu.memory_space<vmem>>, vector<1x1x128xf32>
    %91 = vector.shape_cast %90 : vector<1x1x128xf32> to vector<1x128xf32>
    %c0_55 = arith.constant 0 : index
    %c0_56 = arith.constant 0 : index
    %c128_57 = arith.constant 128 : index
    %92 = vector.load %arg3[%c0_55, %c0_56, %c128_57] : memref<2x4x384xf32, #tpu.memory_space<vmem>>, vector<1x1x128xf32>
    %93 = vector.shape_cast %92 : vector<1x1x128xf32> to vector<1x128xf32>
    %c0_58 = arith.constant 0 : index
    %c0_59 = arith.constant 0 : index
    %c128_60 = arith.constant 128 : index
    %94 = vector.load %arg4[%c0_58, %c0_59, %c128_60] : memref<4x8x384xf32, #tpu.memory_space<vmem>>, vector<1x8x128xf32>
    %95 = vector.shape_cast %94 : vector<1x8x128xf32> to vector<8x128xf32>
    %c0_61 = arith.constant 0 : index
    %c0_62 = arith.constant 0 : index
    %c128_63 = arith.constant 128 : index
    %96 = vector.load %arg5[%c0_61, %c0_62, %c128_63] : memref<4x8x384xf32, #tpu.memory_space<vmem>>, vector<1x8x128xf32>
    %97 = vector.shape_cast %96 : vector<1x8x128xf32> to vector<8x128xf32>
    %98 = vector.broadcast %91 : vector<1x128xf32> to vector<8x128xf32>
    %99 = arith.mulf %98, %95 : vector<8x128xf32>
    %100 = vector.broadcast %93 : vector<1x128xf32> to vector<8x128xf32>
    %101 = arith.mulf %100, %97 : vector<8x128xf32>
    %102 = arith.subf %99, %101 : vector<8x128xf32>
    %103 = arith.addf %88, %102 : vector<8x128xf32>
    %104 = vector.broadcast %91 : vector<1x128xf32> to vector<8x128xf32>
    %105 = arith.mulf %104, %97 : vector<8x128xf32>
    %106 = vector.broadcast %93 : vector<1x128xf32> to vector<8x128xf32>
    %107 = arith.mulf %106, %95 : vector<8x128xf32>
    %108 = arith.addf %105, %107 : vector<8x128xf32>
    %109 = arith.addf %89, %108 : vector<8x128xf32>
    %c0_64 = arith.constant 0 : index
    %c1_65 = arith.constant 1 : index
    %c128_66 = arith.constant 128 : index
    %110 = vector.load %arg2[%c0_64, %c1_65, %c128_66] : memref<2x4x384xf32, #tpu.memory_space<vmem>>, vector<1x1x128xf32>
    %111 = vector.shape_cast %110 : vector<1x1x128xf32> to vector<1x128xf32>
    %c0_67 = arith.constant 0 : index
    %c1_68 = arith.constant 1 : index
    %c128_69 = arith.constant 128 : index
    %112 = vector.load %arg3[%c0_67, %c1_68, %c128_69] : memref<2x4x384xf32, #tpu.memory_space<vmem>>, vector<1x1x128xf32>
    %113 = vector.shape_cast %112 : vector<1x1x128xf32> to vector<1x128xf32>
    %c1_70 = arith.constant 1 : index
    %c0_71 = arith.constant 0 : index
    %c128_72 = arith.constant 128 : index
    %114 = vector.load %arg4[%c1_70, %c0_71, %c128_72] : memref<4x8x384xf32, #tpu.memory_space<vmem>>, vector<1x8x128xf32>
    %115 = vector.shape_cast %114 : vector<1x8x128xf32> to vector<8x128xf32>
    %c1_73 = arith.constant 1 : index
    %c0_74 = arith.constant 0 : index
    %c128_75 = arith.constant 128 : index
    %116 = vector.load %arg5[%c1_73, %c0_74, %c128_75] : memref<4x8x384xf32, #tpu.memory_space<vmem>>, vector<1x8x128xf32>
    %117 = vector.shape_cast %116 : vector<1x8x128xf32> to vector<8x128xf32>
    %118 = vector.broadcast %111 : vector<1x128xf32> to vector<8x128xf32>
    %119 = arith.mulf %118, %115 : vector<8x128xf32>
    %120 = vector.broadcast %113 : vector<1x128xf32> to vector<8x128xf32>
    %121 = arith.mulf %120, %117 : vector<8x128xf32>
    %122 = arith.subf %119, %121 : vector<8x128xf32>
    %123 = arith.addf %103, %122 : vector<8x128xf32>
    %124 = vector.broadcast %111 : vector<1x128xf32> to vector<8x128xf32>
    %125 = arith.mulf %124, %117 : vector<8x128xf32>
    %126 = vector.broadcast %113 : vector<1x128xf32> to vector<8x128xf32>
    %127 = arith.mulf %126, %115 : vector<8x128xf32>
    %128 = arith.addf %125, %127 : vector<8x128xf32>
    %129 = arith.addf %109, %128 : vector<8x128xf32>
    %c0_76 = arith.constant 0 : index
    %c2_77 = arith.constant 2 : index
    %c128_78 = arith.constant 128 : index
    %130 = vector.load %arg2[%c0_76, %c2_77, %c128_78] : memref<2x4x384xf32, #tpu.memory_space<vmem>>, vector<1x1x128xf32>
    %131 = vector.shape_cast %130 : vector<1x1x128xf32> to vector<1x128xf32>
    %c0_79 = arith.constant 0 : index
    %c2_80 = arith.constant 2 : index
    %c128_81 = arith.constant 128 : index
    %132 = vector.load %arg3[%c0_79, %c2_80, %c128_81] : memref<2x4x384xf32, #tpu.memory_space<vmem>>, vector<1x1x128xf32>
    %133 = vector.shape_cast %132 : vector<1x1x128xf32> to vector<1x128xf32>
    %c2_82 = arith.constant 2 : index
    %c0_83 = arith.constant 0 : index
    %c128_84 = arith.constant 128 : index
    %134 = vector.load %arg4[%c2_82, %c0_83, %c128_84] : memref<4x8x384xf32, #tpu.memory_space<vmem>>, vector<1x8x128xf32>
    %135 = vector.shape_cast %134 : vector<1x8x128xf32> to vector<8x128xf32>
    %c2_85 = arith.constant 2 : index
    %c0_86 = arith.constant 0 : index
    %c128_87 = arith.constant 128 : index
    %136 = vector.load %arg5[%c2_85, %c0_86, %c128_87] : memref<4x8x384xf32, #tpu.memory_space<vmem>>, vector<1x8x128xf32>
    %137 = vector.shape_cast %136 : vector<1x8x128xf32> to vector<8x128xf32>
    %138 = vector.broadcast %131 : vector<1x128xf32> to vector<8x128xf32>
    %139 = arith.mulf %138, %135 : vector<8x128xf32>
    %140 = vector.broadcast %133 : vector<1x128xf32> to vector<8x128xf32>
    %141 = arith.mulf %140, %137 : vector<8x128xf32>
    %142 = arith.subf %139, %141 : vector<8x128xf32>
    %143 = arith.addf %123, %142 : vector<8x128xf32>
    %144 = vector.broadcast %131 : vector<1x128xf32> to vector<8x128xf32>
    %145 = arith.mulf %144, %137 : vector<8x128xf32>
    %146 = vector.broadcast %133 : vector<1x128xf32> to vector<8x128xf32>
    %147 = arith.mulf %146, %135 : vector<8x128xf32>
    %148 = arith.addf %145, %147 : vector<8x128xf32>
    %149 = arith.addf %129, %148 : vector<8x128xf32>
    %c0_88 = arith.constant 0 : index
    %c3_89 = arith.constant 3 : index
    %c128_90 = arith.constant 128 : index
    %150 = vector.load %arg2[%c0_88, %c3_89, %c128_90] : memref<2x4x384xf32, #tpu.memory_space<vmem>>, vector<1x1x128xf32>
    %151 = vector.shape_cast %150 : vector<1x1x128xf32> to vector<1x128xf32>
    %c0_91 = arith.constant 0 : index
    %c3_92 = arith.constant 3 : index
    %c128_93 = arith.constant 128 : index
    %152 = vector.load %arg3[%c0_91, %c3_92, %c128_93] : memref<2x4x384xf32, #tpu.memory_space<vmem>>, vector<1x1x128xf32>
    %153 = vector.shape_cast %152 : vector<1x1x128xf32> to vector<1x128xf32>
    %c3_94 = arith.constant 3 : index
    %c0_95 = arith.constant 0 : index
    %c128_96 = arith.constant 128 : index
    %154 = vector.load %arg4[%c3_94, %c0_95, %c128_96] : memref<4x8x384xf32, #tpu.memory_space<vmem>>, vector<1x8x128xf32>
    %155 = vector.shape_cast %154 : vector<1x8x128xf32> to vector<8x128xf32>
    %c3_97 = arith.constant 3 : index
    %c0_98 = arith.constant 0 : index
    %c128_99 = arith.constant 128 : index
    %156 = vector.load %arg5[%c3_97, %c0_98, %c128_99] : memref<4x8x384xf32, #tpu.memory_space<vmem>>, vector<1x8x128xf32>
    %157 = vector.shape_cast %156 : vector<1x8x128xf32> to vector<8x128xf32>
    %158 = vector.broadcast %151 : vector<1x128xf32> to vector<8x128xf32>
    %159 = arith.mulf %158, %155 : vector<8x128xf32>
    %160 = vector.broadcast %153 : vector<1x128xf32> to vector<8x128xf32>
    %161 = arith.mulf %160, %157 : vector<8x128xf32>
    %162 = arith.subf %159, %161 : vector<8x128xf32>
    %163 = arith.addf %143, %162 : vector<8x128xf32>
    %164 = vector.broadcast %151 : vector<1x128xf32> to vector<8x128xf32>
    %165 = arith.mulf %164, %157 : vector<8x128xf32>
    %166 = vector.broadcast %153 : vector<1x128xf32> to vector<8x128xf32>
    %167 = arith.mulf %166, %155 : vector<8x128xf32>
    %168 = arith.addf %165, %167 : vector<8x128xf32>
    %169 = arith.addf %149, %168 : vector<8x128xf32>
    %c0_100 = arith.constant 0 : index
    %c0_101 = arith.constant 0 : index
    %c128_102 = arith.constant 128 : index
    %170 = vector.load %arg6[%c0_100, %c0_101, %c128_102] : memref<2x8x384xf32, #tpu.memory_space<vmem>>, vector<1x8x128xf32>
    %171 = vector.shape_cast %170 : vector<1x8x128xf32> to vector<8x128xf32>
    %172 = vector.shape_cast %163 : vector<8x128xf32> to vector<1x8x128xf32>
    tpu.vector_store %arg6[%c0_100, %c0_101, %c128_102], %172 {strides = array<i32>} : memref<2x8x384xf32, #tpu.memory_space<vmem>>, vector<1x8x128xf32>,
    %c0_103 = arith.constant 0 : index
    %c0_104 = arith.constant 0 : index
    %c128_105 = arith.constant 128 : index
    %173 = vector.load %arg7[%c0_103, %c0_104, %c128_105] : memref<2x8x384xf32, #tpu.memory_space<vmem>>, vector<1x8x128xf32>
    %174 = vector.shape_cast %173 : vector<1x8x128xf32> to vector<8x128xf32>
    %175 = vector.shape_cast %169 : vector<8x128xf32> to vector<1x8x128xf32>
    tpu.vector_store %arg7[%c0_103, %c0_104, %c128_105], %175 {strides = array<i32>} : memref<2x8x384xf32, #tpu.memory_space<vmem>>, vector<1x8x128xf32>,
    %cst_106 = arith.constant 0.000000e+00 : f32
    %176 = vector.broadcast %cst_106 : f32 to vector<8x128xf32>
    %cst_107 = arith.constant 0.000000e+00 : f32
    %177 = vector.broadcast %cst_107 : f32 to vector<8x128xf32>
    %c0_108 = arith.constant 0 : index
    %c0_109 = arith.constant 0 : index
    %c256 = arith.constant 256 : index
    %178 = vector.load %arg2[%c0_108, %c0_109, %c256] : memref<2x4x384xf32, #tpu.memory_space<vmem>>, vector<1x1x128xf32>
    %179 = vector.shape_cast %178 : vector<1x1x128xf32> to vector<1x128xf32>
    %c0_110 = arith.constant 0 : index
    %c0_111 = arith.constant 0 : index
    %c256_112 = arith.constant 256 : index
    %180 = vector.load %arg3[%c0_110, %c0_111, %c256_112] : memref<2x4x384xf32, #tpu.memory_space<vmem>>, vector<1x1x128xf32>
    %181 = vector.shape_cast %180 : vector<1x1x128xf32> to vector<1x128xf32>
    %c0_113 = arith.constant 0 : index
    %c0_114 = arith.constant 0 : index
    %c256_115 = arith.constant 256 : index
    %182 = vector.load %arg4[%c0_113, %c0_114, %c256_115] : memref<4x8x384xf32, #tpu.memory_space<vmem>>, vector<1x8x128xf32>
    %183 = vector.shape_cast %182 : vector<1x8x128xf32> to vector<8x128xf32>
    %c0_116 = arith.constant 0 : index
    %c0_117 = arith.constant 0 : index
    %c256_118 = arith.constant 256 : index
    %184 = vector.load %arg5[%c0_116, %c0_117, %c256_118] : memref<4x8x384xf32, #tpu.memory_space<vmem>>, vector<1x8x128xf32>
    %185 = vector.shape_cast %184 : vector<1x8x128xf32> to vector<8x128xf32>
    %186 = vector.broadcast %179 : vector<1x128xf32> to vector<8x128xf32>
    %187 = arith.mulf %186, %183 : vector<8x128xf32>
    %188 = vector.broadcast %181 : vector<1x128xf32> to vector<8x128xf32>
    %189 = arith.mulf %188, %185 : vector<8x128xf32>
    %190 = arith.subf %187, %189 : vector<8x128xf32>
    %191 = arith.addf %176, %190 : vector<8x128xf32>
    %192 = vector.broadcast %179 : vector<1x128xf32> to vector<8x128xf32>
    %193 = arith.mulf %192, %185 : vector<8x128xf32>
    %194 = vector.broadcast %181 : vector<1x128xf32> to vector<8x128xf32>
    %195 = arith.mulf %194, %183 : vector<8x128xf32>
    %196 = arith.addf %193, %195 : vector<8x128xf32>
    %197 = arith.addf %177, %196 : vector<8x128xf32>
    %c0_119 = arith.constant 0 : index
    %c1_120 = arith.constant 1 : index
    %c256_121 = arith.constant 256 : index
    %198 = vector.load %arg2[%c0_119, %c1_120, %c256_121] : memref<2x4x384xf32, #tpu.memory_space<vmem>>, vector<1x1x128xf32>
    %199 = vector.shape_cast %198 : vector<1x1x128xf32> to vector<1x128xf32>
    %c0_122 = arith.constant 0 : index
    %c1_123 = arith.constant 1 : index
    %c256_124 = arith.constant 256 : index
    %200 = vector.load %arg3[%c0_122, %c1_123, %c256_124] : memref<2x4x384xf32, #tpu.memory_space<vmem>>, vector<1x1x128xf32>
    %201 = vector.shape_cast %200 : vector<1x1x128xf32> to vector<1x128xf32>
    %c1_125 = arith.constant 1 : index
    %c0_126 = arith.constant 0 : index
    %c256_127 = arith.constant 256 : index
    %202 = vector.load %arg4[%c1_125, %c0_126, %c256_127] : memref<4x8x384xf32, #tpu.memory_space<vmem>>, vector<1x8x128xf32>
    %203 = vector.shape_cast %202 : vector<1x8x128xf32> to vector<8x128xf32>
    %c1_128 = arith.constant 1 : index
    %c0_129 = arith.constant 0 : index
    %c256_130 = arith.constant 256 : index
    %204 = vector.load %arg5[%c1_128, %c0_129, %c256_130] : memref<4x8x384xf32, #tpu.memory_space<vmem>>, vector<1x8x128xf32>
    %205 = vector.shape_cast %204 : vector<1x8x128xf32> to vector<8x128xf32>
    %206 = vector.broadcast %199 : vector<1x128xf32> to vector<8x128xf32>
    %207 = arith.mulf %206, %203 : vector<8x128xf32>
    %208 = vector.broadcast %201 : vector<1x128xf32> to vector<8x128xf32>
    %209 = arith.mulf %208, %205 : vector<8x128xf32>
    %210 = arith.subf %207, %209 : vector<8x128xf32>
    %211 = arith.addf %191, %210 : vector<8x128xf32>
    %212 = vector.broadcast %199 : vector<1x128xf32> to vector<8x128xf32>
    %213 = arith.mulf %212, %205 : vector<8x128xf32>
    %214 = vector.broadcast %201 : vector<1x128xf32> to vector<8x128xf32>
    %215 = arith.mulf %214, %203 : vector<8x128xf32>
    %216 = arith.addf %213, %215 : vector<8x128xf32>
    %217 = arith.addf %197, %216 : vector<8x128xf32>
    %c0_131 = arith.constant 0 : index
    %c2_132 = arith.constant 2 : index
    %c256_133 = arith.constant 256 : index
    %218 = vector.load %arg2[%c0_131, %c2_132, %c256_133] : memref<2x4x384xf32, #tpu.memory_space<vmem>>, vector<1x1x128xf32>
    %219 = vector.shape_cast %218 : vector<1x1x128xf32> to vector<1x128xf32>
    %c0_134 = arith.constant 0 : index
    %c2_135 = arith.constant 2 : index
    %c256_136 = arith.constant 256 : index
    %220 = vector.load %arg3[%c0_134, %c2_135, %c256_136] : memref<2x4x384xf32, #tpu.memory_space<vmem>>, vector<1x1x128xf32>
    %221 = vector.shape_cast %220 : vector<1x1x128xf32> to vector<1x128xf32>
    %c2_137 = arith.constant 2 : index
    %c0_138 = arith.constant 0 : index
    %c256_139 = arith.constant 256 : index
    %222 = vector.load %arg4[%c2_137, %c0_138, %c256_139] : memref<4x8x384xf32, #tpu.memory_space<vmem>>, vector<1x8x128xf32>
    %223 = vector.shape_cast %222 : vector<1x8x128xf32> to vector<8x128xf32>
    %c2_140 = arith.constant 2 : index
    %c0_141 = arith.constant 0 : index
    %c256_142 = arith.constant 256 : index
    %224 = vector.load %arg5[%c2_140, %c0_141, %c256_142] : memref<4x8x384xf32, #tpu.memory_space<vmem>>, vector<1x8x128xf32>
    %225 = vector.shape_cast %224 : vector<1x8x128xf32> to vector<8x128xf32>
    %226 = vector.broadcast %219 : vector<1x128xf32> to vector<8x128xf32>
    %227 = arith.mulf %226, %223 : vector<8x128xf32>
    %228 = vector.broadcast %221 : vector<1x128xf32> to vector<8x128xf32>
    %229 = arith.mulf %228, %225 : vector<8x128xf32>
    %230 = arith.subf %227, %229 : vector<8x128xf32>
    %231 = arith.addf %211, %230 : vector<8x128xf32>
    %232 = vector.broadcast %219 : vector<1x128xf32> to vector<8x128xf32>
    %233 = arith.mulf %232, %225 : vector<8x128xf32>
    %234 = vector.broadcast %221 : vector<1x128xf32> to vector<8x128xf32>
    %235 = arith.mulf %234, %223 : vector<8x128xf32>
    %236 = arith.addf %233, %235 : vector<8x128xf32>
    %237 = arith.addf %217, %236 : vector<8x128xf32>
    %c0_143 = arith.constant 0 : index
    %c3_144 = arith.constant 3 : index
    %c256_145 = arith.constant 256 : index
    %238 = vector.load %arg2[%c0_143, %c3_144, %c256_145] : memref<2x4x384xf32, #tpu.memory_space<vmem>>, vector<1x1x128xf32>
    %239 = vector.shape_cast %238 : vector<1x1x128xf32> to vector<1x128xf32>
    %c0_146 = arith.constant 0 : index
    %c3_147 = arith.constant 3 : index
    %c256_148 = arith.constant 256 : index
    %240 = vector.load %arg3[%c0_146, %c3_147, %c256_148] : memref<2x4x384xf32, #tpu.memory_space<vmem>>, vector<1x1x128xf32>
    %241 = vector.shape_cast %240 : vector<1x1x128xf32> to vector<1x128xf32>
    %c3_149 = arith.constant 3 : index
    %c0_150 = arith.constant 0 : index
    %c256_151 = arith.constant 256 : index
    %242 = vector.load %arg4[%c3_149, %c0_150, %c256_151] : memref<4x8x384xf32, #tpu.memory_space<vmem>>, vector<1x8x128xf32>
    %243 = vector.shape_cast %242 : vector<1x8x128xf32> to vector<8x128xf32>
    %c3_152 = arith.constant 3 : index
    %c0_153 = arith.constant 0 : index
    %c256_154 = arith.constant 256 : index
    %244 = vector.load %arg5[%c3_152, %c0_153, %c256_154] : memref<4x8x384xf32, #tpu.memory_space<vmem>>, vector<1x8x128xf32>
    %245 = vector.shape_cast %244 : vector<1x8x128xf32> to vector<8x128xf32>
    %246 = vector.broadcast %239 : vector<1x128xf32> to vector<8x128xf32>
    %247 = arith.mulf %246, %243 : vector<8x128xf32>
    %248 = vector.broadcast %241 : vector<1x128xf32> to vector<8x128xf32>
    %249 = arith.mulf %248, %245 : vector<8x128xf32>
    %250 = arith.subf %247, %249 : vector<8x128xf32>
    %251 = arith.addf %231, %250 : vector<8x128xf32>
    %252 = vector.broadcast %239 : vector<1x128xf32> to vector<8x128xf32>
    %253 = arith.mulf %252, %245 : vector<8x128xf32>
    %254 = vector.broadcast %241 : vector<1x128xf32> to vector<8x128xf32>
    %255 = arith.mulf %254, %243 : vector<8x128xf32>
    %256 = arith.addf %253, %255 : vector<8x128xf32>
    %257 = arith.addf %237, %256 : vector<8x128xf32>
    %c0_155 = arith.constant 0 : index
    %c0_156 = arith.constant 0 : index
    %c256_157 = arith.constant 256 : index
    %258 = vector.load %arg6[%c0_155, %c0_156, %c256_157] : memref<2x8x384xf32, #tpu.memory_space<vmem>>, vector<1x8x128xf32>
    %259 = vector.shape_cast %258 : vector<1x8x128xf32> to vector<8x128xf32>
    %260 = vector.shape_cast %251 : vector<8x128xf32> to vector<1x8x128xf32>
    tpu.vector_store %arg6[%c0_155, %c0_156, %c256_157], %260 {strides = array<i32>} : memref<2x8x384xf32, #tpu.memory_space<vmem>>, vector<1x8x128xf32>,
    %c0_158 = arith.constant 0 : index
    %c0_159 = arith.constant 0 : index
    %c256_160 = arith.constant 256 : index
    %261 = vector.load %arg7[%c0_158, %c0_159, %c256_160] : memref<2x8x384xf32, #tpu.memory_space<vmem>>, vector<1x8x128xf32>
    %262 = vector.shape_cast %261 : vector<1x8x128xf32> to vector<8x128xf32>
    %263 = vector.shape_cast %257 : vector<8x128xf32> to vector<1x8x128xf32>
    tpu.vector_store %arg7[%c0_158, %c0_159, %c256_160], %263 {strides = array<i32>} : memref<2x8x384xf32, #tpu.memory_space<vmem>>, vector<1x8x128xf32>,
    %cst_161 = arith.constant 0.000000e+00 : f32
    %264 = vector.broadcast %cst_161 : f32 to vector<8x128xf32>
    %cst_162 = arith.constant 0.000000e+00 : f32
    %265 = vector.broadcast %cst_162 : f32 to vector<8x128xf32>
    %c1_163 = arith.constant 1 : index
    %c0_164 = arith.constant 0 : index
    %c0_165 = arith.constant 0 : index
    %266 = vector.load %arg2[%c1_163, %c0_164, %c0_165] : memref<2x4x384xf32, #tpu.memory_space<vmem>>, vector<1x1x128xf32>
    %267 = vector.shape_cast %266 : vector<1x1x128xf32> to vector<1x128xf32>
    %c1_166 = arith.constant 1 : index
    %c0_167 = arith.constant 0 : index
    %c0_168 = arith.constant 0 : index
    %268 = vector.load %arg3[%c1_166, %c0_167, %c0_168] : memref<2x4x384xf32, #tpu.memory_space<vmem>>, vector<1x1x128xf32>
    %269 = vector.shape_cast %268 : vector<1x1x128xf32> to vector<1x128xf32>
    %c0_169 = arith.constant 0 : index
    %c0_170 = arith.constant 0 : index
    %c0_171 = arith.constant 0 : index
    %270 = vector.load %arg4[%c0_169, %c0_170, %c0_171] : memref<4x8x384xf32, #tpu.memory_space<vmem>>, vector<1x8x128xf32>
    %271 = vector.shape_cast %270 : vector<1x8x128xf32> to vector<8x128xf32>
    %c0_172 = arith.constant 0 : index
    %c0_173 = arith.constant 0 : index
    %c0_174 = arith.constant 0 : index
    %272 = vector.load %arg5[%c0_172, %c0_173, %c0_174] : memref<4x8x384xf32, #tpu.memory_space<vmem>>, vector<1x8x128xf32>
    %273 = vector.shape_cast %272 : vector<1x8x128xf32> to vector<8x128xf32>
    %274 = vector.broadcast %267 : vector<1x128xf32> to vector<8x128xf32>
    %275 = arith.mulf %274, %271 : vector<8x128xf32>
    %276 = vector.broadcast %269 : vector<1x128xf32> to vector<8x128xf32>
    %277 = arith.mulf %276, %273 : vector<8x128xf32>
    %278 = arith.subf %275, %277 : vector<8x128xf32>
    %279 = arith.addf %264, %278 : vector<8x128xf32>
    %280 = vector.broadcast %267 : vector<1x128xf32> to vector<8x128xf32>
    %281 = arith.mulf %280, %273 : vector<8x128xf32>
    %282 = vector.broadcast %269 : vector<1x128xf32> to vector<8x128xf32>
    %283 = arith.mulf %282, %271 : vector<8x128xf32>
    %284 = arith.addf %281, %283 : vector<8x128xf32>
    %285 = arith.addf %265, %284 : vector<8x128xf32>
    %c1_175 = arith.constant 1 : index
    %c1_176 = arith.constant 1 : index
    %c0_177 = arith.constant 0 : index
    %286 = vector.load %arg2[%c1_175, %c1_176, %c0_177] : memref<2x4x384xf32, #tpu.memory_space<vmem>>, vector<1x1x128xf32>
    %287 = vector.shape_cast %286 : vector<1x1x128xf32> to vector<1x128xf32>
    %c1_178 = arith.constant 1 : index
    %c1_179 = arith.constant 1 : index
    %c0_180 = arith.constant 0 : index
    %288 = vector.load %arg3[%c1_178, %c1_179, %c0_180] : memref<2x4x384xf32, #tpu.memory_space<vmem>>, vector<1x1x128xf32>
    %289 = vector.shape_cast %288 : vector<1x1x128xf32> to vector<1x128xf32>
    %c1_181 = arith.constant 1 : index
    %c0_182 = arith.constant 0 : index
    %c0_183 = arith.constant 0 : index
    %290 = vector.load %arg4[%c1_181, %c0_182, %c0_183] : memref<4x8x384xf32, #tpu.memory_space<vmem>>, vector<1x8x128xf32>
    %291 = vector.shape_cast %290 : vector<1x8x128xf32> to vector<8x128xf32>
    %c1_184 = arith.constant 1 : index
    %c0_185 = arith.constant 0 : index
    %c0_186 = arith.constant 0 : index
    %292 = vector.load %arg5[%c1_184, %c0_185, %c0_186] : memref<4x8x384xf32, #tpu.memory_space<vmem>>, vector<1x8x128xf32>
    %293 = vector.shape_cast %292 : vector<1x8x128xf32> to vector<8x128xf32>
    %294 = vector.broadcast %287 : vector<1x128xf32> to vector<8x128xf32>
    %295 = arith.mulf %294, %291 : vector<8x128xf32>
    %296 = vector.broadcast %289 : vector<1x128xf32> to vector<8x128xf32>
    %297 = arith.mulf %296, %293 : vector<8x128xf32>
    %298 = arith.subf %295, %297 : vector<8x128xf32>
    %299 = arith.addf %279, %298 : vector<8x128xf32>
    %300 = vector.broadcast %287 : vector<1x128xf32> to vector<8x128xf32>
    %301 = arith.mulf %300, %293 : vector<8x128xf32>
    %302 = vector.broadcast %289 : vector<1x128xf32> to vector<8x128xf32>
    %303 = arith.mulf %302, %291 : vector<8x128xf32>
    %304 = arith.addf %301, %303 : vector<8x128xf32>
    %305 = arith.addf %285, %304 : vector<8x128xf32>
    %c1_187 = arith.constant 1 : index
    %c2_188 = arith.constant 2 : index
    %c0_189 = arith.constant 0 : index
    %306 = vector.load %arg2[%c1_187, %c2_188, %c0_189] : memref<2x4x384xf32, #tpu.memory_space<vmem>>, vector<1x1x128xf32>
    %307 = vector.shape_cast %306 : vector<1x1x128xf32> to vector<1x128xf32>
    %c1_190 = arith.constant 1 : index
    %c2_191 = arith.constant 2 : index
    %c0_192 = arith.constant 0 : index
    %308 = vector.load %arg3[%c1_190, %c2_191, %c0_192] : memref<2x4x384xf32, #tpu.memory_space<vmem>>, vector<1x1x128xf32>
    %309 = vector.shape_cast %308 : vector<1x1x128xf32> to vector<1x128xf32>
    %c2_193 = arith.constant 2 : index
    %c0_194 = arith.constant 0 : index
    %c0_195 = arith.constant 0 : index
    %310 = vector.load %arg4[%c2_193, %c0_194, %c0_195] : memref<4x8x384xf32, #tpu.memory_space<vmem>>, vector<1x8x128xf32>
    %311 = vector.shape_cast %310 : vector<1x8x128xf32> to vector<8x128xf32>
    %c2_196 = arith.constant 2 : index
    %c0_197 = arith.constant 0 : index
    %c0_198 = arith.constant 0 : index
    %312 = vector.load %arg5[%c2_196, %c0_197, %c0_198] : memref<4x8x384xf32, #tpu.memory_space<vmem>>, vector<1x8x128xf32>
    %313 = vector.shape_cast %312 : vector<1x8x128xf32> to vector<8x128xf32>
    %314 = vector.broadcast %307 : vector<1x128xf32> to vector<8x128xf32>
    %315 = arith.mulf %314, %311 : vector<8x128xf32>
    %316 = vector.broadcast %309 : vector<1x128xf32> to vector<8x128xf32>
    %317 = arith.mulf %316, %313 : vector<8x128xf32>
    %318 = arith.subf %315, %317 : vector<8x128xf32>
    %319 = arith.addf %299, %318 : vector<8x128xf32>
    %320 = vector.broadcast %307 : vector<1x128xf32> to vector<8x128xf32>
    %321 = arith.mulf %320, %313 : vector<8x128xf32>
    %322 = vector.broadcast %309 : vector<1x128xf32> to vector<8x128xf32>
    %323 = arith.mulf %322, %311 : vector<8x128xf32>
    %324 = arith.addf %321, %323 : vector<8x128xf32>
    %325 = arith.addf %305, %324 : vector<8x128xf32>
    %c1_199 = arith.constant 1 : index
    %c3_200 = arith.constant 3 : index
    %c0_201 = arith.constant 0 : index
    %326 = vector.load %arg2[%c1_199, %c3_200, %c0_201] : memref<2x4x384xf32, #tpu.memory_space<vmem>>, vector<1x1x128xf32>
    %327 = vector.shape_cast %326 : vector<1x1x128xf32> to vector<1x128xf32>
    %c1_202 = arith.constant 1 : index
    %c3_203 = arith.constant 3 : index
    %c0_204 = arith.constant 0 : index
    %328 = vector.load %arg3[%c1_202, %c3_203, %c0_204] : memref<2x4x384xf32, #tpu.memory_space<vmem>>, vector<1x1x128xf32>
    %329 = vector.shape_cast %328 : vector<1x1x128xf32> to vector<1x128xf32>
    %c3_205 = arith.constant 3 : index
    %c0_206 = arith.constant 0 : index
    %c0_207 = arith.constant 0 : index
    %330 = vector.load %arg4[%c3_205, %c0_206, %c0_207] : memref<4x8x384xf32, #tpu.memory_space<vmem>>, vector<1x8x128xf32>
    %331 = vector.shape_cast %330 : vector<1x8x128xf32> to vector<8x128xf32>
    %c3_208 = arith.constant 3 : index
    %c0_209 = arith.constant 0 : index
    %c0_210 = arith.constant 0 : index
    %332 = vector.load %arg5[%c3_208, %c0_209, %c0_210] : memref<4x8x384xf32, #tpu.memory_space<vmem>>, vector<1x8x128xf32>
    %333 = vector.shape_cast %332 : vector<1x8x128xf32> to vector<8x128xf32>
    %334 = vector.broadcast %327 : vector<1x128xf32> to vector<8x128xf32>
    %335 = arith.mulf %334, %331 : vector<8x128xf32>
    %336 = vector.broadcast %329 : vector<1x128xf32> to vector<8x128xf32>
    %337 = arith.mulf %336, %333 : vector<8x128xf32>
    %338 = arith.subf %335, %337 : vector<8x128xf32>
    %339 = arith.addf %319, %338 : vector<8x128xf32>
    %340 = vector.broadcast %327 : vector<1x128xf32> to vector<8x128xf32>
    %341 = arith.mulf %340, %333 : vector<8x128xf32>
    %342 = vector.broadcast %329 : vector<1x128xf32> to vector<8x128xf32>
    %343 = arith.mulf %342, %331 : vector<8x128xf32>
    %344 = arith.addf %341, %343 : vector<8x128xf32>
    %345 = arith.addf %325, %344 : vector<8x128xf32>
    %c1_211 = arith.constant 1 : index
    %c0_212 = arith.constant 0 : index
    %c0_213 = arith.constant 0 : index
    %346 = vector.load %arg6[%c1_211, %c0_212, %c0_213] : memref<2x8x384xf32, #tpu.memory_space<vmem>>, vector<1x8x128xf32>
    %347 = vector.shape_cast %346 : vector<1x8x128xf32> to vector<8x128xf32>
    %348 = vector.shape_cast %339 : vector<8x128xf32> to vector<1x8x128xf32>
    tpu.vector_store %arg6[%c1_211, %c0_212, %c0_213], %348 {strides = array<i32>} : memref<2x8x384xf32, #tpu.memory_space<vmem>>, vector<1x8x128xf32>,
    %c1_214 = arith.constant 1 : index
    %c0_215 = arith.constant 0 : index
    %c0_216 = arith.constant 0 : index
    %349 = vector.load %arg7[%c1_214, %c0_215, %c0_216] : memref<2x8x384xf32, #tpu.memory_space<vmem>>, vector<1x8x128xf32>
    %350 = vector.shape_cast %349 : vector<1x8x128xf32> to vector<8x128xf32>
    %351 = vector.shape_cast %345 : vector<8x128xf32> to vector<1x8x128xf32>
    tpu.vector_store %arg7[%c1_214, %c0_215, %c0_216], %351 {strides = array<i32>} : memref<2x8x384xf32, #tpu.memory_space<vmem>>, vector<1x8x128xf32>,
    %cst_217 = arith.constant 0.000000e+00 : f32
    %352 = vector.broadcast %cst_217 : f32 to vector<8x128xf32>
    %cst_218 = arith.constant 0.000000e+00 : f32
    %353 = vector.broadcast %cst_218 : f32 to vector<8x128xf32>
    %c1_219 = arith.constant 1 : index
    %c0_220 = arith.constant 0 : index
    %c128_221 = arith.constant 128 : index
    %354 = vector.load %arg2[%c1_219, %c0_220, %c128_221] : memref<2x4x384xf32, #tpu.memory_space<vmem>>, vector<1x1x128xf32>
    %355 = vector.shape_cast %354 : vector<1x1x128xf32> to vector<1x128xf32>
    %c1_222 = arith.constant 1 : index
    %c0_223 = arith.constant 0 : index
    %c128_224 = arith.constant 128 : index
    %356 = vector.load %arg3[%c1_222, %c0_223, %c128_224] : memref<2x4x384xf32, #tpu.memory_space<vmem>>, vector<1x1x128xf32>
    %357 = vector.shape_cast %356 : vector<1x1x128xf32> to vector<1x128xf32>
    %c0_225 = arith.constant 0 : index
    %c0_226 = arith.constant 0 : index
    %c128_227 = arith.constant 128 : index
    %358 = vector.load %arg4[%c0_225, %c0_226, %c128_227] : memref<4x8x384xf32, #tpu.memory_space<vmem>>, vector<1x8x128xf32>
    %359 = vector.shape_cast %358 : vector<1x8x128xf32> to vector<8x128xf32>
    %c0_228 = arith.constant 0 : index
    %c0_229 = arith.constant 0 : index
    %c128_230 = arith.constant 128 : index
    %360 = vector.load %arg5[%c0_228, %c0_229, %c128_230] : memref<4x8x384xf32, #tpu.memory_space<vmem>>, vector<1x8x128xf32>
    %361 = vector.shape_cast %360 : vector<1x8x128xf32> to vector<8x128xf32>
    %362 = vector.broadcast %355 : vector<1x128xf32> to vector<8x128xf32>
    %363 = arith.mulf %362, %359 : vector<8x128xf32>
    %364 = vector.broadcast %357 : vector<1x128xf32> to vector<8x128xf32>
    %365 = arith.mulf %364, %361 : vector<8x128xf32>
    %366 = arith.subf %363, %365 : vector<8x128xf32>
    %367 = arith.addf %352, %366 : vector<8x128xf32>
    %368 = vector.broadcast %355 : vector<1x128xf32> to vector<8x128xf32>
    %369 = arith.mulf %368, %361 : vector<8x128xf32>
    %370 = vector.broadcast %357 : vector<1x128xf32> to vector<8x128xf32>
    %371 = arith.mulf %370, %359 : vector<8x128xf32>
    %372 = arith.addf %369, %371 : vector<8x128xf32>
    %373 = arith.addf %353, %372 : vector<8x128xf32>
    %c1_231 = arith.constant 1 : index
    %c1_232 = arith.constant 1 : index
    %c128_233 = arith.constant 128 : index
    %374 = vector.load %arg2[%c1_231, %c1_232, %c128_233] : memref<2x4x384xf32, #tpu.memory_space<vmem>>, vector<1x1x128xf32>
    %375 = vector.shape_cast %374 : vector<1x1x128xf32> to vector<1x128xf32>
    %c1_234 = arith.constant 1 : index
    %c1_235 = arith.constant 1 : index
    %c128_236 = arith.constant 128 : index
    %376 = vector.load %arg3[%c1_234, %c1_235, %c128_236] : memref<2x4x384xf32, #tpu.memory_space<vmem>>, vector<1x1x128xf32>
    %377 = vector.shape_cast %376 : vector<1x1x128xf32> to vector<1x128xf32>
    %c1_237 = arith.constant 1 : index
    %c0_238 = arith.constant 0 : index
    %c128_239 = arith.constant 128 : index
    %378 = vector.load %arg4[%c1_237, %c0_238, %c128_239] : memref<4x8x384xf32, #tpu.memory_space<vmem>>, vector<1x8x128xf32>
    %379 = vector.shape_cast %378 : vector<1x8x128xf32> to vector<8x128xf32>
    %c1_240 = arith.constant 1 : index
    %c0_241 = arith.constant 0 : index
    %c128_242 = arith.constant 128 : index
    %380 = vector.load %arg5[%c1_240, %c0_241, %c128_242] : memref<4x8x384xf32, #tpu.memory_space<vmem>>, vector<1x8x128xf32>
    %381 = vector.shape_cast %380 : vector<1x8x128xf32> to vector<8x128xf32>
    %382 = vector.broadcast %375 : vector<1x128xf32> to vector<8x128xf32>
    %383 = arith.mulf %382, %379 : vector<8x128xf32>
    %384 = vector.broadcast %377 : vector<1x128xf32> to vector<8x128xf32>
    %385 = arith.mulf %384, %381 : vector<8x128xf32>
    %386 = arith.subf %383, %385 : vector<8x128xf32>
    %387 = arith.addf %367, %386 : vector<8x128xf32>
    %388 = vector.broadcast %375 : vector<1x128xf32> to vector<8x128xf32>
    %389 = arith.mulf %388, %381 : vector<8x128xf32>
    %390 = vector.broadcast %377 : vector<1x128xf32> to vector<8x128xf32>
    %391 = arith.mulf %390, %379 : vector<8x128xf32>
    %392 = arith.addf %389, %391 : vector<8x128xf32>
    %393 = arith.addf %373, %392 : vector<8x128xf32>
    %c1_243 = arith.constant 1 : index
    %c2_244 = arith.constant 2 : index
    %c128_245 = arith.constant 128 : index
    %394 = vector.load %arg2[%c1_243, %c2_244, %c128_245] : memref<2x4x384xf32, #tpu.memory_space<vmem>>, vector<1x1x128xf32>
    %395 = vector.shape_cast %394 : vector<1x1x128xf32> to vector<1x128xf32>
    %c1_246 = arith.constant 1 : index
    %c2_247 = arith.constant 2 : index
    %c128_248 = arith.constant 128 : index
    %396 = vector.load %arg3[%c1_246, %c2_247, %c128_248] : memref<2x4x384xf32, #tpu.memory_space<vmem>>, vector<1x1x128xf32>
    %397 = vector.shape_cast %396 : vector<1x1x128xf32> to vector<1x128xf32>
    %c2_249 = arith.constant 2 : index
    %c0_250 = arith.constant 0 : index
    %c128_251 = arith.constant 128 : index
    %398 = vector.load %arg4[%c2_249, %c0_250, %c128_251] : memref<4x8x384xf32, #tpu.memory_space<vmem>>, vector<1x8x128xf32>
    %399 = vector.shape_cast %398 : vector<1x8x128xf32> to vector<8x128xf32>
    %c2_252 = arith.constant 2 : index
    %c0_253 = arith.constant 0 : index
    %c128_254 = arith.constant 128 : index
    %400 = vector.load %arg5[%c2_252, %c0_253, %c128_254] : memref<4x8x384xf32, #tpu.memory_space<vmem>>, vector<1x8x128xf32>
    %401 = vector.shape_cast %400 : vector<1x8x128xf32> to vector<8x128xf32>
    %402 = vector.broadcast %395 : vector<1x128xf32> to vector<8x128xf32>
    %403 = arith.mulf %402, %399 : vector<8x128xf32>
    %404 = vector.broadcast %397 : vector<1x128xf32> to vector<8x128xf32>
    %405 = arith.mulf %404, %401 : vector<8x128xf32>
    %406 = arith.subf %403, %405 : vector<8x128xf32>
    %407 = arith.addf %387, %406 : vector<8x128xf32>
    %408 = vector.broadcast %395 : vector<1x128xf32> to vector<8x128xf32>
    %409 = arith.mulf %408, %401 : vector<8x128xf32>
    %410 = vector.broadcast %397 : vector<1x128xf32> to vector<8x128xf32>
    %411 = arith.mulf %410, %399 : vector<8x128xf32>
    %412 = arith.addf %409, %411 : vector<8x128xf32>
    %413 = arith.addf %393, %412 : vector<8x128xf32>
    %c1_255 = arith.constant 1 : index
    %c3_256 = arith.constant 3 : index
    %c128_257 = arith.constant 128 : index
    %414 = vector.load %arg2[%c1_255, %c3_256, %c128_257] : memref<2x4x384xf32, #tpu.memory_space<vmem>>, vector<1x1x128xf32>
    %415 = vector.shape_cast %414 : vector<1x1x128xf32> to vector<1x128xf32>
    %c1_258 = arith.constant 1 : index
    %c3_259 = arith.constant 3 : index
    %c128_260 = arith.constant 128 : index
    %416 = vector.load %arg3[%c1_258, %c3_259, %c128_260] : memref<2x4x384xf32, #tpu.memory_space<vmem>>, vector<1x1x128xf32>
    %417 = vector.shape_cast %416 : vector<1x1x128xf32> to vector<1x128xf32>
    %c3_261 = arith.constant 3 : index
    %c0_262 = arith.constant 0 : index
    %c128_263 = arith.constant 128 : index
    %418 = vector.load %arg4[%c3_261, %c0_262, %c128_263] : memref<4x8x384xf32, #tpu.memory_space<vmem>>, vector<1x8x128xf32>
    %419 = vector.shape_cast %418 : vector<1x8x128xf32> to vector<8x128xf32>
    %c3_264 = arith.constant 3 : index
    %c0_265 = arith.constant 0 : index
    %c128_266 = arith.constant 128 : index
    %420 = vector.load %arg5[%c3_264, %c0_265, %c128_266] : memref<4x8x384xf32, #tpu.memory_space<vmem>>, vector<1x8x128xf32>
    %421 = vector.shape_cast %420 : vector<1x8x128xf32> to vector<8x128xf32>
    %422 = vector.broadcast %415 : vector<1x128xf32> to vector<8x128xf32>
    %423 = arith.mulf %422, %419 : vector<8x128xf32>
    %424 = vector.broadcast %417 : vector<1x128xf32> to vector<8x128xf32>
    %425 = arith.mulf %424, %421 : vector<8x128xf32>
    %426 = arith.subf %423, %425 : vector<8x128xf32>
    %427 = arith.addf %407, %426 : vector<8x128xf32>
    %428 = vector.broadcast %415 : vector<1x128xf32> to vector<8x128xf32>
    %429 = arith.mulf %428, %421 : vector<8x128xf32>
    %430 = vector.broadcast %417 : vector<1x128xf32> to vector<8x128xf32>
    %431 = arith.mulf %430, %419 : vector<8x128xf32>
    %432 = arith.addf %429, %431 : vector<8x128xf32>
    %433 = arith.addf %413, %432 : vector<8x128xf32>
    %c1_267 = arith.constant 1 : index
    %c0_268 = arith.constant 0 : index
    %c128_269 = arith.constant 128 : index
    %434 = vector.load %arg6[%c1_267, %c0_268, %c128_269] : memref<2x8x384xf32, #tpu.memory_space<vmem>>, vector<1x8x128xf32>
    %435 = vector.shape_cast %434 : vector<1x8x128xf32> to vector<8x128xf32>
    %436 = vector.shape_cast %427 : vector<8x128xf32> to vector<1x8x128xf32>
    tpu.vector_store %arg6[%c1_267, %c0_268, %c128_269], %436 {strides = array<i32>} : memref<2x8x384xf32, #tpu.memory_space<vmem>>, vector<1x8x128xf32>,
    %c1_270 = arith.constant 1 : index
    %c0_271 = arith.constant 0 : index
    %c128_272 = arith.constant 128 : index
    %437 = vector.load %arg7[%c1_270, %c0_271, %c128_272] : memref<2x8x384xf32, #tpu.memory_space<vmem>>, vector<1x8x128xf32>
    %438 = vector.shape_cast %437 : vector<1x8x128xf32> to vector<8x128xf32>
    %439 = vector.shape_cast %433 : vector<8x128xf32> to vector<1x8x128xf32>
    tpu.vector_store %arg7[%c1_270, %c0_271, %c128_272], %439 {strides = array<i32>} : memref<2x8x384xf32, #tpu.memory_space<vmem>>, vector<1x8x128xf32>,
    %cst_273 = arith.constant 0.000000e+00 : f32
    %440 = vector.broadcast %cst_273 : f32 to vector<8x128xf32>
    %cst_274 = arith.constant 0.000000e+00 : f32
    %441 = vector.broadcast %cst_274 : f32 to vector<8x128xf32>
    %c1_275 = arith.constant 1 : index
    %c0_276 = arith.constant 0 : index
    %c256_277 = arith.constant 256 : index
    %442 = vector.load %arg2[%c1_275, %c0_276, %c256_277] : memref<2x4x384xf32, #tpu.memory_space<vmem>>, vector<1x1x128xf32>
    %443 = vector.shape_cast %442 : vector<1x1x128xf32> to vector<1x128xf32>
    %c1_278 = arith.constant 1 : index
    %c0_279 = arith.constant 0 : index
    %c256_280 = arith.constant 256 : index
    %444 = vector.load %arg3[%c1_278, %c0_279, %c256_280] : memref<2x4x384xf32, #tpu.memory_space<vmem>>, vector<1x1x128xf32>
    %445 = vector.shape_cast %444 : vector<1x1x128xf32> to vector<1x128xf32>
    %c0_281 = arith.constant 0 : index
    %c0_282 = arith.constant 0 : index
    %c256_283 = arith.constant 256 : index
    %446 = vector.load %arg4[%c0_281, %c0_282, %c256_283] : memref<4x8x384xf32, #tpu.memory_space<vmem>>, vector<1x8x128xf32>
    %447 = vector.shape_cast %446 : vector<1x8x128xf32> to vector<8x128xf32>
    %c0_284 = arith.constant 0 : index
    %c0_285 = arith.constant 0 : index
    %c256_286 = arith.constant 256 : index
    %448 = vector.load %arg5[%c0_284, %c0_285, %c256_286] : memref<4x8x384xf32, #tpu.memory_space<vmem>>, vector<1x8x128xf32>
    %449 = vector.shape_cast %448 : vector<1x8x128xf32> to vector<8x128xf32>
    %450 = vector.broadcast %443 : vector<1x128xf32> to vector<8x128xf32>
    %451 = arith.mulf %450, %447 : vector<8x128xf32>
    %452 = vector.broadcast %445 : vector<1x128xf32> to vector<8x128xf32>
    %453 = arith.mulf %452, %449 : vector<8x128xf32>
    %454 = arith.subf %451, %453 : vector<8x128xf32>
    %455 = arith.addf %440, %454 : vector<8x128xf32>
    %456 = vector.broadcast %443 : vector<1x128xf32> to vector<8x128xf32>
    %457 = arith.mulf %456, %449 : vector<8x128xf32>
    %458 = vector.broadcast %445 : vector<1x128xf32> to vector<8x128xf32>
    %459 = arith.mulf %458, %447 : vector<8x128xf32>
    %460 = arith.addf %457, %459 : vector<8x128xf32>
    %461 = arith.addf %441, %460 : vector<8x128xf32>
    %c1_287 = arith.constant 1 : index
    %c1_288 = arith.constant 1 : index
    %c256_289 = arith.constant 256 : index
    %462 = vector.load %arg2[%c1_287, %c1_288, %c256_289] : memref<2x4x384xf32, #tpu.memory_space<vmem>>, vector<1x1x128xf32>
    %463 = vector.shape_cast %462 : vector<1x1x128xf32> to vector<1x128xf32>
    %c1_290 = arith.constant 1 : index
    %c1_291 = arith.constant 1 : index
    %c256_292 = arith.constant 256 : index
    %464 = vector.load %arg3[%c1_290, %c1_291, %c256_292] : memref<2x4x384xf32, #tpu.memory_space<vmem>>, vector<1x1x128xf32>
    %465 = vector.shape_cast %464 : vector<1x1x128xf32> to vector<1x128xf32>
    %c1_293 = arith.constant 1 : index
    %c0_294 = arith.constant 0 : index
    %c256_295 = arith.constant 256 : index
    %466 = vector.load %arg4[%c1_293, %c0_294, %c256_295] : memref<4x8x384xf32, #tpu.memory_space<vmem>>, vector<1x8x128xf32>
    %467 = vector.shape_cast %466 : vector<1x8x128xf32> to vector<8x128xf32>
    %c1_296 = arith.constant 1 : index
    %c0_297 = arith.constant 0 : index
    %c256_298 = arith.constant 256 : index
    %468 = vector.load %arg5[%c1_296, %c0_297, %c256_298] : memref<4x8x384xf32, #tpu.memory_space<vmem>>, vector<1x8x128xf32>
    %469 = vector.shape_cast %468 : vector<1x8x128xf32> to vector<8x128xf32>
    %470 = vector.broadcast %463 : vector<1x128xf32> to vector<8x128xf32>
    %471 = arith.mulf %470, %467 : vector<8x128xf32>
    %472 = vector.broadcast %465 : vector<1x128xf32> to vector<8x128xf32>
    %473 = arith.mulf %472, %469 : vector<8x128xf32>
    %474 = arith.subf %471, %473 : vector<8x128xf32>
    %475 = arith.addf %455, %474 : vector<8x128xf32>
    %476 = vector.broadcast %463 : vector<1x128xf32> to vector<8x128xf32>
    %477 = arith.mulf %476, %469 : vector<8x128xf32>
    %478 = vector.broadcast %465 : vector<1x128xf32> to vector<8x128xf32>
    %479 = arith.mulf %478, %467 : vector<8x128xf32>
    %480 = arith.addf %477, %479 : vector<8x128xf32>
    %481 = arith.addf %461, %480 : vector<8x128xf32>
    %c1_299 = arith.constant 1 : index
    %c2_300 = arith.constant 2 : index
    %c256_301 = arith.constant 256 : index
    %482 = vector.load %arg2[%c1_299, %c2_300, %c256_301] : memref<2x4x384xf32, #tpu.memory_space<vmem>>, vector<1x1x128xf32>
    %483 = vector.shape_cast %482 : vector<1x1x128xf32> to vector<1x128xf32>
    %c1_302 = arith.constant 1 : index
    %c2_303 = arith.constant 2 : index
    %c256_304 = arith.constant 256 : index
    %484 = vector.load %arg3[%c1_302, %c2_303, %c256_304] : memref<2x4x384xf32, #tpu.memory_space<vmem>>, vector<1x1x128xf32>
    %485 = vector.shape_cast %484 : vector<1x1x128xf32> to vector<1x128xf32>
    %c2_305 = arith.constant 2 : index
    %c0_306 = arith.constant 0 : index
    %c256_307 = arith.constant 256 : index
    %486 = vector.load %arg4[%c2_305, %c0_306, %c256_307] : memref<4x8x384xf32, #tpu.memory_space<vmem>>, vector<1x8x128xf32>
    %487 = vector.shape_cast %486 : vector<1x8x128xf32> to vector<8x128xf32>
    %c2_308 = arith.constant 2 : index
    %c0_309 = arith.constant 0 : index
    %c256_310 = arith.constant 256 : index
    %488 = vector.load %arg5[%c2_308, %c0_309, %c256_310] : memref<4x8x384xf32, #tpu.memory_space<vmem>>, vector<1x8x128xf32>
    %489 = vector.shape_cast %488 : vector<1x8x128xf32> to vector<8x128xf32>
    %490 = vector.broadcast %483 : vector<1x128xf32> to vector<8x128xf32>
    %491 = arith.mulf %490, %487 : vector<8x128xf32>
    %492 = vector.broadcast %485 : vector<1x128xf32> to vector<8x128xf32>
    %493 = arith.mulf %492, %489 : vector<8x128xf32>
    %494 = arith.subf %491, %493 : vector<8x128xf32>
    %495 = arith.addf %475, %494 : vector<8x128xf32>
    %496 = vector.broadcast %483 : vector<1x128xf32> to vector<8x128xf32>
    %497 = arith.mulf %496, %489 : vector<8x128xf32>
    %498 = vector.broadcast %485 : vector<1x128xf32> to vector<8x128xf32>
    %499 = arith.mulf %498, %487 : vector<8x128xf32>
    %500 = arith.addf %497, %499 : vector<8x128xf32>
    %501 = arith.addf %481, %500 : vector<8x128xf32>
    %c1_311 = arith.constant 1 : index
    %c3_312 = arith.constant 3 : index
    %c256_313 = arith.constant 256 : index
    %502 = vector.load %arg2[%c1_311, %c3_312, %c256_313] : memref<2x4x384xf32, #tpu.memory_space<vmem>>, vector<1x1x128xf32>
    %503 = vector.shape_cast %502 : vector<1x1x128xf32> to vector<1x128xf32>
    %c1_314 = arith.constant 1 : index
    %c3_315 = arith.constant 3 : index
    %c256_316 = arith.constant 256 : index
    %504 = vector.load %arg3[%c1_314, %c3_315, %c256_316] : memref<2x4x384xf32, #tpu.memory_space<vmem>>, vector<1x1x128xf32>
    %505 = vector.shape_cast %504 : vector<1x1x128xf32> to vector<1x128xf32>
    %c3_317 = arith.constant 3 : index
    %c0_318 = arith.constant 0 : index
    %c256_319 = arith.constant 256 : index
    %506 = vector.load %arg4[%c3_317, %c0_318, %c256_319] : memref<4x8x384xf32, #tpu.memory_space<vmem>>, vector<1x8x128xf32>
    %507 = vector.shape_cast %506 : vector<1x8x128xf32> to vector<8x128xf32>
    %c3_320 = arith.constant 3 : index
    %c0_321 = arith.constant 0 : index
    %c256_322 = arith.constant 256 : index
    %508 = vector.load %arg5[%c3_320, %c0_321, %c256_322] : memref<4x8x384xf32, #tpu.memory_space<vmem>>, vector<1x8x128xf32>
    %509 = vector.shape_cast %508 : vector<1x8x128xf32> to vector<8x128xf32>
    %510 = vector.broadcast %503 : vector<1x128xf32> to vector<8x128xf32>
    %511 = arith.mulf %510, %507 : vector<8x128xf32>
    %512 = vector.broadcast %505 : vector<1x128xf32> to vector<8x128xf32>
    %513 = arith.mulf %512, %509 : vector<8x128xf32>
    %514 = arith.subf %511, %513 : vector<8x128xf32>
    %515 = arith.addf %495, %514 : vector<8x128xf32>
    %516 = vector.broadcast %503 : vector<1x128xf32> to vector<8x128xf32>
    %517 = arith.mulf %516, %509 : vector<8x128xf32>
    %518 = vector.broadcast %505 : vector<1x128xf32> to vector<8x128xf32>
    %519 = arith.mulf %518, %507 : vector<8x128xf32>
    %520 = arith.addf %517, %519 : vector<8x128xf32>
    %521 = arith.addf %501, %520 : vector<8x128xf32>
    %c1_323 = arith.constant 1 : index
    %c0_324 = arith.constant 0 : index
    %c256_325 = arith.constant 256 : index
    %522 = vector.load %arg6[%c1_323, %c0_324, %c256_325] : memref<2x8x384xf32, #tpu.memory_space<vmem>>, vector<1x8x128xf32>
    %523 = vector.shape_cast %522 : vector<1x8x128xf32> to vector<8x128xf32>
    %524 = vector.shape_cast %515 : vector<8x128xf32> to vector<1x8x128xf32>
    tpu.vector_store %arg6[%c1_323, %c0_324, %c256_325], %524 {strides = array<i32>} : memref<2x8x384xf32, #tpu.memory_space<vmem>>, vector<1x8x128xf32>,
    %c1_326 = arith.constant 1 : index
    %c0_327 = arith.constant 0 : index
    %c256_328 = arith.constant 256 : index
    %525 = vector.load %arg7[%c1_326, %c0_327, %c256_328] : memref<2x8x384xf32, #tpu.memory_space<vmem>>, vector<1x8x128xf32>
    %526 = vector.shape_cast %525 : vector<1x8x128xf32> to vector<8x128xf32>
    %527 = vector.shape_cast %521 : vector<8x128xf32> to vector<1x8x128xf32>
    tpu.vector_store %arg7[%c1_326, %c0_327, %c256_328], %527 {strides = array<i32>} : memref<2x8x384xf32, #tpu.memory_space<vmem>>, vector<1x8x128xf32>,
    return
  }
  func.func @transform_0(%arg0: i32, %arg1: i32) -> (i32, i32, i32) {
    %c0_i32 = arith.constant 0 : i32
    %c0_i32_0 = arith.constant 0 : i32
    return %arg1, %c0_i32, %arg0 : i32, i32, i32
  }
  func.func @transform_1(%arg0: i32, %arg1: i32) -> (i32, i32, i32) {
    %c0_i32 = arith.constant 0 : i32
    %c0_i32_0 = arith.constant 0 : i32
    return %arg1, %c0_i32, %arg0 : i32, i32, i32
  }
  func.func @transform_2(%arg0: i32, %arg1: i32) -> (i32, i32, i32) {
    %c0_i32 = arith.constant 0 : i32
    %c0_i32_0 = arith.constant 0 : i32
    %c0_i32_1 = arith.constant 0 : i32
    return %c0_i32, %c0_i32_0, %arg0 : i32, i32, i32
  }
  func.func @transform_3(%arg0: i32, %arg1: i32) -> (i32, i32, i32) {
    %c0_i32 = arith.constant 0 : i32
    %c0_i32_0 = arith.constant 0 : i32
    %c0_i32_1 = arith.constant 0 : i32
    return %c0_i32, %c0_i32_0, %arg0 : i32, i32, i32
  }
  func.func @transform_4(%arg0: i32, %arg1: i32) -> (i32, i32, i32) {
    %c0_i32 = arith.constant 0 : i32
    %c0_i32_0 = arith.constant 0 : i32
    return %arg1, %c0_i32, %arg0 : i32, i32, i32
  }
  func.func @transform_5(%arg0: i32, %arg1: i32) -> (i32, i32, i32) {
    %c0_i32 = arith.constant 0 : i32
    %c0_i32_0 = arith.constant 0 : i32
    return %arg1, %c0_i32, %arg0 : i32, i32, i32
  }
}

</mosaic_0001>

<llo_original>
// kernel: spectral_conv4d_forward.1
$region0: #{spectral_conv4d_forward.1}
  #allocation0 [shape = 'u32[]', space=smem, size = 0x4, offset = 0x4, fixed_abs, tag = 'smem constant byte address 0x4 - core index']
  #allocation1 [shape = 'u32[72,128]{1,0:T(1,128)}', space=vmem, size = 0x9000, scoped, tag = 'internal scratch']
  %s0 = inlined_call_operand.vmem [shape: f32[2,4,768], index: 0, kind: input, shape index: {}]
  %s1 = inlined_call_operand.vmem [shape: f32[2,4,768], index: 1, kind: input, shape index: {}]
  %s2 = inlined_call_operand.vmem [shape: f32[4,8,768], index: 2, kind: input, shape index: {}]
  %s3 = inlined_call_operand.vmem [shape: f32[4,8,768], index: 3, kind: input, shape index: {}]
  %s4 = inlined_call_operand.vmem [shape: f32[2,8,768], index: 4, kind: output, shape index: {0}]
  %s5 = inlined_call_operand.vmem [shape: f32[2,8,768], index: 5, kind: output, shape index: {1}]
  %6 = xla_tuple %s4, %s5
  %s7 = sld [smem:[#allocation0]]
  $region193: #{spectral_conv4d_forward.1} parent=0
    _
  %s9 = ssub.s32 1, %s7
  %s10 = scalar_select 0, %s9, %s7
  $region1: #{spectral_conv4d_forward.1} parent=0
    #allocation2 [shape = 'u8[24576]{0}', space=vmem, size = 0x6000, scoped, tag = 'input window, operand 0']
    #allocation3 [shape = 'u8[24576]{0}', space=vmem, size = 0x6000, scoped, tag = 'input window, operand 1']
    #allocation4 [shape = 'u8[98304]{0}', space=vmem, size = 0x18000, scoped, tag = 'input window, operand 2']
    #allocation5 [shape = 'u8[98304]{0}', space=vmem, size = 0x18000, scoped, tag = 'input window, operand 3']
    #allocation6 [shape = 'u8[49152]{0}', space=vmem, size = 0xc000, scoped, tag = 'output window, operand 0']
    #allocation7 [shape = 'u8[49152]{0}', space=vmem, size = 0xc000, scoped, tag = 'output window, operand 1']
    loop: start=0, step=1, limit=4
    $region2: #{spectral_conv4d_forward.1} parent=1 // loop_pre_header
      _
    $region3: #{spectral_conv4d_forward.1} parent=1 // loop_header
      %s12 = sphi 0, %s16
      %p13 = scmp.ge.s32.totalorder %s12, 4
      %s19 = sphi 0, %s31
      %s20 = sphi 0, %s27
      %s21 = sphi 0, %s19
      %s22 = sphi 0, %s20
      %s23 = sphi 0, %s21
      %s24 = sphi 0, %s22
      %s36 = sphi 0, %s38
      %s39 = sphi 0, %s36
      %s40 = sphi 0, %s39
      %s56 = sphi 0, %s40
      %s64 = sphi 0, %s66
      %s67 = sphi 0, %s64
      %s68 = sphi 0, %s67
      %s84 = sphi 0, %s68
      %s90 = sphi 0, %s92
      %s93 = sphi 0, %s90
      %s94 = sphi 0, %s93
      %s110 = sphi 0, %s94
      %s116 = sphi 0, %s118
      %s119 = sphi 0, %s116
      %s120 = sphi 0, %s119
      %s136 = sphi 0, %s120
      %s144 = sphi 0, %s146
      %s147 = sphi 0, %s144
      %s148 = sphi 0, %s147
      %s164 = sphi 0, %s148
      %s172 = sphi 0, %s174
      %s175 = sphi 0, %s172
      %s176 = sphi 0, %s175
      %s192 = sphi 0, %s176
    $region4: #{spectral_conv4d_forward.1} parent=1 // loop_header_branch
      %15 = sbr.rel (%p13) target = $region8
    $region5: #{spectral_conv4d_forward.1} parent=1 // loop_body
      %s17 = ssub.s32 %s12, 1
      %s18 = ssub.s32 %s12, 2
      %s25 = sadd.s32 1, %s20
      %p26 = scmp.ge.s32.totalorder %s25, 1
      %s27 = scalar_select %p26, 0, %s25
      %s28 = sadd.s32 1, %s19
      %s29 = scalar_select %p26, %s28, %s19
      %p30 = scmp.ge.s32.totalorder %s29, 2
      %s31 = scalar_select %p30, 0, %s29
      %s32 = ssub.s32 %s20, %s27
      %s33 = ssub.s32 %s19, %s31
      %s34 = sor.u32 %s32, %s33
      %p35 = scmp.eq.s32.totalorder %s34, 0
      %s37 = sadd.s32 %s36, 1
      %s38 = scalar_select %p35, %s36, %s37
      %p41 = pneg %p35
      %p42 = scmp.eq.s32.totalorder %s12, 1
      %p43 = por %p41, %p42
      %p44 = scmp.ne.s32.totalorder %s36, %s39
      %p45 = scmp.eq.s32.totalorder %s12, 0
      %p46 = por %p44, %p45
      %p47 = scmp.ne.s32.totalorder %s36, %s39
      %p48 = scmp.eq.s32.totalorder %s17, 1
      %p49 = por %p47, %p48
      %p50 = scmp.ne.s32.totalorder %s39, %s40
      %p51 = scmp.eq.s32.totalorder %s17, 0
      %p52 = por %p50, %p51
      %p53 = scmp.ne.s32.totalorder %s39, %s40
      %p54 = scmp.eq.s32.totalorder %s18, 1
      %p55 = por %p53, %p54
      %p57 = scmp.ne.s32.totalorder %s40, %s56
      %p58 = scmp.eq.s32.totalorder %s18, 0
      %p59 = por %p57, %p58
      %s60 = ssub.s32 %s20, %s27
      %s61 = ssub.s32 %s19, %s31
      %s62 = sor.u32 %s60, %s61
      %p63 = scmp.eq.s32.totalorder %s62, 0
      %s65 = sadd.s32 %s64, 1
      %s66 = scalar_select %p63, %s64, %s65
      %p69 = pneg %p63
      %p70 = scmp.eq.s32.totalorder %s12, 1
      %p71 = por %p69, %p70
      %p72 = scmp.ne.s32.totalorder %s64, %s67
      %p73 = scmp.eq.s32.totalorder %s12, 0
      %p74 = por %p72, %p73
      %p75 = scmp.ne.s32.totalorder %s64, %s67
      %p76 = scmp.eq.s32.totalorder %s17, 1
      %p77 = por %p75, %p76
      %p78 = scmp.ne.s32.totalorder %s67, %s68
      %p79 = scmp.eq.s32.totalorder %s17, 0
      %p80 = por %p78, %p79
      %p81 = scmp.ne.s32.totalorder %s67, %s68
      %p82 = scmp.eq.s32.totalorder %s18, 1
      %p83 = por %p81, %p82
      %p85 = scmp.ne.s32.totalorder %s68, %s84
      %p86 = scmp.eq.s32.totalorder %s18, 0
      %p87 = por %p85, %p86
      %s88 = ssub.s32 %s19, %s31
      %p89 = scmp.eq.s32.totalorder %s88, 0
      %s91 = sadd.s32 %s90, 1
      %s92 = scalar_select %p89, %s90, %s91
      %p95 = pneg %p89
      %p96 = scmp.eq.s32.totalorder %s12, 1
      %p97 = por %p95, %p96
      %p98 = scmp.ne.s32.totalorder %s90, %s93
      %p99 = scmp.eq.s32.totalorder %s12, 0
      %p100 = por %p98, %p99
      %p101 = scmp.ne.s32.totalorder %s90, %s93
      %p102 = scmp.eq.s32.totalorder %s17, 1
      %p103 = por %p101, %p102
      %p104 = scmp.ne.s32.totalorder %s93, %s94
      %p105 = scmp.eq.s32.totalorder %s17, 0
      %p106 = por %p104, %p105
      %p107 = scmp.ne.s32.totalorder %s93, %s94
      %p108 = scmp.eq.s32.totalorder %s18, 1
      %p109 = por %p107, %p108
      %p111 = scmp.ne.s32.totalorder %s94, %s110
      %p112 = scmp.eq.s32.totalorder %s18, 0
      %p113 = por %p111, %p112
      %s114 = ssub.s32 %s19, %s31
      %p115 = scmp.eq.s32.totalorder %s114, 0
      %s117 = sadd.s32 %s116, 1
      %s118 = scalar_select %p115, %s116, %s117
      %p121 = pneg %p115
      %p122 = scmp.eq.s32.totalorder %s12, 1
      %p123 = por %p121, %p122
      %p124 = scmp.ne.s32.totalorder %s116, %s119
      %p125 = scmp.eq.s32.totalorder %s12, 0
      %p126 = por %p124, %p125
      %p127 = scmp.ne.s32.totalorder %s116, %s119
      %p128 = scmp.eq.s32.totalorder %s17, 1
      %p129 = por %p127, %p128
      %p130 = scmp.ne.s32.totalorder %s119, %s120
      %p131 = scmp.eq.s32.totalorder %s17, 0
      %p132 = por %p130, %p131
      %p133 = scmp.ne.s32.totalorder %s119, %s120
      %p134 = scmp.eq.s32.totalorder %s18, 1
      %p135 = por %p133, %p134
      %p137 = scmp.ne.s32.totalorder %s120, %s136
      %p138 = scmp.eq.s32.totalorder %s18, 0
      %p139 = por %p137, %p138
      %s140 = ssub.s32 %s20, %s27
      %s141 = ssub.s32 %s19, %s31
      %s142 = sor.u32 %s140, %s141
      %p143 = scmp.eq.s32.totalorder %s142, 0
      %s145 = sadd.s32 %s144, 1
      %s146 = scalar_select %p143, %s144, %s145
      %p149 = pneg %p143
      %p150 = scmp.eq.s32.totalorder %s12, 1
      %p151 = por %p149, %p150
      %p152 = scmp.ne.s32.totalorder %s144, %s147
      %p153 = scmp.eq.s32.totalorder %s12, 0
      %p154 = por %p152, %p153
      %p155 = scmp.ne.s32.totalorder %s144, %s147
      %p156 = scmp.eq.s32.totalorder %s17, 1
      %p157 = por %p155, %p156
      %p158 = scmp.ne.s32.totalorder %s147, %s148
      %p159 = scmp.eq.s32.totalorder %s17, 0
      %p160 = por %p158, %p159
      %p161 = scmp.ne.s32.totalorder %s147, %s148
      %p162 = scmp.eq.s32.totalorder %s18, 1
      %p163 = por %p161, %p162
      %p165 = scmp.ne.s32.totalorder %s148, %s164
      %p166 = scmp.eq.s32.totalorder %s18, 0
      %p167 = por %p165, %p166
      %s168 = ssub.s32 %s20, %s27
      %s169 = ssub.s32 %s19, %s31
      %s170 = sor.u32 %s168, %s169
      %p171 = scmp.eq.s32.totalorder %s170, 0
      %s173 = sadd.s32 %s172, 1
      %s174 = scalar_select %p171, %s172, %s173
      %p177 = pneg %p171
      %p178 = scmp.eq.s32.totalorder %s12, 1
      %p179 = por %p177, %p178
      %p180 = scmp.ne.s32.totalorder %s172, %s175
      %p181 = scmp.eq.s32.totalorder %s12, 0
      %p182 = por %p180, %p181
      %p183 = scmp.ne.s32.totalorder %s172, %s175
      %p184 = scmp.eq.s32.totalorder %s17, 1
      %p185 = por %p183, %p184
      %p186 = scmp.ne.s32.totalorder %s175, %s176
      %p187 = scmp.eq.s32.totalorder %s17, 0
      %p188 = por %p186, %p187
      %p189 = scmp.ne.s32.totalorder %s175, %s176
      %p190 = scmp.eq.s32.totalorder %s18, 1
      %p191 = por %p189, %p190
      %p193 = scmp.ne.s32.totalorder %s176, %s192
      %p194 = scmp.eq.s32.totalorder %s18, 0
      %p195 = por %p193, %p194
      %p196 = scmp.le.s32.totalorder 1, %s12
      %p197 = scmp.lt.s32.totalorder %s12, 3
      %p198 = pnand %p196, %p197
      %p199 = pneg %p198
      // Predicated region
      $region9: #{spectral_conv4d_forward.1} parent=5 // pred_check
        _
      $region10: #{spectral_conv4d_forward.1} parent=5 // pred_check_branch
        %201 = sbr.rel (%p198) target = $region12
      $region11: #{spectral_conv4d_forward.1} parent=5 // pred_region
        %s202 = ssub.s32 %s12, 1
      $region12: #{spectral_conv4d_forward.1} parent=5 // pred_fallthru
        _
      %p203 = scmp.lt.s32.totalorder %s12, 2
      // Predicated region
      $region13: #{spectral_conv4d_forward.1} parent=5 // pred_check
        %p204 = pneg %p203
      $region14: #{spectral_conv4d_forward.1} parent=5 // pred_check_branch
        %206 = sbr.rel (%p204) target = $region16
      $region15: #{spectral_conv4d_forward.1} parent=5 // pred_region
        // Predicated region
        $region17: #{spectral_conv4d_forward.1} parent=15 // pred_check
          %p207 = pneg %p46
        $region18: #{spectral_conv4d_forward.1} parent=15 // pred_check_branch
          %209 = sbr.rel (%p207) target = $region20
        $region19: #{spectral_conv4d_forward.1} parent=15 // pred_region
          %s210 = sand.u32 %s36, 1
          %s211 = sand.u32 %s36, 1
          %s212 = smul.addr %s211, 24
          %s213 = scalar_lea.vmem [#allocation2], %s212
          %s214 = smul.u32 2, %s20
          %s215 = smul.u32 3, %s19
          %s216 = smul.addr %s214, 6
          %s217 = sadd.s32 %s215, %s216
          %s218 = smul.addr %s217, 4
          %s219 = scalar_lea.vmem %s0, %s218
          // Predicated region
          $region21: #{spectral_conv4d_forward.1} parent=19 // pred_check
            _
          $region22: #{spectral_conv4d_forward.1} parent=19 // pred_check_branch
            %221 = sbr.rel (0) target = $region24
          $region23: #{spectral_conv4d_forward.1} parent=19 // pred_region
            // Predicated region
            $region25: #{spectral_conv4d_forward.1} parent=23 // pred_check
              _
            $region26: #{spectral_conv4d_forward.1} parent=23 // pred_check_branch
              %223 = sbr.rel (0) target = $region28
            $region27: #{spectral_conv4d_forward.1} parent=23 // pred_region
              %s224 = scalar_lea.vmem %s219, 8
              %s225 = scalar_lea.vmem %s213, 8 [#allocation2]
              loop: start=0, step=1, limit=1
              $region29: #{spectral_conv4d_forward.1} parent=27 // loop_pre_header
                _
              $region30: #{spectral_conv4d_forward.1} parent=27 // loop_header
                %s227 = sphi 0, %s231
                %p228 = scmp.ge.s32.totalorder %s227, 1
                %s232 = sphi %s219, %s219
                %s233 = sphi %s213, %s213
              $region31: #{spectral_conv4d_forward.1} parent=27 // loop_header_branch
                %230 = sbr.rel (%p228) target = $region35
              $region32: #{spectral_conv4d_forward.1} parent=27 // loop_body
                %v234 = vld [vmem:[%s232] sm:$0xff]
                %235 = vst [vmem:[%s233] sm:$0xff] %v234
                %v236 = vld [vmem:[%s232 + $0x18] sm:$0xff]
                %237 = vst [vmem:[%s233 + $0xc] sm:$0xff] %v236
              $region33: #{spectral_conv4d_forward.1} parent=27 // loop_footer
                %s231 = sadd.s32 1, %s227
              $region34: #{spectral_conv4d_forward.1} parent=27 // loop_footer_branch
                %226 = sbr.rel target = $region30
              $region35: #{spectral_conv4d_forward.1} parent=27 // loop_exit
                _
              %s239 = ssub.s32 16, 1
              loop: start=0, step=1, limit=1
              $region36: #{spectral_conv4d_forward.1} parent=27 // loop_pre_header
                _
              $region37: #{spectral_conv4d_forward.1} parent=27 // loop_header
                %s241 = sphi 0, %s245
                %p242 = scmp.ge.s32.totalorder %s241, 1
                %s246 = sphi %s224, %s224
                %s247 = sphi %s225, %s225
              $region38: #{spectral_conv4d_forward.1} parent=27 // loop_header_branch
                %244 = sbr.rel (%p242) target = $region42
              $region39: #{spectral_conv4d_forward.1} parent=27 // loop_body
                %v248 = vld [vmem:[%s246] sm:%s239]
                %249 = vst [vmem:[%s247] sm:%s239] %v248
                %v250 = vld [vmem:[%s246 + $0x18] sm:%s239]
                %251 = vst [vmem:[%s247 + $0xc] sm:%s239] %v250
              $region40: #{spectral_conv4d_forward.1} parent=27 // loop_footer
                %s245 = sadd.s32 1, %s241
              $region41: #{spectral_conv4d_forward.1} parent=27 // loop_footer_branch
                %240 = sbr.rel target = $region37
              $region42: #{spectral_conv4d_forward.1} parent=27 // loop_exit
                _
            $region28: #{spectral_conv4d_forward.1} parent=23 // pred_fallthru
              _
          $region24: #{spectral_conv4d_forward.1} parent=19 // pred_fallthru
            _
          %252 = vnop
        $region20: #{spectral_conv4d_forward.1} parent=15 // pred_fallthru
          _
        // Predicated region
        $region43: #{spectral_conv4d_forward.1} parent=15 // pred_check
          %p253 = pneg %p74
        $region44: #{spectral_conv4d_forward.1} parent=15 // pred_check_branch
          %255 = sbr.rel (%p253) target = $region46
        $region45: #{spectral_conv4d_forward.1} parent=15 // pred_region
          %s256 = sand.u32 %s64, 1
          %s257 = sand.u32 %s64, 1
          %s258 = smul.addr %s257, 24
          %s259 = scalar_lea.vmem [#allocation3], %s258
          %s260 = smul.u32 2, %s20
          %s261 = smul.u32 3, %s19
          %s262 = smul.addr %s260, 6
          %s263 = sadd.s32 %s261, %s262
          %s264 = smul.addr %s263, 4
          %s265 = scalar_lea.vmem %s1, %s264
          // Predicated region
          $region47: #{spectral_conv4d_forward.1} parent=45 // pred_check
            _
          $region48: #{spectral_conv4d_forward.1} parent=45 // pred_check_branch
            %267 = sbr.rel (0) target = $region50
          $region49: #{spectral_conv4d_forward.1} parent=45 // pred_region
            // Predicated region
            $region51: #{spectral_conv4d_forward.1} parent=49 // pred_check
              _
            $region52: #{spectral_conv4d_forward.1} parent=49 // pred_check_branch
              %269 = sbr.rel (0) target = $region54
            $region53: #{spectral_conv4d_forward.1} parent=49 // pred_region
              %s270 = scalar_lea.vmem %s265, 8
              %s271 = scalar_lea.vmem %s259, 8 [#allocation3]
              loop: start=0, step=1, limit=1
              $region55: #{spectral_conv4d_forward.1} parent=53 // loop_pre_header
                _
              $region56: #{spectral_conv4d_forward.1} parent=53 // loop_header
                %s273 = sphi 0, %s277
                %p274 = scmp.ge.s32.totalorder %s273, 1
                %s278 = sphi %s265, %s265
                %s279 = sphi %s259, %s259
              $region57: #{spectral_conv4d_forward.1} parent=53 // loop_header_branch
                %276 = sbr.rel (%p274) target = $region61
              $region58: #{spectral_conv4d_forward.1} parent=53 // loop_body
                %v280 = vld [vmem:[%s278] sm:$0xff]
                %281 = vst [vmem:[%s279] sm:$0xff] %v280
                %v282 = vld [vmem:[%s278 + $0x18] sm:$0xff]
                %283 = vst [vmem:[%s279 + $0xc] sm:$0xff] %v282
              $region59: #{spectral_conv4d_forward.1} parent=53 // loop_footer
                %s277 = sadd.s32 1, %s273
              $region60: #{spectral_conv4d_forward.1} parent=53 // loop_footer_branch
                %272 = sbr.rel target = $region56
              $region61: #{spectral_conv4d_forward.1} parent=53 // loop_exit
                _
              %s285 = ssub.s32 16, 1
              loop: start=0, step=1, limit=1
              $region62: #{spectral_conv4d_forward.1} parent=53 // loop_pre_header
                _
              $region63: #{spectral_conv4d_forward.1} parent=53 // loop_header
                %s287 = sphi 0, %s291
                %p288 = scmp.ge.s32.totalorder %s287, 1
                %s292 = sphi %s270, %s270
                %s293 = sphi %s271, %s271
              $region64: #{spectral_conv4d_forward.1} parent=53 // loop_header_branch
                %290 = sbr.rel (%p288) target = $region68
              $region65: #{spectral_conv4d_forward.1} parent=53 // loop_body
                %v294 = vld [vmem:[%s292] sm:%s285]
                %295 = vst [vmem:[%s293] sm:%s285] %v294
                %v296 = vld [vmem:[%s292 + $0x18] sm:%s285]
                %297 = vst [vmem:[%s293 + $0xc] sm:%s285] %v296
              $region66: #{spectral_conv4d_forward.1} parent=53 // loop_footer
                %s291 = sadd.s32 1, %s287
              $region67: #{spectral_conv4d_forward.1} parent=53 // loop_footer_branch
                %286 = sbr.rel target = $region63
              $region68: #{spectral_conv4d_forward.1} parent=53 // loop_exit
                _
            $region54: #{spectral_conv4d_forward.1} parent=49 // pred_fallthru
              _
          $region50: #{spectral_conv4d_forward.1} parent=45 // pred_fallthru
            _
          %298 = vnop
        $region46: #{spectral_conv4d_forward.1} parent=15 // pred_fallthru
          _
        // Predicated region
        $region69: #{spectral_conv4d_forward.1} parent=15 // pred_check
          %p299 = pneg %p100
        $region70: #{spectral_conv4d_forward.1} parent=15 // pred_check_branch
          %301 = sbr.rel (%p299) target = $region72
        $region71: #{spectral_conv4d_forward.1} parent=15 // pred_region
          %s302 = sand.u32 %s90, 1
          %s303 = sand.u32 %s90, 1
          %s304 = smul.addr %s303, 96
          %s305 = scalar_lea.vmem [#allocation4], %s304
          %s306 = smul.u32 3, %s19
          %s307 = smul.addr %s306, 8
          %s308 = scalar_lea.vmem %s2, %s307
          // Predicated region
          $region73: #{spectral_conv4d_forward.1} parent=71 // pred_check
            _
          $region74: #{spectral_conv4d_forward.1} parent=71 // pred_check_branch
            %310 = sbr.rel (0) target = $region76
          $region75: #{spectral_conv4d_forward.1} parent=71 // pred_region
            // Predicated region
            $region77: #{spectral_conv4d_forward.1} parent=75 // pred_check
              _
            $region78: #{spectral_conv4d_forward.1} parent=75 // pred_check_branch
              %312 = sbr.rel (0) target = $region80
            $region79: #{spectral_conv4d_forward.1} parent=75 // pred_region
              loop: start=0, step=1, limit=1
              $region81: #{spectral_conv4d_forward.1} parent=79 // loop_pre_header
                _
              $region82: #{spectral_conv4d_forward.1} parent=79 // loop_header
                %s314 = sphi 0, %s318
                %p315 = scmp.ge.s32.totalorder %s314, 1
                %s319 = sphi %s308, %s308
                %s320 = sphi %s305, %s305
              $region83: #{spectral_conv4d_forward.1} parent=79 // loop_header_branch
                %317 = sbr.rel (%p315) target = $region87
              $region84: #{spectral_conv4d_forward.1} parent=79 // loop_body
                %v321 = vld [vmem:[%s319] sm:$0xff]
                %322 = vst [vmem:[%s320] sm:$0xff] %v321
                %v323 = vld [vmem:[%s319 + $0x8] sm:$0xff]
                %324 = vst [vmem:[%s320 + $0x8] sm:$0xff] %v323
                %v325 = vld [vmem:[%s319 + $0x10] sm:$0xff]
                %326 = vst [vmem:[%s320 + $0x10] sm:$0xff] %v325
                %v327 = vld [vmem:[%s319 + $0x30] sm:$0xff]
                %328 = vst [vmem:[%s320 + $0x18] sm:$0xff] %v327
                %v329 = vld [vmem:[%s319 + $0x38] sm:$0xff]
                %330 = vst [vmem:[%s320 + $0x20] sm:$0xff] %v329
                %v331 = vld [vmem:[%s319 + $0x40] sm:$0xff]
                %332 = vst [vmem:[%s320 + $0x28] sm:$0xff] %v331
                %v333 = vld [vmem:[%s319 + $0x60] sm:$0xff]
                %334 = vst [vmem:[%s320 + $0x30] sm:$0xff] %v333
                %v335 = vld [vmem:[%s319 + $0x68] sm:$0xff]
                %336 = vst [vmem:[%s320 + $0x38] sm:$0xff] %v335
                %v337 = vld [vmem:[%s319 + $0x70] sm:$0xff]
                %338 = vst [vmem:[%s320 + $0x40] sm:$0xff] %v337
                %v339 = vld [vmem:[%s319 + $0x90] sm:$0xff]
                %340 = vst [vmem:[%s320 + $0x48] sm:$0xff] %v339
                %v341 = vld [vmem:[%s319 + $0x98] sm:$0xff]
                %342 = vst [vmem:[%s320 + $0x50] sm:$0xff] %v341
                %v343 = vld [vmem:[%s319 + $0xa0] sm:$0xff]
                %344 = vst [vmem:[%s320 + $0x58] sm:$0xff] %v343
              $region85: #{spectral_conv4d_forward.1} parent=79 // loop_footer
                %s318 = sadd.s32 1, %s314
              $region86: #{spectral_conv4d_forward.1} parent=79 // loop_footer_branch
                %313 = sbr.rel target = $region82
              $region87: #{spectral_conv4d_forward.1} parent=79 // loop_exit
                _
            $region80: #{spectral_conv4d_forward.1} parent=75 // pred_fallthru
              _
            // Predicated region
            $region88: #{spectral_conv4d_forward.1} parent=75 // pred_check
              _
            $region89: #{spectral_conv4d_forward.1} parent=75 // pred_check_branch
              %346 = sbr.rel target = $region91
            $region90: #{spectral_conv4d_forward.1} parent=75 // pred_region
              _
            $region91: #{spectral_conv4d_forward.1} parent=75 // pred_fallthru
              _
          $region76: #{spectral_conv4d_forward.1} parent=71 // pred_fallthru
            _
          %347 = vnop
        $region72: #{spectral_conv4d_forward.1} parent=15 // pred_fallthru
          _
        // Predicated region
        $region92: #{spectral_conv4d_forward.1} parent=15 // pred_check
          %p348 = pneg %p126
        $region93: #{spectral_conv4d_forward.1} parent=15 // pred_check_branch
          %350 = sbr.rel (%p348) target = $region95
        $region94: #{spectral_conv4d_forward.1} parent=15 // pred_region
          %s351 = sand.u32 %s116, 1
          %s352 = sand.u32 %s116, 1
          %s353 = smul.addr %s352, 96
          %s354 = scalar_lea.vmem [#allocation5], %s353
          %s355 = smul.u32 3, %s19
          %s356 = smul.addr %s355, 8
          %s357 = scalar_lea.vmem %s3, %s356
          // Predicated region
          $region96: #{spectral_conv4d_forward.1} parent=94 // pred_check
            _
          $region97: #{spectral_conv4d_forward.1} parent=94 // pred_check_branch
            %359 = sbr.rel (0) target = $region99
          $region98: #{spectral_conv4d_forward.1} parent=94 // pred_region
            // Predicated region
            $region100: #{spectral_conv4d_forward.1} parent=98 // pred_check
              _
            $region101: #{spectral_conv4d_forward.1} parent=98 // pred_check_branch
              %361 = sbr.rel (0) target = $region103
            $region102: #{spectral_conv4d_forward.1} parent=98 // pred_region
              loop: start=0, step=1, limit=1
              $region104: #{spectral_conv4d_forward.1} parent=102 // loop_pre_header
                _
              $region105: #{spectral_conv4d_forward.1} parent=102 // loop_header
                %s363 = sphi 0, %s367
                %p364 = scmp.ge.s32.totalorder %s363, 1
                %s368 = sphi %s357, %s357
                %s369 = sphi %s354, %s354
              $region106: #{spectral_conv4d_forward.1} parent=102 // loop_header_branch
                %366 = sbr.rel (%p364) target = $region110
              $region107: #{spectral_conv4d_forward.1} parent=102 // loop_body
                %v370 = vld [vmem:[%s368] sm:$0xff]
                %371 = vst [vmem:[%s369] sm:$0xff] %v370
                %v372 = vld [vmem:[%s368 + $0x8] sm:$0xff]
                %373 = vst [vmem:[%s369 + $0x8] sm:$0xff] %v372
                %v374 = vld [vmem:[%s368 + $0x10] sm:$0xff]
                %375 = vst [vmem:[%s369 + $0x10] sm:$0xff] %v374
                %v376 = vld [vmem:[%s368 + $0x30] sm:$0xff]
                %377 = vst [vmem:[%s369 + $0x18] sm:$0xff] %v376
                %v378 = vld [vmem:[%s368 + $0x38] sm:$0xff]
                %379 = vst [vmem:[%s369 + $0x20] sm:$0xff] %v378
                %v380 = vld [vmem:[%s368 + $0x40] sm:$0xff]
                %381 = vst [vmem:[%s369 + $0x28] sm:$0xff] %v380
                %v382 = vld [vmem:[%s368 + $0x60] sm:$0xff]
                %383 = vst [vmem:[%s369 + $0x30] sm:$0xff] %v382
                %v384 = vld [vmem:[%s368 + $0x68] sm:$0xff]
                %385 = vst [vmem:[%s369 + $0x38] sm:$0xff] %v384
                %v386 = vld [vmem:[%s368 + $0x70] sm:$0xff]
                %387 = vst [vmem:[%s369 + $0x40] sm:$0xff] %v386
                %v388 = vld [vmem:[%s368 + $0x90] sm:$0xff]
                %389 = vst [vmem:[%s369 + $0x48] sm:$0xff] %v388
                %v390 = vld [vmem:[%s368 + $0x98] sm:$0xff]
                %391 = vst [vmem:[%s369 + $0x50] sm:$0xff] %v390
                %v392 = vld [vmem:[%s368 + $0xa0] sm:$0xff]
                %393 = vst [vmem:[%s369 + $0x58] sm:$0xff] %v392
              $region108: #{spectral_conv4d_forward.1} parent=102 // loop_footer
                %s367 = sadd.s32 1, %s363
              $region109: #{spectral_conv4d_forward.1} parent=102 // loop_footer_branch
                %362 = sbr.rel target = $region105
              $region110: #{spectral_conv4d_forward.1} parent=102 // loop_exit
                _
            $region103: #{spectral_conv4d_forward.1} parent=98 // pred_fallthru
              _
            // Predicated region
            $region111: #{spectral_conv4d_forward.1} parent=98 // pred_check
              _
            $region112: #{spectral_conv4d_forward.1} parent=98 // pred_check_branch
              %395 = sbr.rel target = $region114
            $region113: #{spectral_conv4d_forward.1} parent=98 // pred_region
              _
            $region114: #{spectral_conv4d_forward.1} parent=98 // pred_fallthru
              _
          $region99: #{spectral_conv4d_forward.1} parent=94 // pred_fallthru
            _
          %396 = vnop
        $region95: #{spectral_conv4d_forward.1} parent=15 // pred_fallthru
          _
      $region16: #{spectral_conv4d_forward.1} parent=5 // pred_fallthru
        _
      %p397 = scmp.le.s32.totalorder 1, %s12
      %p398 = scmp.lt.s32.totalorder %s12, 3
      %p399 = pnand %p397, %p398
      %p400 = pneg %p399
      // Predicated region
      $region115: #{spectral_conv4d_forward.1} parent=5 // pred_check
        _
      $region116: #{spectral_conv4d_forward.1} parent=5 // pred_check_branch
        %402 = sbr.rel (%p399) target = $region118
      $region117: #{spectral_conv4d_forward.1} parent=5 // pred_region
        %s403 = ssub.s32 %s12, 1
        %s404 = sand.u32 %s39, 1
        %s405 = sand.u32 %s39, 1
        %s406 = smul.addr %s405, 24
        %s407 = scalar_lea.vmem [#allocation2], %s406
        // Predicated region
        $region119: #{spectral_conv4d_forward.1} parent=117 // pred_check
          %p408 = pneg %p52
        $region120: #{spectral_conv4d_forward.1} parent=117 // pred_check_branch
          %410 = sbr.rel (%p408) target = $region122
        $region121: #{spectral_conv4d_forward.1} parent=117 // pred_region
          _
        $region122: #{spectral_conv4d_forward.1} parent=117 // pred_fallthru
          _
        %s411 = sand.u32 %s67, 1
        %s412 = sand.u32 %s67, 1
        %s413 = smul.addr %s412, 24
        %s414 = scalar_lea.vmem [#allocation3], %s413
        // Predicated region
        $region123: #{spectral_conv4d_forward.1} parent=117 // pred_check
          %p415 = pneg %p80
        $region124: #{spectral_conv4d_forward.1} parent=117 // pred_check_branch
          %417 = sbr.rel (%p415) target = $region126
        $region125: #{spectral_conv4d_forward.1} parent=117 // pred_region
          _
        $region126: #{spectral_conv4d_forward.1} parent=117 // pred_fallthru
          _
        %s418 = sand.u32 %s93, 1
        %s419 = sand.u32 %s93, 1
        %s420 = smul.addr %s419, 96
        %s421 = scalar_lea.vmem [#allocation4], %s420
        // Predicated region
        $region127: #{spectral_conv4d_forward.1} parent=117 // pred_check
          %p422 = pneg %p106
        $region128: #{spectral_conv4d_forward.1} parent=117 // pred_check_branch
          %424 = sbr.rel (%p422) target = $region130
        $region129: #{spectral_conv4d_forward.1} parent=117 // pred_region
          _
        $region130: #{spectral_conv4d_forward.1} parent=117 // pred_fallthru
          _
        %s425 = sand.u32 %s119, 1
        %s426 = sand.u32 %s119, 1
        %s427 = smul.addr %s426, 96
        %s428 = scalar_lea.vmem [#allocation5], %s427
        // Predicated region
        $region131: #{spectral_conv4d_forward.1} parent=117 // pred_check
          %p429 = pneg %p132
        $region132: #{spectral_conv4d_forward.1} parent=117 // pred_check_branch
          %431 = sbr.rel (%p429) target = $region134
        $region133: #{spectral_conv4d_forward.1} parent=117 // pred_region
          _
        $region134: #{spectral_conv4d_forward.1} parent=117 // pred_fallthru
          _
        %s432 = sand.u32 %s39, 1
        %s433 = sand.u32 %s39, 1
        %s434 = smul.addr %s433, 24
        %s435 = scalar_lea.vmem [#allocation2], %s434
        %p436 = pneg %p52
        %p437 = pneg %p49
        %s438 = sand.u32 %s67, 1
        %s439 = sand.u32 %s67, 1
        %s440 = smul.addr %s439, 24
        %s441 = scalar_lea.vmem [#allocation3], %s440
        %p442 = pneg %p80
        %p443 = pneg %p77
        %s444 = sand.u32 %s93, 1
        %s445 = sand.u32 %s93, 1
        %s446 = smul.addr %s445, 96
        %s447 = scalar_lea.vmem [#allocation4], %s446
        %p448 = pneg %p106
        %p449 = pneg %p103
        %s450 = sand.u32 %s119, 1
        %s451 = sand.u32 %s119, 1
        %s452 = smul.addr %s451, 96
        %s453 = scalar_lea.vmem [#allocation5], %s452
        %p454 = pneg %p132
        %p455 = pneg %p129
        %p456 = pneg %p160
        %p457 = pneg %p157
        %s458 = sand.u32 %s147, 1
        %s459 = sand.u32 %s147, 1
        %s460 = smul.addr %s459, 48
        %s461 = scalar_lea.vmem [#allocation6], %s460
        %p462 = pneg %p188
        %p463 = pneg %p185
        %s464 = sand.u32 %s175, 1
        %s465 = sand.u32 %s175, 1
        %s466 = smul.addr %s465, 48
        %s467 = scalar_lea.vmem [#allocation7], %s466
        %s468 = smul.u32 2, %s22
        %s469 = smul.u32 3, %s21
        %s470 = smul.u32 2, %s22
        %s471 = smul.u32 3, %s21
        %s472 = smul.u32 3, %s21
        %s473 = smul.u32 3, %s21
        %s474 = smul.u32 2, %s22
        %s475 = smul.u32 3, %s21
        %s476 = smul.u32 2, %s22
        %s477 = smul.u32 3, %s21
        %v478 = vld [vmem:[%s407] sm:$0x1]
        %v479 = vld [vmem:[%s414] sm:$0x1]
        %v480 = vld [vmem:[%s421] sm:$0xff]
        %v481 = vld [vmem:[%s428] sm:$0xff]
        %v482 = vperm.slane %v478, 0
        %v483 = vmul.f32 %v482, %v480
        %v484 = vperm.slane %v479, 0
        %v485 = vmul.f32 %v484, %v481
        %v486 = vsub.f32 %v483, %v485
        %v487 = vadd.f32 %v486, 0.0
        %v488 = vmul.f32 %v482, %v481
        %v489 = vmul.f32 %v484, %v480
        %v490 = vadd.f32 %v488, %v489
        %v491 = vadd.f32 %v490, 0.0
        %v492 = vld [vmem:[%s407 + $0x1] sm:$0x1]
        %v493 = vld [vmem:[%s414 + $0x1] sm:$0x1]
        %s494 = scalar_lea.vmem %s421, 24 [#allocation4]
        %v495 = vld [vmem:[%s494] sm:$0xff]
        %s496 = scalar_lea.vmem %s428, 24 [#allocation5]
        %v497 = vld [vmem:[%s496] sm:$0xff]
        %v498 = vperm.slane %v492, 0
        %v499 = vmul.f32 %v498, %v495
        %v500 = vperm.slane %v493, 0
        %v501 = vmul.f32 %v500, %v497
        %v502 = vsub.f32 %v499, %v501
        %v503 = vadd.f32 %v487, %v502
        %v504 = vmul.f32 %v498, %v497
        %v505 = vmul.f32 %v500, %v495
        %v506 = vadd.f32 %v504, %v505
        %v507 = vadd.f32 %v491, %v506
        %v508 = vld [vmem:[%s407 + $0x2] sm:$0x1]
        %v509 = vld [vmem:[%s414 + $0x2] sm:$0x1]
        %s510 = scalar_lea.vmem %s421, 48 [#allocation4]
        %v511 = vld [vmem:[%s510] sm:$0xff]
        %s512 = scalar_lea.vmem %s428, 48 [#allocation5]
        %v513 = vld [vmem:[%s512] sm:$0xff]
        %v514 = vperm.slane %v508, 0
        %v515 = vmul.f32 %v514, %v511
        %v516 = vperm.slane %v509, 0
        %v517 = vmul.f32 %v516, %v513
        %v518 = vsub.f32 %v515, %v517
        %v519 = vadd.f32 %v503, %v518
        %v520 = vmul.f32 %v514, %v513
        %v521 = vmul.f32 %v516, %v511
        %v522 = vadd.f32 %v520, %v521
        %v523 = vadd.f32 %v507, %v522
        %v524 = vld [vmem:[%s407 + $0x3] sm:$0x1]
        %v525 = vld [vmem:[%s414 + $0x3] sm:$0x1]
        %s526 = scalar_lea.vmem %s421, 72 [#allocation4]
        %v527 = vld [vmem:[%s526] sm:$0xff]
        %s528 = scalar_lea.vmem %s428, 72 [#allocation5]
        %v529 = vld [vmem:[%s528] sm:$0xff]
        %v530 = vperm.slane %v524, 0
        %v531 = vmul.f32 %v530, %v527
        %v532 = vperm.slane %v525, 0
        %v533 = vmul.f32 %v532, %v529
        %v534 = vsub.f32 %v531, %v533
        %v535 = vadd.f32 %v519, %v534
        %v536 = vmul.f32 %v530, %v529
        %v537 = vmul.f32 %v532, %v527
        %v538 = vadd.f32 %v536, %v537
        %v539 = vadd.f32 %v523, %v538
        %540 = vst [vmem:[%s461] sm:$0xff] %v535
        %541 = vst [vmem:[%s467] sm:$0xff] %v539
        %v542 = vld [vmem:[%s407 + $0x4] sm:$0x1]
        %v543 = vld [vmem:[%s414 + $0x4] sm:$0x1]
        %v544 = vld [vmem:[%s421 + $0x8] sm:$0xff]
        %v545 = vld [vmem:[%s428 + $0x8] sm:$0xff]
        %v546 = vperm.slane %v542, 0
        %v547 = vmul.f32 %v546, %v544
        %v548 = vperm.slane %v543, 0
        %v549 = vmul.f32 %v548, %v545
        %v550 = vsub.f32 %v547, %v549
        %v551 = vadd.f32 %v550, 0.0
        %v552 = vmul.f32 %v546, %v545
        %v553 = vmul.f32 %v548, %v544
        %v554 = vadd.f32 %v552, %v553
        %v555 = vadd.f32 %v554, 0.0
        %v556 = vld [vmem:[%s407 + $0x5] sm:$0x1]
        %v557 = vld [vmem:[%s414 + $0x5] sm:$0x1]
        %v558 = vld [vmem:[%s494 + $0x8] sm:$0xff]
        %v559 = vld [vmem:[%s496 + $0x8] sm:$0xff]
        %v560 = vperm.slane %v556, 0
        %v561 = vmul.f32 %v560, %v558
        %v562 = vperm.slane %v557, 0
        %v563 = vmul.f32 %v562, %v559
        %v564 = vsub.f32 %v561, %v563
        %v565 = vadd.f32 %v551, %v564
        %v566 = vmul.f32 %v560, %v559
        %v567 = vmul.f32 %v562, %v558
        %v568 = vadd.f32 %v566, %v567
        %v569 = vadd.f32 %v555, %v568
        %v570 = vld [vmem:[%s407 + $0x6] sm:$0x1]
        %v571 = vld [vmem:[%s414 + $0x6] sm:$0x1]
        %v572 = vld [vmem:[%s510 + $0x8] sm:$0xff]
        %v573 = vld [vmem:[%s512 + $0x8] sm:$0xff]
        %v574 = vperm.slane %v570, 0
        %v575 = vmul.f32 %v574, %v572
        %v576 = vperm.slane %v571, 0
        %v577 = vmul.f32 %v576, %v573
        %v578 = vsub.f32 %v575, %v577
        %v579 = vadd.f32 %v565, %v578
        %v580 = vmul.f32 %v574, %v573
        %v581 = vmul.f32 %v576, %v572
        %v582 = vadd.f32 %v580, %v581
        %v583 = vadd.f32 %v569, %v582
        %v584 = vld [vmem:[%s407 + $0x7] sm:$0x1]
        %v585 = vld [vmem:[%s414 + $0x7] sm:$0x1]
        %v586 = vld [vmem:[%s526 + $0x8] sm:$0xff]
        %v587 = vld [vmem:[%s528 + $0x8] sm:$0xff]
        %v588 = vperm.slane %v584, 0
        %v589 = vmul.f32 %v588, %v586
        %v590 = vperm.slane %v585, 0
        %v591 = vmul.f32 %v590, %v587
        %v592 = vsub.f32 %v589, %v591
        %v593 = vadd.f32 %v579, %v592
        %v594 = vmul.f32 %v588, %v587
        %v595 = vmul.f32 %v590, %v586
        %v596 = vadd.f32 %v594, %v595
        %v597 = vadd.f32 %v583, %v596
        %598 = vst [vmem:[%s461 + $0x8] sm:$0xff] %v593
        %599 = vst [vmem:[%s467 + $0x8] sm:$0xff] %v597
        %v600 = vld [vmem:[%s407 + $0x8] sm:$0x1]
        %v601 = vld [vmem:[%s414 + $0x8] sm:$0x1]
        %v602 = vld [vmem:[%s421 + $0x10] sm:$0xff]
        %v603 = vld [vmem:[%s428 + $0x10] sm:$0xff]
        %v604 = vperm.slane %v600, 0
        %v605 = vmul.f32 %v604, %v602
        %v606 = vperm.slane %v601, 0
        %v607 = vmul.f32 %v606, %v603
        %v608 = vsub.f32 %v605, %v607
        %v609 = vadd.f32 %v608, 0.0
        %v610 = vmul.f32 %v604, %v603
        %v611 = vmul.f32 %v606, %v602
        %v612 = vadd.f32 %v610, %v611
        %v613 = vadd.f32 %v612, 0.0
        %v614 = vld [vmem:[%s407 + $0x9] sm:$0x1]
        %v615 = vld [vmem:[%s414 + $0x9] sm:$0x1]
        %v616 = vld [vmem:[%s494 + $0x10] sm:$0xff]
        %v617 = vld [vmem:[%s496 + $0x10] sm:$0xff]
        %v618 = vperm.slane %v614, 0
        %v619 = vmul.f32 %v618, %v616
        %v620 = vperm.slane %v615, 0
        %v621 = vmul.f32 %v620, %v617
        %v622 = vsub.f32 %v619, %v621
        %v623 = vadd.f32 %v609, %v622
        %v624 = vmul.f32 %v618, %v617
        %v625 = vmul.f32 %v620, %v616
        %v626 = vadd.f32 %v624, %v625
        %v627 = vadd.f32 %v613, %v626
        %v628 = vld [vmem:[%s407 + $0xa] sm:$0x1]
        %v629 = vld [vmem:[%s414 + $0xa] sm:$0x1]
        %v630 = vld [vmem:[%s510 + $0x10] sm:$0xff]
        %v631 = vld [vmem:[%s512 + $0x10] sm:$0xff]
        %v632 = vperm.slane %v628, 0
        %v633 = vmul.f32 %v632, %v630
        %v634 = vperm.slane %v629, 0
        %v635 = vmul.f32 %v634, %v631
        %v636 = vsub.f32 %v633, %v635
        %v637 = vadd.f32 %v623, %v636
        %v638 = vmul.f32 %v632, %v631
        %v639 = vmul.f32 %v634, %v630
        %v640 = vadd.f32 %v638, %v639
        %v641 = vadd.f32 %v627, %v640
        %v642 = vld [vmem:[%s407 + $0xb] sm:$0x1]
        %v643 = vld [vmem:[%s414 + $0xb] sm:$0x1]
        %v644 = vld [vmem:[%s526 + $0x10] sm:$0xff]
        %v645 = vld [vmem:[%s528 + $0x10] sm:$0xff]
        %v646 = vperm.slane %v642, 0
        %v647 = vmul.f32 %v646, %v644
        %v648 = vperm.slane %v643, 0
        %v649 = vmul.f32 %v648, %v645
        %v650 = vsub.f32 %v647, %v649
        %v651 = vadd.f32 %v637, %v650
        %v652 = vmul.f32 %v646, %v645
        %v653 = vmul.f32 %v648, %v644
        %v654 = vadd.f32 %v652, %v653
        %v655 = vadd.f32 %v641, %v654
        %656 = vst [vmem:[%s461 + $0x10] sm:$0xff] %v651
        %657 = vst [vmem:[%s467 + $0x10] sm:$0xff] %v655
        %s658 = scalar_lea.vmem %s407, 12 [#allocation2]
        %v659 = vld [vmem:[%s658] sm:$0x1]
        %s660 = scalar_lea.vmem %s414, 12 [#allocation3]
        %v661 = vld [vmem:[%s660] sm:$0x1]
        %v662 = vld [vmem:[%s421] sm:$0xff]
        %v663 = vld [vmem:[%s428] sm:$0xff]
        %v664 = vperm.slane %v659, 0
        %v665 = vmul.f32 %v664, %v662
        %v666 = vperm.slane %v661, 0
        %v667 = vmul.f32 %v666, %v663
        %v668 = vsub.f32 %v665, %v667
        %v669 = vadd.f32 %v668, 0.0
        %v670 = vmul.f32 %v664, %v663
        %v671 = vmul.f32 %v666, %v662
        %v672 = vadd.f32 %v670, %v671
        %v673 = vadd.f32 %v672, 0.0
        %v674 = vld [vmem:[%s658 + $0x1] sm:$0x1]
        %v675 = vld [vmem:[%s660 + $0x1] sm:$0x1]
        %v676 = vld [vmem:[%s494] sm:$0xff]
        %v677 = vld [vmem:[%s496] sm:$0xff]
        %v678 = vperm.slane %v674, 0
        %v679 = vmul.f32 %v678, %v676
        %v680 = vperm.slane %v675, 0
        %v681 = vmul.f32 %v680, %v677
        %v682 = vsub.f32 %v679, %v681
        %v683 = vadd.f32 %v669, %v682
        %v684 = vmul.f32 %v678, %v677
        %v685 = vmul.f32 %v680, %v676
        %v686 = vadd.f32 %v684, %v685
        %v687 = vadd.f32 %v673, %v686
        %v688 = vld [vmem:[%s658 + $0x2] sm:$0x1]
        %v689 = vld [vmem:[%s660 + $0x2] sm:$0x1]
        %v690 = vld [vmem:[%s510] sm:$0xff]
        %v691 = vld [vmem:[%s512] sm:$0xff]
        %v692 = vperm.slane %v688, 0
        %v693 = vmul.f32 %v692, %v690
        %v694 = vperm.slane %v689, 0
        %v695 = vmul.f32 %v694, %v691
        %v696 = vsub.f32 %v693, %v695
        %v697 = vadd.f32 %v683, %v696
        %v698 = vmul.f32 %v692, %v691
        %v699 = vmul.f32 %v694, %v690
        %v700 = vadd.f32 %v698, %v699
        %v701 = vadd.f32 %v687, %v700
        %v702 = vld [vmem:[%s658 + $0x3] sm:$0x1]
        %v703 = vld [vmem:[%s660 + $0x3] sm:$0x1]
        %v704 = vld [vmem:[%s526] sm:$0xff]
        %v705 = vld [vmem:[%s528] sm:$0xff]
        %v706 = vperm.slane %v702, 0
        %v707 = vmul.f32 %v706, %v704
        %v708 = vperm.slane %v703, 0
        %v709 = vmul.f32 %v708, %v705
        %v710 = vsub.f32 %v707, %v709
        %v711 = vadd.f32 %v697, %v710
        %v712 = vmul.f32 %v706, %v705
        %v713 = vmul.f32 %v708, %v704
        %v714 = vadd.f32 %v712, %v713
        %v715 = vadd.f32 %v701, %v714
        %s716 = scalar_lea.vmem %s461, 24 [#allocation6]
        %717 = vst [vmem:[%s716] sm:$0xff] %v711
        %s718 = scalar_lea.vmem %s467, 24 [#allocation7]
        %719 = vst [vmem:[%s718] sm:$0xff] %v715
        %v720 = vld [vmem:[%s658 + $0x4] sm:$0x1]
        %v721 = vld [vmem:[%s660 + $0x4] sm:$0x1]
        %v722 = vld [vmem:[%s421 + $0x8] sm:$0xff]
        %v723 = vld [vmem:[%s428 + $0x8] sm:$0xff]
        %v724 = vperm.slane %v720, 0
        %v725 = vmul.f32 %v724, %v722
        %v726 = vperm.slane %v721, 0
        %v727 = vmul.f32 %v726, %v723
        %v728 = vsub.f32 %v725, %v727
        %v729 = vadd.f32 %v728, 0.0
        %v730 = vmul.f32 %v724, %v723
        %v731 = vmul.f32 %v726, %v722
        %v732 = vadd.f32 %v730, %v731
        %v733 = vadd.f32 %v732, 0.0
        %v734 = vld [vmem:[%s658 + $0x5] sm:$0x1]
        %v735 = vld [vmem:[%s660 + $0x5] sm:$0x1]
        %v736 = vld [vmem:[%s494 + $0x8] sm:$0xff]
        %v737 = vld [vmem:[%s496 + $0x8] sm:$0xff]
        %v738 = vperm.slane %v734, 0
        %v739 = vmul.f32 %v738, %v736
        %v740 = vperm.slane %v735, 0
        %v741 = vmul.f32 %v740, %v737
        %v742 = vsub.f32 %v739, %v741
        %v743 = vadd.f32 %v729, %v742
        %v744 = vmul.f32 %v738, %v737
        %v745 = vmul.f32 %v740, %v736
        %v746 = vadd.f32 %v744, %v745
        %v747 = vadd.f32 %v733, %v746
        %v748 = vld [vmem:[%s658 + $0x6] sm:$0x1]
        %v749 = vld [vmem:[%s660 + $0x6] sm:$0x1]
        %v750 = vld [vmem:[%s510 + $0x8] sm:$0xff]
        %v751 = vld [vmem:[%s512 + $0x8] sm:$0xff]
        %v752 = vperm.slane %v748, 0
        %v753 = vmul.f32 %v752, %v750
        %v754 = vperm.slane %v749, 0
        %v755 = vmul.f32 %v754, %v751
        %v756 = vsub.f32 %v753, %v755
        %v757 = vadd.f32 %v743, %v756
        %v758 = vmul.f32 %v752, %v751
        %v759 = vmul.f32 %v754, %v750
        %v760 = vadd.f32 %v758, %v759
        %v761 = vadd.f32 %v747, %v760
        %v762 = vld [vmem:[%s658 + $0x7] sm:$0x1]
        %v763 = vld [vmem:[%s660 + $0x7] sm:$0x1]
        %v764 = vld [vmem:[%s526 + $0x8] sm:$0xff]
        %v765 = vld [vmem:[%s528 + $0x8] sm:$0xff]
        %v766 = vperm.slane %v762, 0
        %v767 = vmul.f32 %v766, %v764
        %v768 = vperm.slane %v763, 0
        %v769 = vmul.f32 %v768, %v765
        %v770 = vsub.f32 %v767, %v769
        %v771 = vadd.f32 %v757, %v770
        %v772 = vmul.f32 %v766, %v765
        %v773 = vmul.f32 %v768, %v764
        %v774 = vadd.f32 %v772, %v773
        %v775 = vadd.f32 %v761, %v774
        %776 = vst [vmem:[%s716 + $0x8] sm:$0xff] %v771
        %777 = vst [vmem:[%s718 + $0x8] sm:$0xff] %v775
        %v778 = vld [vmem:[%s658 + $0x8] sm:$0x1]
        %v779 = vld [vmem:[%s660 + $0x8] sm:$0x1]
        %v780 = vld [vmem:[%s421 + $0x10] sm:$0xff]
        %v781 = vld [vmem:[%s428 + $0x10] sm:$0xff]
        %v782 = vperm.slane %v778, 0
        %v783 = vmul.f32 %v782, %v780
        %v784 = vperm.slane %v779, 0
        %v785 = vmul.f32 %v784, %v781
        %v786 = vsub.f32 %v783, %v785
        %v787 = vadd.f32 %v786, 0.0
        %v788 = vmul.f32 %v782, %v781
        %v789 = vmul.f32 %v784, %v780
        %v790 = vadd.f32 %v788, %v789
        %v791 = vadd.f32 %v790, 0.0
        %v792 = vld [vmem:[%s658 + $0x9] sm:$0x1]
        %v793 = vld [vmem:[%s660 + $0x9] sm:$0x1]
        %v794 = vld [vmem:[%s494 + $0x10] sm:$0xff]
        %v795 = vld [vmem:[%s496 + $0x10] sm:$0xff]
        %v796 = vperm.slane %v792, 0
        %v797 = vmul.f32 %v796, %v794
        %v798 = vperm.slane %v793, 0
        %v799 = vmul.f32 %v798, %v795
        %v800 = vsub.f32 %v797, %v799
        %v801 = vadd.f32 %v787, %v800
        %v802 = vmul.f32 %v796, %v795
        %v803 = vmul.f32 %v798, %v794
        %v804 = vadd.f32 %v802, %v803
        %v805 = vadd.f32 %v791, %v804
        %v806 = vld [vmem:[%s658 + $0xa] sm:$0x1]
        %v807 = vld [vmem:[%s660 + $0xa] sm:$0x1]
        %v808 = vld [vmem:[%s510 + $0x10] sm:$0xff]
        %v809 = vld [vmem:[%s512 + $0x10] sm:$0xff]
        %v810 = vperm.slane %v806, 0
        %v811 = vmul.f32 %v810, %v808
        %v812 = vperm.slane %v807, 0
        %v813 = vmul.f32 %v812, %v809
        %v814 = vsub.f32 %v811, %v813
        %v815 = vadd.f32 %v801, %v814
        %v816 = vmul.f32 %v810, %v809
        %v817 = vmul.f32 %v812, %v808
        %v818 = vadd.f32 %v816, %v817
        %v819 = vadd.f32 %v805, %v818
        %v820 = vld [vmem:[%s658 + $0xb] sm:$0x1]
        %v821 = vld [vmem:[%s660 + $0xb] sm:$0x1]
        %v822 = vld [vmem:[%s526 + $0x10] sm:$0xff]
        %v823 = vld [vmem:[%s528 + $0x10] sm:$0xff]
        %v824 = vperm.slane %v820, 0
        %v825 = vmul.f32 %v824, %v822
        %v826 = vperm.slane %v821, 0
        %v827 = vmul.f32 %v826, %v823
        %v828 = vsub.f32 %v825, %v827
        %v829 = vadd.f32 %v815, %v828
        %v830 = vmul.f32 %v824, %v823
        %v831 = vmul.f32 %v826, %v822
        %v832 = vadd.f32 %v830, %v831
        %v833 = vadd.f32 %v819, %v832
        %834 = vst [vmem:[%s716 + $0x10] sm:$0xff] %v829
        %835 = vst [vmem:[%s718 + $0x10] sm:$0xff] %v833
        %s836 = sand.u32 %s147, 1
        %s837 = sand.u32 %s147, 1
        %s838 = smul.addr %s837, 48
        %s839 = scalar_lea.vmem [#allocation6], %s838
        %s840 = sand.u32 %s175, 1
        %s841 = sand.u32 %s175, 1
        %s842 = smul.addr %s841, 48
        %s843 = scalar_lea.vmem [#allocation7], %s842
        // Predicated region
        $region135: #{spectral_conv4d_forward.1} parent=117 // pred_check
          %p844 = pneg %p157
        $region136: #{spectral_conv4d_forward.1} parent=117 // pred_check_branch
          %846 = sbr.rel (%p844) target = $region138
        $region137: #{spectral_conv4d_forward.1} parent=117 // pred_region
          %s847 = smul.u32 2, %s22
          %s848 = smul.u32 3, %s21
          %s849 = smul.addr %s847, 6
          %s850 = sadd.s32 %s848, %s849
          %s851 = smul.addr %s850, 8
          %s852 = scalar_lea.vmem %s4, %s851
          // Predicated region
          $region139: #{spectral_conv4d_forward.1} parent=137 // pred_check
            _
          $region140: #{spectral_conv4d_forward.1} parent=137 // pred_check_branch
            %854 = sbr.rel (0) target = $region142
          $region141: #{spectral_conv4d_forward.1} parent=137 // pred_region
            // Predicated region
            $region143: #{spectral_conv4d_forward.1} parent=141 // pred_check
              _
            $region144: #{spectral_conv4d_forward.1} parent=141 // pred_check_branch
              %856 = sbr.rel (0) target = $region146
            $region145: #{spectral_conv4d_forward.1} parent=141 // pred_region
              loop: start=0, step=1, limit=1
              $region147: #{spectral_conv4d_forward.1} parent=145 // loop_pre_header
                _
              $region148: #{spectral_conv4d_forward.1} parent=145 // loop_header
                %s858 = sphi 0, %s862
                %p859 = scmp.ge.s32.totalorder %s858, 1
                %s863 = sphi %s839, %s839
                %s864 = sphi %s852, %s852
              $region149: #{spectral_conv4d_forward.1} parent=145 // loop_header_branch
                %861 = sbr.rel (%p859) target = $region153
              $region150: #{spectral_conv4d_forward.1} parent=145 // loop_body
                %v865 = vld [vmem:[%s863] sm:$0xff]
                %866 = vst [vmem:[%s864] sm:$0xff] %v865
                %v867 = vld [vmem:[%s863 + $0x8] sm:$0xff]
                %868 = vst [vmem:[%s864 + $0x8] sm:$0xff] %v867
                %v869 = vld [vmem:[%s863 + $0x10] sm:$0xff]
                %870 = vst [vmem:[%s864 + $0x10] sm:$0xff] %v869
                %v871 = vld [vmem:[%s863 + $0x18] sm:$0xff]
                %872 = vst [vmem:[%s864 + $0x30] sm:$0xff] %v871
                %v873 = vld [vmem:[%s863 + $0x20] sm:$0xff]
                %874 = vst [vmem:[%s864 + $0x38] sm:$0xff] %v873
                %v875 = vld [vmem:[%s863 + $0x28] sm:$0xff]
                %876 = vst [vmem:[%s864 + $0x40] sm:$0xff] %v875
              $region151: #{spectral_conv4d_forward.1} parent=145 // loop_footer
                %s862 = sadd.s32 1, %s858
              $region152: #{spectral_conv4d_forward.1} parent=145 // loop_footer_branch
                %857 = sbr.rel target = $region148
              $region153: #{spectral_conv4d_forward.1} parent=145 // loop_exit
                _
            $region146: #{spectral_conv4d_forward.1} parent=141 // pred_fallthru
              _
            // Predicated region
            $region154: #{spectral_conv4d_forward.1} parent=141 // pred_check
              _
            $region155: #{spectral_conv4d_forward.1} parent=141 // pred_check_branch
              %878 = sbr.rel target = $region157
            $region156: #{spectral_conv4d_forward.1} parent=141 // pred_region
              _
            $region157: #{spectral_conv4d_forward.1} parent=141 // pred_fallthru
              _
          $region142: #{spectral_conv4d_forward.1} parent=137 // pred_fallthru
            _
          %879 = vnop
        $region138: #{spectral_conv4d_forward.1} parent=117 // pred_fallthru
          _
        // Predicated region
        $region158: #{spectral_conv4d_forward.1} parent=117 // pred_check
          %p880 = pneg %p185
        $region159: #{spectral_conv4d_forward.1} parent=117 // pred_check_branch
          %882 = sbr.rel (%p880) target = $region161
        $region160: #{spectral_conv4d_forward.1} parent=117 // pred_region
          %s883 = smul.u32 2, %s22
          %s884 = smul.u32 3, %s21
          %s885 = smul.addr %s883, 6
          %s886 = sadd.s32 %s884, %s885
          %s887 = smul.addr %s886, 8
          %s888 = scalar_lea.vmem %s5, %s887
          // Predicated region
          $region162: #{spectral_conv4d_forward.1} parent=160 // pred_check
            _
          $region163: #{spectral_conv4d_forward.1} parent=160 // pred_check_branch
            %890 = sbr.rel (0) target = $region165
          $region164: #{spectral_conv4d_forward.1} parent=160 // pred_region
            // Predicated region
            $region166: #{spectral_conv4d_forward.1} parent=164 // pred_check
              _
            $region167: #{spectral_conv4d_forward.1} parent=164 // pred_check_branch
              %892 = sbr.rel (0) target = $region169
            $region168: #{spectral_conv4d_forward.1} parent=164 // pred_region
              loop: start=0, step=1, limit=1
              $region170: #{spectral_conv4d_forward.1} parent=168 // loop_pre_header
                _
              $region171: #{spectral_conv4d_forward.1} parent=168 // loop_header
                %s894 = sphi 0, %s898
                %p895 = scmp.ge.s32.totalorder %s894, 1
                %s899 = sphi %s843, %s843
                %s900 = sphi %s888, %s888
              $region172: #{spectral_conv4d_forward.1} parent=168 // loop_header_branch
                %897 = sbr.rel (%p895) target = $region176
              $region173: #{spectral_conv4d_forward.1} parent=168 // loop_body
                %v901 = vld [vmem:[%s899] sm:$0xff]
                %902 = vst [vmem:[%s900] sm:$0xff] %v901
                %v903 = vld [vmem:[%s899 + $0x8] sm:$0xff]
                %904 = vst [vmem:[%s900 + $0x8] sm:$0xff] %v903
                %v905 = vld [vmem:[%s899 + $0x10] sm:$0xff]
                %906 = vst [vmem:[%s900 + $0x10] sm:$0xff] %v905
                %v907 = vld [vmem:[%s899 + $0x18] sm:$0xff]
                %908 = vst [vmem:[%s900 + $0x30] sm:$0xff] %v907
                %v909 = vld [vmem:[%s899 + $0x20] sm:$0xff]
                %910 = vst [vmem:[%s900 + $0x38] sm:$0xff] %v909
                %v911 = vld [vmem:[%s899 + $0x28] sm:$0xff]
                %912 = vst [vmem:[%s900 + $0x40] sm:$0xff] %v911
              $region174: #{spectral_conv4d_forward.1} parent=168 // loop_footer
                %s898 = sadd.s32 1, %s894
              $region175: #{spectral_conv4d_forward.1} parent=168 // loop_footer_branch
                %893 = sbr.rel target = $region171
              $region176: #{spectral_conv4d_forward.1} parent=168 // loop_exit
                _
            $region169: #{spectral_conv4d_forward.1} parent=164 // pred_fallthru
              _
            // Predicated region
            $region177: #{spectral_conv4d_forward.1} parent=164 // pred_check
              _
            $region178: #{spectral_conv4d_forward.1} parent=164 // pred_check_branch
              %914 = sbr.rel target = $region180
            $region179: #{spectral_conv4d_forward.1} parent=164 // pred_region
              _
            $region180: #{spectral_conv4d_forward.1} parent=164 // pred_fallthru
              _
          $region165: #{spectral_conv4d_forward.1} parent=160 // pred_fallthru
            _
          %915 = vnop
        $region161: #{spectral_conv4d_forward.1} parent=117 // pred_fallthru
          _
      $region118: #{spectral_conv4d_forward.1} parent=5 // pred_fallthru
        _
      %p916 = scmp.le.s32.totalorder 2, %s12
      // Predicated region
      $region181: #{spectral_conv4d_forward.1} parent=5 // pred_check
        %p917 = pneg %p916
      $region182: #{spectral_conv4d_forward.1} parent=5 // pred_check_branch
        %919 = sbr.rel (%p917) target = $region184
      $region183: #{spectral_conv4d_forward.1} parent=5 // pred_region
        %s920 = ssub.s32 %s12, 2
        // Predicated region
        $region185: #{spectral_conv4d_forward.1} parent=183 // pred_check
          %p921 = pneg %p163
        $region186: #{spectral_conv4d_forward.1} parent=183 // pred_check_branch
          %923 = sbr.rel (%p921) target = $region188
        $region187: #{spectral_conv4d_forward.1} parent=183 // pred_region
          %s924 = sand.u32 %s148, 1
          %s925 = sand.u32 %s148, 1
          %s926 = smul.addr %s925, 48
          %s927 = scalar_lea.vmem [#allocation6], %s926
        $region188: #{spectral_conv4d_forward.1} parent=183 // pred_fallthru
          _
        // Predicated region
        $region189: #{spectral_conv4d_forward.1} parent=183 // pred_check
          %p928 = pneg %p191
        $region190: #{spectral_conv4d_forward.1} parent=183 // pred_check_branch
          %930 = sbr.rel (%p928) target = $region192
        $region191: #{spectral_conv4d_forward.1} parent=183 // pred_region
          %s931 = sand.u32 %s176, 1
          %s932 = sand.u32 %s176, 1
          %s933 = smul.addr %s932, 48
          %s934 = scalar_lea.vmem [#allocation7], %s933
        $region192: #{spectral_conv4d_forward.1} parent=183 // pred_fallthru
          _
      $region184: #{spectral_conv4d_forward.1} parent=5 // pred_fallthru
        _
    $region6: #{spectral_conv4d_forward.1} parent=1 // loop_footer
      %s16 = sadd.s32 1, %s12
    $region7: #{spectral_conv4d_forward.1} parent=1 // loop_footer_branch
      %11 = sbr.rel target = $region3
    $region8: #{spectral_conv4d_forward.1} parent=1 // loop_exit
      _

// kernel: reverse.1
$region0: #{reverse.1}
  #allocation0 [shape = 's32[1]{0}', space=sflag, size = 0x4, scoped, tag = 'scoped memory for reverse.1']
  %s0 = inlined_call_operand.vmem [shape: f32[2,4,8,8,8,3], index: 0, kind: input, shape index: {}]
  %s1 = inlined_call_operand.vmem [shape: f32[2,4,8,8,8,3], index: 1, kind: output, shape index: {}]
  %s2 = scalar_lea.vmem %s0, 16
  %v3 = vld [vmem:[%s2] sm:$0xff]
  %4 = vst [vmem:[%s1] sm:$0xff] %v3
  %s5 = scalar_lea.vmem %s0, 784
  %v6 = vld [vmem:[%s5] sm:$0xff]
  %s7 = scalar_lea.vmem %s1, 768
  %8 = vst [vmem:[%s7] sm:$0xff] %v6
  %s9 = scalar_lea.vmem %s0, 208
  %v10 = vld [vmem:[%s9] sm:$0xff]
  %s11 = scalar_lea.vmem %s1, 192
  %12 = vst [vmem:[%s11] sm:$0xff] %v10
  %s13 = scalar_lea.vmem %s0, 976
  %v14 = vld [vmem:[%s13] sm:$0xff]
  %s15 = scalar_lea.vmem %s1, 960
  %16 = vst [vmem:[%s15] sm:$0xff] %v14
  %s17 = scalar_lea.vmem %s0, 400
  %v18 = vld [vmem:[%s17] sm:$0xff]
  %s19 = scalar_lea.vmem %s1, 384
  %20 = vst [vmem:[%s19] sm:$0xff] %v18
  %s21 = scalar_lea.vmem %s0, 1168
  %v22 = vld [vmem:[%s21] sm:$0xff]
  %s23 = scalar_lea.vmem %s1, 1152
  %24 = vst [vmem:[%s23] sm:$0xff] %v22
  %s25 = scalar_lea.vmem %s0, 592
  %v26 = vld [vmem:[%s25] sm:$0xff]
  %s27 = scalar_lea.vmem %s1, 576
  %28 = vst [vmem:[%s27] sm:$0xff] %v26
  %s29 = scalar_lea.vmem %s0, 1360
  %v30 = vld [vmem:[%s29] sm:$0xff]
  %s31 = scalar_lea.vmem %s1, 1344
  %32 = vst [vmem:[%s31] sm:$0xff] %v30
  %s33 = scalar_lea.vmem %s0, 40
  %v34 = vld [vmem:[%s33] sm:$0xff]
  %s35 = scalar_lea.vmem %s1, 24
  %36 = vst [vmem:[%s35] sm:$0xff] %v34
  %s37 = scalar_lea.vmem %s0, 808
  %v38 = vld [vmem:[%s37] sm:$0xff]
  %s39 = scalar_lea.vmem %s1, 792
  %40 = vst [vmem:[%s39] sm:$0xff] %v38
  %s41 = scalar_lea.vmem %s0, 232
  %v42 = vld [vmem:[%s41] sm:$0xff]
  %s43 = scalar_lea.vmem %s1, 216
  %44 = vst [vmem:[%s43] sm:$0xff] %v42
  %s45 = scalar_lea.vmem %s0, 1000
  %v46 = vld [vmem:[%s45] sm:$0xff]
  %s47 = scalar_lea.vmem %s1, 984
  %48 = vst [vmem:[%s47] sm:$0xff] %v46
  %s49 = scalar_lea.vmem %s0, 424
  %v50 = vld [vmem:[%s49] sm:$0xff]
  %s51 = scalar_lea.vmem %s1, 408
  %52 = vst [vmem:[%s51] sm:$0xff] %v50
  %s53 = scalar_lea.vmem %s0, 1192
  %v54 = vld [vmem:[%s53] sm:$0xff]
  %s55 = scalar_lea.vmem %s1, 1176
  %56 = vst [vmem:[%s55] sm:$0xff] %v54
  %s57 = scalar_lea.vmem %s0, 616
  %v58 = vld [vmem:[%s57] sm:$0xff]
  %s59 = scalar_lea.vmem %s1, 600
  %60 = vst [vmem:[%s59] sm:$0xff] %v58
  %s61 = scalar_lea.vmem %s0, 1384
  %v62 = vld [vmem:[%s61] sm:$0xff]
  %s63 = scalar_lea.vmem %s1, 1368
  %64 = vst [vmem:[%s63] sm:$0xff] %v62
  %s65 = scalar_lea.vmem %s0, 64
  %v66 = vld [vmem:[%s65] sm:$0xff]
  %s67 = scalar_lea.vmem %s1, 48
  %68 = vst [vmem:[%s67] sm:$0xff] %v66
  %s69 = scalar_lea.vmem %s0, 832
  %v70 = vld [vmem:[%s69] sm:$0xff]
  %s71 = scalar_lea.vmem %s1, 816
  %72 = vst [vmem:[%s71] sm:$0xff] %v70
  %s73 = scalar_lea.vmem %s0, 256
  %v74 = vld [vmem:[%s73] sm:$0xff]
  %s75 = scalar_lea.vmem %s1, 240
  %76 = vst [vmem:[%s75] sm:$0xff] %v74
  %s77 = scalar_lea.vmem %s0, 1024
  %v78 = vld [vmem:[%s77] sm:$0xff]
  %s79 = scalar_lea.vmem %s1, 1008
  %80 = vst [vmem:[%s79] sm:$0xff] %v78
  %s81 = scalar_lea.vmem %s0, 448
  %v82 = vld [vmem:[%s81] sm:$0xff]
  %s83 = scalar_lea.vmem %s1, 432
  %84 = vst [vmem:[%s83] sm:$0xff] %v82
  %s85 = scalar_lea.vmem %s0, 1216
  %v86 = vld [vmem:[%s85] sm:$0xff]
  %s87 = scalar_lea.vmem %s1, 1200
  %88 = vst [vmem:[%s87] sm:$0xff] %v86
  %s89 = scalar_lea.vmem %s0, 640
  %v90 = vld [vmem:[%s89] sm:$0xff]
  %s91 = scalar_lea.vmem %s1, 624
  %92 = vst [vmem:[%s91] sm:$0xff] %v90
  %s93 = scalar_lea.vmem %s0, 1408
  %v94 = vld [vmem:[%s93] sm:$0xff]
  %s95 = scalar_lea.vmem %s1, 1392
  %96 = vst [vmem:[%s95] sm:$0xff] %v94
  %s97 = scalar_lea.vmem %s0, 88
  %v98 = vld [vmem:[%s97] sm:$0xff]
  %s99 = scalar_lea.vmem %s1, 72
  %100 = vst [vmem:[%s99] sm:$0xff] %v98
  %s101 = scalar_lea.vmem %s0, 856
  %v102 = vld [vmem:[%s101] sm:$0xff]
  %s103 = scalar_lea.vmem %s1, 840
  %104 = vst [vmem:[%s103] sm:$0xff] %v102
  %s105 = scalar_lea.vmem %s0, 280
  %v106 = vld [vmem:[%s105] sm:$0xff]
  %s107 = scalar_lea.vmem %s1, 264
  %108 = vst [vmem:[%s107] sm:$0xff] %v106
  %s109 = scalar_lea.vmem %s0, 1048
  %v110 = vld [vmem:[%s109] sm:$0xff]
  %s111 = scalar_lea.vmem %s1, 1032
  %112 = vst [vmem:[%s111] sm:$0xff] %v110
  %s113 = scalar_lea.vmem %s0, 472
  %v114 = vld [vmem:[%s113] sm:$0xff]
  %s115 = scalar_lea.vmem %s1, 456
  %116 = vst [vmem:[%s115] sm:$0xff] %v114
  %s117 = scalar_lea.vmem %s0, 1240
  %v118 = vld [vmem:[%s117] sm:$0xff]
  %s119 = scalar_lea.vmem %s1, 1224
  %120 = vst [vmem:[%s119] sm:$0xff] %v118
  %s121 = scalar_lea.vmem %s0, 664
  %v122 = vld [vmem:[%s121] sm:$0xff]
  %s123 = scalar_lea.vmem %s1, 648
  %124 = vst [vmem:[%s123] sm:$0xff] %v122
  %s125 = scalar_lea.vmem %s0, 1432
  %v126 = vld [vmem:[%s125] sm:$0xff]
  %s127 = scalar_lea.vmem %s1, 1416
  %128 = vst [vmem:[%s127] sm:$0xff] %v126
  %s129 = scalar_lea.vmem %s0, 112
  %v130 = vld [vmem:[%s129] sm:$0xff]
  %s131 = scalar_lea.vmem %s1, 96
  %132 = vst [vmem:[%s131] sm:$0xff] %v130
  %s133 = scalar_lea.vmem %s0, 880
  %v134 = vld [vmem:[%s133] sm:$0xff]
  %s135 = scalar_lea.vmem %s1, 864
  %136 = vst [vmem:[%s135] sm:$0xff] %v134
  %s137 = scalar_lea.vmem %s0, 304
  %v138 = vld [vmem:[%s137] sm:$0xff]
  %s139 = scalar_lea.vmem %s1, 288
  %140 = vst [vmem:[%s139] sm:$0xff] %v138
  %s141 = scalar_lea.vmem %s0, 1072
  %v142 = vld [vmem:[%s141] sm:$0xff]
  %s143 = scalar_lea.vmem %s1, 1056
  %144 = vst [vmem:[%s143] sm:$0xff] %v142
  %s145 = scalar_lea.vmem %s0, 496
  %v146 = vld [vmem:[%s145] sm:$0xff]
  %s147 = scalar_lea.vmem %s1, 480
  %148 = vst [vmem:[%s147] sm:$0xff] %v146
  %s149 = scalar_lea.vmem %s0, 1264
  %v150 = vld [vmem:[%s149] sm:$0xff]
  %s151 = scalar_lea.vmem %s1, 1248
  %152 = vst [vmem:[%s151] sm:$0xff] %v150
  %s153 = scalar_lea.vmem %s0, 688
  %v154 = vld [vmem:[%s153] sm:$0xff]
  %s155 = scalar_lea.vmem %s1, 672
  %156 = vst [vmem:[%s155] sm:$0xff] %v154
  %s157 = scalar_lea.vmem %s0, 1456
  %v158 = vld [vmem:[%s157] sm:$0xff]
  %s159 = scalar_lea.vmem %s1, 1440
  %160 = vst [vmem:[%s159] sm:$0xff] %v158
  %s161 = scalar_lea.vmem %s0, 136
  %v162 = vld [vmem:[%s161] sm:$0xff]
  %s163 = scalar_lea.vmem %s1, 120
  %164 = vst [vmem:[%s163] sm:$0xff] %v162
  %s165 = scalar_lea.vmem %s0, 904
  %v166 = vld [vmem:[%s165] sm:$0xff]
  %s167 = scalar_lea.vmem %s1, 888
  %168 = vst [vmem:[%s167] sm:$0xff] %v166
  %s169 = scalar_lea.vmem %s0, 328
  %v170 = vld [vmem:[%s169] sm:$0xff]
  %s171 = scalar_lea.vmem %s1, 312
  %172 = vst [vmem:[%s171] sm:$0xff] %v170
  %s173 = scalar_lea.vmem %s0, 1096
  %v174 = vld [vmem:[%s173] sm:$0xff]
  %s175 = scalar_lea.vmem %s1, 1080
  %176 = vst [vmem:[%s175] sm:$0xff] %v174
  %s177 = scalar_lea.vmem %s0, 520
  %v178 = vld [vmem:[%s177] sm:$0xff]
  %s179 = scalar_lea.vmem %s1, 504
  %180 = vst [vmem:[%s179] sm:$0xff] %v178
  %s181 = scalar_lea.vmem %s0, 1288
  %v182 = vld [vmem:[%s181] sm:$0xff]
  %s183 = scalar_lea.vmem %s1, 1272
  %184 = vst [vmem:[%s183] sm:$0xff] %v182
  %s185 = scalar_lea.vmem %s0, 712
  %v186 = vld [vmem:[%s185] sm:$0xff]
  %s187 = scalar_lea.vmem %s1, 696
  %188 = vst [vmem:[%s187] sm:$0xff] %v186
  %s189 = scalar_lea.vmem %s0, 1480
  %v190 = vld [vmem:[%s189] sm:$0xff]
  %s191 = scalar_lea.vmem %s1, 1464
  %192 = vst [vmem:[%s191] sm:$0xff] %v190
  %s193 = scalar_lea.vmem %s0, 160
  %v194 = vld [vmem:[%s193] sm:$0xff]
  %s195 = scalar_lea.vmem %s1, 144
  %196 = vst [vmem:[%s195] sm:$0xff] %v194
  %s197 = scalar_lea.vmem %s0, 928
  %v198 = vld [vmem:[%s197] sm:$0xff]
  %s199 = scalar_lea.vmem %s1, 912
  %200 = vst [vmem:[%s199] sm:$0xff] %v198
  %s201 = scalar_lea.vmem %s0, 352
  %v202 = vld [vmem:[%s201] sm:$0xff]
  %s203 = scalar_lea.vmem %s1, 336
  %204 = vst [vmem:[%s203] sm:$0xff] %v202
  %s205 = scalar_lea.vmem %s0, 1120
  %v206 = vld [vmem:[%s205] sm:$0xff]
  %s207 = scalar_lea.vmem %s1, 1104
  %208 = vst [vmem:[%s207] sm:$0xff] %v206
  %s209 = scalar_lea.vmem %s0, 544
  %v210 = vld [vmem:[%s209] sm:$0xff]
  %s211 = scalar_lea.vmem %s1, 528
  %212 = vst [vmem:[%s211] sm:$0xff] %v210
  %s213 = scalar_lea.vmem %s0, 1312
  %v214 = vld [vmem:[%s213] sm:$0xff]
  %s215 = scalar_lea.vmem %s1, 1296
  %216 = vst [vmem:[%s215] sm:$0xff] %v214
  %s217 = scalar_lea.vmem %s0, 736
  %v218 = vld [vmem:[%s217] sm:$0xff]
  %s219 = scalar_lea.vmem %s1, 720
  %220 = vst [vmem:[%s219] sm:$0xff] %v218
  %s221 = scalar_lea.vmem %s0, 1504
  %v222 = vld [vmem:[%s221] sm:$0xff]
  %s223 = scalar_lea.vmem %s1, 1488
  %224 = vst [vmem:[%s223] sm:$0xff] %v222
  %s225 = scalar_lea.vmem %s0, 184
  %v226 = vld [vmem:[%s225] sm:$0xff]
  %s227 = scalar_lea.vmem %s1, 168
  %228 = vst [vmem:[%s227] sm:$0xff] %v226
  %s229 = scalar_lea.vmem %s0, 952
  %v230 = vld [vmem:[%s229] sm:$0xff]
  %s231 = scalar_lea.vmem %s1, 936
  %232 = vst [vmem:[%s231] sm:$0xff] %v230
  %s233 = scalar_lea.vmem %s0, 376
  %v234 = vld [vmem:[%s233] sm:$0xff]
  %s235 = scalar_lea.vmem %s1, 360
  %236 = vst [vmem:[%s235] sm:$0xff] %v234
  %s237 = scalar_lea.vmem %s0, 1144
  %v238 = vld [vmem:[%s237] sm:$0xff]
  %s239 = scalar_lea.vmem %s1, 1128
  %240 = vst [vmem:[%s239] sm:$0xff] %v238
  %s241 = scalar_lea.vmem %s0, 568
  %v242 = vld [vmem:[%s241] sm:$0xff]
  %s243 = scalar_lea.vmem %s1, 552
  %244 = vst [vmem:[%s243] sm:$0xff] %v242
  %s245 = scalar_lea.vmem %s0, 1336
  %v246 = vld [vmem:[%s245] sm:$0xff]
  %s247 = scalar_lea.vmem %s1, 1320
  %248 = vst [vmem:[%s247] sm:$0xff] %v246
  %s249 = scalar_lea.vmem %s0, 760
  %v250 = vld [vmem:[%s249] sm:$0xff]
  %s251 = scalar_lea.vmem %s1, 744
  %252 = vst [vmem:[%s251] sm:$0xff] %v250
  %s253 = scalar_lea.vmem %s0, 1528
  %v254 = vld [vmem:[%s253] sm:$0xff]
  %s255 = scalar_lea.vmem %s1, 1512
  %256 = vst [vmem:[%s255] sm:$0xff] %v254
  %s257 = scalar_lea.vmem %s0, 8
  %v258 = vld [vmem:[%s257] sm:$0xff]
  %s259 = scalar_lea.vmem %s1, 8
  %260 = vst [vmem:[%s259] sm:$0xff] %v258
  %s261 = scalar_lea.vmem %s0, 776
  %v262 = vld [vmem:[%s261] sm:$0xff]
  %s263 = scalar_lea.vmem %s1, 776
  %264 = vst [vmem:[%s263] sm:$0xff] %v262
  %s265 = scalar_lea.vmem %s0, 200
  %v266 = vld [vmem:[%s265] sm:$0xff]
  %s267 = scalar_lea.vmem %s1, 200
  %268 = vst [vmem:[%s267] sm:$0xff] %v266
  %s269 = scalar_lea.vmem %s0, 968
  %v270 = vld [vmem:[%s269] sm:$0xff]
  %s271 = scalar_lea.vmem %s1, 968
  %272 = vst [vmem:[%s271] sm:$0xff] %v270
  %s273 = scalar_lea.vmem %s0, 392
  %v274 = vld [vmem:[%s273] sm:$0xff]
  %s275 = scalar_lea.vmem %s1, 392
  %276 = vst [vmem:[%s275] sm:$0xff] %v274
  %s277 = scalar_lea.vmem %s0, 1160
  %v278 = vld [vmem:[%s277] sm:$0xff]
  %s279 = scalar_lea.vmem %s1, 1160
  %280 = vst [vmem:[%s279] sm:$0xff] %v278
  %s281 = scalar_lea.vmem %s0, 584
  %v282 = vld [vmem:[%s281] sm:$0xff]
  %s283 = scalar_lea.vmem %s1, 584
  %284 = vst [vmem:[%s283] sm:$0xff] %v282
  %s285 = scalar_lea.vmem %s0, 1352
  %v286 = vld [vmem:[%s285] sm:$0xff]
  %s287 = scalar_lea.vmem %s1, 1352
  %288 = vst [vmem:[%s287] sm:$0xff] %v286
  %s289 = scalar_lea.vmem %s0, 32
  %v290 = vld [vmem:[%s289] sm:$0xff]
  %s291 = scalar_lea.vmem %s1, 32
  %292 = vst [vmem:[%s291] sm:$0xff] %v290
  %s293 = scalar_lea.vmem %s0, 800
  %v294 = vld [vmem:[%s293] sm:$0xff]
  %s295 = scalar_lea.vmem %s1, 800
  %296 = vst [vmem:[%s295] sm:$0xff] %v294
  %s297 = scalar_lea.vmem %s0, 224
  %v298 = vld [vmem:[%s297] sm:$0xff]
  %s299 = scalar_lea.vmem %s1, 224
  %300 = vst [vmem:[%s299] sm:$0xff] %v298
  %s301 = scalar_lea.vmem %s0, 992
  %v302 = vld [vmem:[%s301] sm:$0xff]
  %s303 = scalar_lea.vmem %s1, 992
  %304 = vst [vmem:[%s303] sm:$0xff] %v302
  %s305 = scalar_lea.vmem %s0, 416
  %v306 = vld [vmem:[%s305] sm:$0xff]
  %s307 = scalar_lea.vmem %s1, 416
  %308 = vst [vmem:[%s307] sm:$0xff] %v306
  %s309 = scalar_lea.vmem %s0, 1184
  %v310 = vld [vmem:[%s309] sm:$0xff]
  %s311 = scalar_lea.vmem %s1, 1184
  %312 = vst [vmem:[%s311] sm:$0xff] %v310
  %s313 = scalar_lea.vmem %s0, 608
  %v314 = vld [vmem:[%s313] sm:$0xff]
  %s315 = scalar_lea.vmem %s1, 608
  %316 = vst [vmem:[%s315] sm:$0xff] %v314
  %s317 = scalar_lea.vmem %s0, 1376
  %v318 = vld [vmem:[%s317] sm:$0xff]
  %s319 = scalar_lea.vmem %s1, 1376
  %320 = vst [vmem:[%s319] sm:$0xff] %v318
  %s321 = scalar_lea.vmem %s0, 56
  %v322 = vld [vmem:[%s321] sm:$0xff]
  %s323 = scalar_lea.vmem %s1, 56
  %324 = vst [vmem:[%s323] sm:$0xff] %v322
  %s325 = scalar_lea.vmem %s0, 824
  %v326 = vld [vmem:[%s325] sm:$0xff]
  %s327 = scalar_lea.vmem %s1, 824
  %328 = vst [vmem:[%s327] sm:$0xff] %v326
  %s329 = scalar_lea.vmem %s0, 248
  %v330 = vld [vmem:[%s329] sm:$0xff]
  %s331 = scalar_lea.vmem %s1, 248
  %332 = vst [vmem:[%s331] sm:$0xff] %v330
  %s333 = scalar_lea.vmem %s0, 1016
  %v334 = vld [vmem:[%s333] sm:$0xff]
  %s335 = scalar_lea.vmem %s1, 1016
  %336 = vst [vmem:[%s335] sm:$0xff] %v334
  %s337 = scalar_lea.vmem %s0, 440
  %v338 = vld [vmem:[%s337] sm:$0xff]
  %s339 = scalar_lea.vmem %s1, 440
  %340 = vst [vmem:[%s339] sm:$0xff] %v338
  %s341 = scalar_lea.vmem %s0, 1208
  %v342 = vld [vmem:[%s341] sm:$0xff]
  %s343 = scalar_lea.vmem %s1, 1208
  %344 = vst [vmem:[%s343] sm:$0xff] %v342
  %s345 = scalar_lea.vmem %s0, 632
  %v346 = vld [vmem:[%s345] sm:$0xff]
  %s347 = scalar_lea.vmem %s1, 632
  %348 = vst [vmem:[%s347] sm:$0xff] %v346
  %s349 = scalar_lea.vmem %s0, 1400
  %v350 = vld [vmem:[%s349] sm:$0xff]
  %s351 = scalar_lea.vmem %s1, 1400
  %352 = vst [vmem:[%s351] sm:$0xff] %v350
  %s353 = scalar_lea.vmem %s0, 80
  %v354 = vld [vmem:[%s353] sm:$0xff]
  %s355 = scalar_lea.vmem %s1, 80
  %356 = vst [vmem:[%s355] sm:$0xff] %v354
  %s357 = scalar_lea.vmem %s0, 848
  %v358 = vld [vmem:[%s357] sm:$0xff]
  %s359 = scalar_lea.vmem %s1, 848
  %360 = vst [vmem:[%s359] sm:$0xff] %v358
  %s361 = scalar_lea.vmem %s0, 272
  %v362 = vld [vmem:[%s361] sm:$0xff]
  %s363 = scalar_lea.vmem %s1, 272
  %364 = vst [vmem:[%s363] sm:$0xff] %v362
  %s365 = scalar_lea.vmem %s0, 1040
  %v366 = vld [vmem:[%s365] sm:$0xff]
  %s367 = scalar_lea.vmem %s1, 1040
  %368 = vst [vmem:[%s367] sm:$0xff] %v366
  %s369 = scalar_lea.vmem %s0, 464
  %v370 = vld [vmem:[%s369] sm:$0xff]
  %s371 = scalar_lea.vmem %s1, 464
  %372 = vst [vmem:[%s371] sm:$0xff] %v370
  %s373 = scalar_lea.vmem %s0, 1232
  %v374 = vld [vmem:[%s373] sm:$0xff]
  %s375 = scalar_lea.vmem %s1, 1232
  %376 = vst [vmem:[%s375] sm:$0xff] %v374
  %s377 = scalar_lea.vmem %s0, 656
  %v378 = vld [vmem:[%s377] sm:$0xff]
  %s379 = scalar_lea.vmem %s1, 656
  %380 = vst [vmem:[%s379] sm:$0xff] %v378
  %s381 = scalar_lea.vmem %s0, 1424
  %v382 = vld [vmem:[%s381] sm:$0xff]
  %s383 = scalar_lea.vmem %s1, 1424
  %384 = vst [vmem:[%s383] sm:$0xff] %v382
  %s385 = scalar_lea.vmem %s0, 104
  %v386 = vld [vmem:[%s385] sm:$0xff]
  %s387 = scalar_lea.vmem %s1, 104
  %388 = vst [vmem:[%s387] sm:$0xff] %v386
  %s389 = scalar_lea.vmem %s0, 872
  %v390 = vld [vmem:[%s389] sm:$0xff]
  %s391 = scalar_lea.vmem %s1, 872
  %392 = vst [vmem:[%s391] sm:$0xff] %v390
  %s393 = scalar_lea.vmem %s0, 296
  %v394 = vld [vmem:[%s393] sm:$0xff]
  %s395 = scalar_lea.vmem %s1, 296
  %396 = vst [vmem:[%s395] sm:$0xff] %v394
  %s397 = scalar_lea.vmem %s0, 1064
  %v398 = vld [vmem:[%s397] sm:$0xff]
  %s399 = scalar_lea.vmem %s1, 1064
  %400 = vst [vmem:[%s399] sm:$0xff] %v398
  %s401 = scalar_lea.vmem %s0, 488
  %v402 = vld [vmem:[%s401] sm:$0xff]
  %s403 = scalar_lea.vmem %s1, 488
  %404 = vst [vmem:[%s403] sm:$0xff] %v402
  %s405 = scalar_lea.vmem %s0, 1256
  %v406 = vld [vmem:[%s405] sm:$0xff]
  %s407 = scalar_lea.vmem %s1, 1256
  %408 = vst [vmem:[%s407] sm:$0xff] %v406
  %s409 = scalar_lea.vmem %s0, 680
  %v410 = vld [vmem:[%s409] sm:$0xff]
  %s411 = scalar_lea.vmem %s1, 680
  %412 = vst [vmem:[%s411] sm:$0xff] %v410
  %s413 = scalar_lea.vmem %s0, 1448
  %v414 = vld [vmem:[%s413] sm:$0xff]
  %s415 = scalar_lea.vmem %s1, 1448
  %416 = vst [vmem:[%s415] sm:$0xff] %v414
  %s417 = scalar_lea.vmem %s0, 128
  %v418 = vld [vmem:[%s417] sm:$0xff]
  %s419 = scalar_lea.vmem %s1, 128
  %420 = vst [vmem:[%s419] sm:$0xff] %v418
  %s421 = scalar_lea.vmem %s0, 896
  %v422 = vld [vmem:[%s421] sm:$0xff]
  %s423 = scalar_lea.vmem %s1, 896
  %424 = vst [vmem:[%s423] sm:$0xff] %v422
  %s425 = scalar_lea.vmem %s0, 320
  %v426 = vld [vmem:[%s425] sm:$0xff]
  %s427 = scalar_lea.vmem %s1, 320
  %428 = vst [vmem:[%s427] sm:$0xff] %v426
  %s429 = scalar_lea.vmem %s0, 1088
  %v430 = vld [vmem:[%s429] sm:$0xff]
  %s431 = scalar_lea.vmem %s1, 1088
  %432 = vst [vmem:[%s431] sm:$0xff] %v430
  %s433 = scalar_lea.vmem %s0, 512
  %v434 = vld [vmem:[%s433] sm:$0xff]
  %s435 = scalar_lea.vmem %s1, 512
  %436 = vst [vmem:[%s435] sm:$0xff] %v434
  %s437 = scalar_lea.vmem %s0, 1280
  %v438 = vld [vmem:[%s437] sm:$0xff]
  %s439 = scalar_lea.vmem %s1, 1280
  %440 = vst [vmem:[%s439] sm:$0xff] %v438
  %s441 = scalar_lea.vmem %s0, 704
  %v442 = vld [vmem:[%s441] sm:$0xff]
  %s443 = scalar_lea.vmem %s1, 704
  %444 = vst [vmem:[%s443] sm:$0xff] %v442
  %s445 = scalar_lea.vmem %s0, 1472
  %v446 = vld [vmem:[%s445] sm:$0xff]
  %s447 = scalar_lea.vmem %s1, 1472
  %448 = vst [vmem:[%s447] sm:$0xff] %v446
  %s449 = scalar_lea.vmem %s0, 152
  %v450 = vld [vmem:[%s449] sm:$0xff]
  %s451 = scalar_lea.vmem %s1, 152
  %452 = vst [vmem:[%s451] sm:$0xff] %v450
  %s453 = scalar_lea.vmem %s0, 920
  %v454 = vld [vmem:[%s453] sm:$0xff]
  %s455 = scalar_lea.vmem %s1, 920
  %456 = vst [vmem:[%s455] sm:$0xff] %v454
  %s457 = scalar_lea.vmem %s0, 344
  %v458 = vld [vmem:[%s457] sm:$0xff]
  %s459 = scalar_lea.vmem %s1, 344
  %460 = vst [vmem:[%s459] sm:$0xff] %v458
  %s461 = scalar_lea.vmem %s0, 1112
  %v462 = vld [vmem:[%s461] sm:$0xff]
  %s463 = scalar_lea.vmem %s1, 1112
  %464 = vst [vmem:[%s463] sm:$0xff] %v462
  %s465 = scalar_lea.vmem %s0, 536
  %v466 = vld [vmem:[%s465] sm:$0xff]
  %s467 = scalar_lea.vmem %s1, 536
  %468 = vst [vmem:[%s467] sm:$0xff] %v466
  %s469 = scalar_lea.vmem %s0, 1304
  %v470 = vld [vmem:[%s469] sm:$0xff]
  %s471 = scalar_lea.vmem %s1, 1304
  %472 = vst [vmem:[%s471] sm:$0xff] %v470
  %s473 = scalar_lea.vmem %s0, 728
  %v474 = vld [vmem:[%s473] sm:$0xff]
  %s475 = scalar_lea.vmem %s1, 728
  %476 = vst [vmem:[%s475] sm:$0xff] %v474
  %s477 = scalar_lea.vmem %s0, 1496
  %v478 = vld [vmem:[%s477] sm:$0xff]
  %s479 = scalar_lea.vmem %s1, 1496
  %480 = vst [vmem:[%s479] sm:$0xff] %v478
  %s481 = scalar_lea.vmem %s0, 176
  %v482 = vld [vmem:[%s481] sm:$0xff]
  %s483 = scalar_lea.vmem %s1, 176
  %484 = vst [vmem:[%s483] sm:$0xff] %v482
  %s485 = scalar_lea.vmem %s0, 944
  %v486 = vld [vmem:[%s485] sm:$0xff]
  %s487 = scalar_lea.vmem %s1, 944
  %488 = vst [vmem:[%s487] sm:$0xff] %v486
  %s489 = scalar_lea.vmem %s0, 368
  %v490 = vld [vmem:[%s489] sm:$0xff]
  %s491 = scalar_lea.vmem %s1, 368
  %492 = vst [vmem:[%s491] sm:$0xff] %v490
  %s493 = scalar_lea.vmem %s0, 1136
  %v494 = vld [vmem:[%s493] sm:$0xff]
  %s495 = scalar_lea.vmem %s1, 1136
  %496 = vst [vmem:[%s495] sm:$0xff] %v494
  %s497 = scalar_lea.vmem %s0, 560
  %v498 = vld [vmem:[%s497] sm:$0xff]
  %s499 = scalar_lea.vmem %s1, 560
  %500 = vst [vmem:[%s499] sm:$0xff] %v498
  %s501 = scalar_lea.vmem %s0, 1328
  %v502 = vld [vmem:[%s501] sm:$0xff]
  %s503 = scalar_lea.vmem %s1, 1328
  %504 = vst [vmem:[%s503] sm:$0xff] %v502
  %s505 = scalar_lea.vmem %s0, 752
  %v506 = vld [vmem:[%s505] sm:$0xff]
  %s507 = scalar_lea.vmem %s1, 752
  %508 = vst [vmem:[%s507] sm:$0xff] %v506
  %s509 = scalar_lea.vmem %s0, 1520
  %v510 = vld [vmem:[%s509] sm:$0xff]
  %s511 = scalar_lea.vmem %s1, 1520
  %512 = vst [vmem:[%s511] sm:$0xff] %v510
  %v513 = vld [vmem:[%s0] sm:$0xff]
  %s514 = scalar_lea.vmem %s1, 16
  %515 = vst [vmem:[%s514] sm:$0xff] %v513
  %s516 = scalar_lea.vmem %s0, 768
  %v517 = vld [vmem:[%s516] sm:$0xff]
  %s518 = scalar_lea.vmem %s1, 784
  %519 = vst [vmem:[%s518] sm:$0xff] %v517
  %s520 = scalar_lea.vmem %s0, 192
  %v521 = vld [vmem:[%s520] sm:$0xff]
  %s522 = scalar_lea.vmem %s1, 208
  %523 = vst [vmem:[%s522] sm:$0xff] %v521
  %s524 = scalar_lea.vmem %s0, 960
  %v525 = vld [vmem:[%s524] sm:$0xff]
  %s526 = scalar_lea.vmem %s1, 976
  %527 = vst [vmem:[%s526] sm:$0xff] %v525
  %s528 = scalar_lea.vmem %s0, 384
  %v529 = vld [vmem:[%s528] sm:$0xff]
  %s530 = scalar_lea.vmem %s1, 400
  %531 = vst [vmem:[%s530] sm:$0xff] %v529
  %s532 = scalar_lea.vmem %s0, 1152
  %v533 = vld [vmem:[%s532] sm:$0xff]
  %s534 = scalar_lea.vmem %s1, 1168
  %535 = vst [vmem:[%s534] sm:$0xff] %v533
  %s536 = scalar_lea.vmem %s0, 576
  %v537 = vld [vmem:[%s536] sm:$0xff]
  %s538 = scalar_lea.vmem %s1, 592
  %539 = vst [vmem:[%s538] sm:$0xff] %v537
  %s540 = scalar_lea.vmem %s0, 1344
  %v541 = vld [vmem:[%s540] sm:$0xff]
  %s542 = scalar_lea.vmem %s1, 1360
  %543 = vst [vmem:[%s542] sm:$0xff] %v541
  %s544 = scalar_lea.vmem %s0, 24
  %v545 = vld [vmem:[%s544] sm:$0xff]
  %s546 = scalar_lea.vmem %s1, 40
  %547 = vst [vmem:[%s546] sm:$0xff] %v545
  %s548 = scalar_lea.vmem %s0, 792
  %v549 = vld [vmem:[%s548] sm:$0xff]
  %s550 = scalar_lea.vmem %s1, 808
  %551 = vst [vmem:[%s550] sm:$0xff] %v549
  %s552 = scalar_lea.vmem %s0, 216
  %v553 = vld [vmem:[%s552] sm:$0xff]
  %s554 = scalar_lea.vmem %s1, 232
  %555 = vst [vmem:[%s554] sm:$0xff] %v553
  %s556 = scalar_lea.vmem %s0, 984
  %v557 = vld [vmem:[%s556] sm:$0xff]
  %s558 = scalar_lea.vmem %s1, 1000
  %559 = vst [vmem:[%s558] sm:$0xff] %v557
  %s560 = scalar_lea.vmem %s0, 408
  %v561 = vld [vmem:[%s560] sm:$0xff]
  %s562 = scalar_lea.vmem %s1, 424
  %563 = vst [vmem:[%s562] sm:$0xff] %v561
  %s564 = scalar_lea.vmem %s0, 1176
  %v565 = vld [vmem:[%s564] sm:$0xff]
  %s566 = scalar_lea.vmem %s1, 1192
  %567 = vst [vmem:[%s566] sm:$0xff] %v565
  %s568 = scalar_lea.vmem %s0, 600
  %v569 = vld [vmem:[%s568] sm:$0xff]
  %s570 = scalar_lea.vmem %s1, 616
  %571 = vst [vmem:[%s570] sm:$0xff] %v569
  %s572 = scalar_lea.vmem %s0, 1368
  %v573 = vld [vmem:[%s572] sm:$0xff]
  %s574 = scalar_lea.vmem %s1, 1384
  %575 = vst [vmem:[%s574] sm:$0xff] %v573
  %s576 = scalar_lea.vmem %s0, 48
  %v577 = vld [vmem:[%s576] sm:$0xff]
  %s578 = scalar_lea.vmem %s1, 64
  %579 = vst [vmem:[%s578] sm:$0xff] %v577
  %s580 = scalar_lea.vmem %s0, 816
  %v581 = vld [vmem:[%s580] sm:$0xff]
  %s582 = scalar_lea.vmem %s1, 832
  %583 = vst [vmem:[%s582] sm:$0xff] %v581
  %s584 = scalar_lea.vmem %s0, 240
  %v585 = vld [vmem:[%s584] sm:$0xff]
  %s586 = scalar_lea.vmem %s1, 256
  %587 = vst [vmem:[%s586] sm:$0xff] %v585
  %s588 = scalar_lea.vmem %s0, 1008
  %v589 = vld [vmem:[%s588] sm:$0xff]
  %s590 = scalar_lea.vmem %s1, 1024
  %591 = vst [vmem:[%s590] sm:$0xff] %v589
  %s592 = scalar_lea.vmem %s0, 432
  %v593 = vld [vmem:[%s592] sm:$0xff]
  %s594 = scalar_lea.vmem %s1, 448
  %595 = vst [vmem:[%s594] sm:$0xff] %v593
  %s596 = scalar_lea.vmem %s0, 1200
  %v597 = vld [vmem:[%s596] sm:$0xff]
  %s598 = scalar_lea.vmem %s1, 1216
  %599 = vst [vmem:[%s598] sm:$0xff] %v597
  %s600 = scalar_lea.vmem %s0, 624
  %v601 = vld [vmem:[%s600] sm:$0xff]
  %s602 = scalar_lea.vmem %s1, 640
  %603 = vst [vmem:[%s602] sm:$0xff] %v601
  %s604 = scalar_lea.vmem %s0, 1392
  %v605 = vld [vmem:[%s604] sm:$0xff]
  %s606 = scalar_lea.vmem %s1, 1408
  %607 = vst [vmem:[%s606] sm:$0xff] %v605
  %s608 = scalar_lea.vmem %s0, 72
  %v609 = vld [vmem:[%s608] sm:$0xff]
  %s610 = scalar_lea.vmem %s1, 88
  %611 = vst [vmem:[%s610] sm:$0xff] %v609
  %s612 = scalar_lea.vmem %s0, 840
  %v613 = vld [vmem:[%s612] sm:$0xff]
  %s614 = scalar_lea.vmem %s1, 856
  %615 = vst [vmem:[%s614] sm:$0xff] %v613
  %s616 = scalar_lea.vmem %s0, 264
  %v617 = vld [vmem:[%s616] sm:$0xff]
  %s618 = scalar_lea.vmem %s1, 280
  %619 = vst [vmem:[%s618] sm:$0xff] %v617
  %s620 = scalar_lea.vmem %s0, 1032
  %v621 = vld [vmem:[%s620] sm:$0xff]
  %s622 = scalar_lea.vmem %s1, 1048
  %623 = vst [vmem:[%s622] sm:$0xff] %v621
  %s624 = scalar_lea.vmem %s0, 456
  %v625 = vld [vmem:[%s624] sm:$0xff]
  %s626 = scalar_lea.vmem %s1, 472
  %627 = vst [vmem:[%s626] sm:$0xff] %v625
  %s628 = scalar_lea.vmem %s0, 1224
  %v629 = vld [vmem:[%s628] sm:$0xff]
  %s630 = scalar_lea.vmem %s1, 1240
  %631 = vst [vmem:[%s630] sm:$0xff] %v629
  %s632 = scalar_lea.vmem %s0, 648
  %v633 = vld [vmem:[%s632] sm:$0xff]
  %s634 = scalar_lea.vmem %s1, 664
  %635 = vst [vmem:[%s634] sm:$0xff] %v633
  %s636 = scalar_lea.vmem %s0, 1416
  %v637 = vld [vmem:[%s636] sm:$0xff]
  %s638 = scalar_lea.vmem %s1, 1432
  %639 = vst [vmem:[%s638] sm:$0xff] %v637
  %s640 = scalar_lea.vmem %s0, 96
  %v641 = vld [vmem:[%s640] sm:$0xff]
  %s642 = scalar_lea.vmem %s1, 112
  %643 = vst [vmem:[%s642] sm:$0xff] %v641
  %s644 = scalar_lea.vmem %s0, 864
  %v645 = vld [vmem:[%s644] sm:$0xff]
  %s646 = scalar_lea.vmem %s1, 880
  %647 = vst [vmem:[%s646] sm:$0xff] %v645
  %s648 = scalar_lea.vmem %s0, 288
  %v649 = vld [vmem:[%s648] sm:$0xff]
  %s650 = scalar_lea.vmem %s1, 304
  %651 = vst [vmem:[%s650] sm:$0xff] %v649
  %s652 = scalar_lea.vmem %s0, 1056
  %v653 = vld [vmem:[%s652] sm:$0xff]
  %s654 = scalar_lea.vmem %s1, 1072
  %655 = vst [vmem:[%s654] sm:$0xff] %v653
  %s656 = scalar_lea.vmem %s0, 480
  %v657 = vld [vmem:[%s656] sm:$0xff]
  %s658 = scalar_lea.vmem %s1, 496
  %659 = vst [vmem:[%s658] sm:$0xff] %v657
  %s660 = scalar_lea.vmem %s0, 1248
  %v661 = vld [vmem:[%s660] sm:$0xff]
  %s662 = scalar_lea.vmem %s1, 1264
  %663 = vst [vmem:[%s662] sm:$0xff] %v661
  %s664 = scalar_lea.vmem %s0, 672
  %v665 = vld [vmem:[%s664] sm:$0xff]
  %s666 = scalar_lea.vmem %s1, 688
  %667 = vst [vmem:[%s666] sm:$0xff] %v665
  %s668 = scalar_lea.vmem %s0, 1440
  %v669 = vld [vmem:[%s668] sm:$0xff]
  %s670 = scalar_lea.vmem %s1, 1456
  %671 = vst [vmem:[%s670] sm:$0xff] %v669
  %s672 = scalar_lea.vmem %s0, 120
  %v673 = vld [vmem:[%s672] sm:$0xff]
  %s674 = scalar_lea.vmem %s1, 136
  %675 = vst [vmem:[%s674] sm:$0xff] %v673
  %s676 = scalar_lea.vmem %s0, 888
  %v677 = vld [vmem:[%s676] sm:$0xff]
  %s678 = scalar_lea.vmem %s1, 904
  %679 = vst [vmem:[%s678] sm:$0xff] %v677
  %s680 = scalar_lea.vmem %s0, 312
  %v681 = vld [vmem:[%s680] sm:$0xff]
  %s682 = scalar_lea.vmem %s1, 328
  %683 = vst [vmem:[%s682] sm:$0xff] %v681
  %s684 = scalar_lea.vmem %s0, 1080
  %v685 = vld [vmem:[%s684] sm:$0xff]
  %s686 = scalar_lea.vmem %s1, 1096
  %687 = vst [vmem:[%s686] sm:$0xff] %v685
  %s688 = scalar_lea.vmem %s0, 504
  %v689 = vld [vmem:[%s688] sm:$0xff]
  %s690 = scalar_lea.vmem %s1, 520
  %691 = vst [vmem:[%s690] sm:$0xff] %v689
  %s692 = scalar_lea.vmem %s0, 1272
  %v693 = vld [vmem:[%s692] sm:$0xff]
  %s694 = scalar_lea.vmem %s1, 1288
  %695 = vst [vmem:[%s694] sm:$0xff] %v693
  %s696 = scalar_lea.vmem %s0, 696
  %v697 = vld [vmem:[%s696] sm:$0xff]
  %s698 = scalar_lea.vmem %s1, 712
  %699 = vst [vmem:[%s698] sm:$0xff] %v697
  %s700 = scalar_lea.vmem %s0, 1464
  %v701 = vld [vmem:[%s700] sm:$0xff]
  %s702 = scalar_lea.vmem %s1, 1480
  %703 = vst [vmem:[%s702] sm:$0xff] %v701
  %s704 = scalar_lea.vmem %s0, 144
  %v705 = vld [vmem:[%s704] sm:$0xff]
  %s706 = scalar_lea.vmem %s1, 160
  %707 = vst [vmem:[%s706] sm:$0xff] %v705
  %s708 = scalar_lea.vmem %s0, 912
  %v709 = vld [vmem:[%s708] sm:$0xff]
  %s710 = scalar_lea.vmem %s1, 928
  %711 = vst [vmem:[%s710] sm:$0xff] %v709
  %s712 = scalar_lea.vmem %s0, 336
  %v713 = vld [vmem:[%s712] sm:$0xff]
  %s714 = scalar_lea.vmem %s1, 352
  %715 = vst [vmem:[%s714] sm:$0xff] %v713
  %s716 = scalar_lea.vmem %s0, 1104
  %v717 = vld [vmem:[%s716] sm:$0xff]
  %s718 = scalar_lea.vmem %s1, 1120
  %719 = vst [vmem:[%s718] sm:$0xff] %v717
  %s720 = scalar_lea.vmem %s0, 528
  %v721 = vld [vmem:[%s720] sm:$0xff]
  %s722 = scalar_lea.vmem %s1, 544
  %723 = vst [vmem:[%s722] sm:$0xff] %v721
  %s724 = scalar_lea.vmem %s0, 1296
  %v725 = vld [vmem:[%s724] sm:$0xff]
  %s726 = scalar_lea.vmem %s1, 1312
  %727 = vst [vmem:[%s726] sm:$0xff] %v725
  %s728 = scalar_lea.vmem %s0, 720
  %v729 = vld [vmem:[%s728] sm:$0xff]
  %s730 = scalar_lea.vmem %s1, 736
  %731 = vst [vmem:[%s730] sm:$0xff] %v729
  %s732 = scalar_lea.vmem %s0, 1488
  %v733 = vld [vmem:[%s732] sm:$0xff]
  %s734 = scalar_lea.vmem %s1, 1504
  %735 = vst [vmem:[%s734] sm:$0xff] %v733
  %s736 = scalar_lea.vmem %s0, 168
  %v737 = vld [vmem:[%s736] sm:$0xff]
  %s738 = scalar_lea.vmem %s1, 184
  %739 = vst [vmem:[%s738] sm:$0xff] %v737
  %s740 = scalar_lea.vmem %s0, 936
  %v741 = vld [vmem:[%s740] sm:$0xff]
  %s742 = scalar_lea.vmem %s1, 952
  %743 = vst [vmem:[%s742] sm:$0xff] %v741
  %s744 = scalar_lea.vmem %s0, 360
  %v745 = vld [vmem:[%s744] sm:$0xff]
  %s746 = scalar_lea.vmem %s1, 376
  %747 = vst [vmem:[%s746] sm:$0xff] %v745
  %s748 = scalar_lea.vmem %s0, 1128
  %v749 = vld [vmem:[%s748] sm:$0xff]
  %s750 = scalar_lea.vmem %s1, 1144
  %751 = vst [vmem:[%s750] sm:$0xff] %v749
  %s752 = scalar_lea.vmem %s0, 552
  %v753 = vld [vmem:[%s752] sm:$0xff]
  %s754 = scalar_lea.vmem %s1, 568
  %755 = vst [vmem:[%s754] sm:$0xff] %v753
  %s756 = scalar_lea.vmem %s0, 1320
  %v757 = vld [vmem:[%s756] sm:$0xff]
  %s758 = scalar_lea.vmem %s1, 1336
  %759 = vst [vmem:[%s758] sm:$0xff] %v757
  %s760 = scalar_lea.vmem %s0, 744
  %v761 = vld [vmem:[%s760] sm:$0xff]
  %s762 = scalar_lea.vmem %s1, 760
  %763 = vst [vmem:[%s762] sm:$0xff] %v761
  %s764 = scalar_lea.vmem %s0, 1512
  %v765 = vld [vmem:[%s764] sm:$0xff]
  %s766 = scalar_lea.vmem %s1, 1528
  %767 = vst [vmem:[%s766] sm:$0xff] %v765

</llo_original>
